<compile_context>
chip_gen: v7x
topology: tpu7x:2x2x1
jax: 0.10.0
libtpu: 0.0.40
codegen_flags: <defaults>
</compile_context>

<pallas_src>
import functools

import jax
import jax.numpy as jnp
from jax.experimental import pallas as pl
from jax.experimental.pallas import tpu as pltpu

LEAKY_SLOPE = 0.01

# ----------------------------------------------------------------------------
# Geometry (input must be 1x28x28 so that Flatten -> 3136 = 64*7*7).
#
# conv2 input planes (stride-2 deinterleaved conv1 output, padded coords):
#   E-plane row (i*16 + j), lanes [32g+ci] = y1_pad[2i,   2j+g][ci]   (240 rows)
#   O-plane row (i*16 + j), lanes [32g+ci] = y1_pad[2i+1, 2j+g][ci]   (224 rows)
# conv2 output rows m = 16*ho + wo (wo in [0,16), wo>=14 junk, masked to 0).
#
# conv3 input buffer B2 (pitch 16, kw-concatenated lanes):
#   B2[16r + c, 64g+c2] = y2_pad[r, c+g][c2]          (256 rows, 192 lanes)
# conv3 full-res output rows m3 = 16h + w; sel3 picks (2h3, 2w3) into a
# compact pitch-9 7x7 map (64 rows, junk cols zeroed).
#
# conv4 input buffer B3 (pitch 9, kw-concatenated lanes):
#   B3[9r + c, 64g+c3] = y3_pad[r, c+g][c3]           (88 rows, 192 lanes)
# conv4 output rows m4 = 9*h4 + w4 (w4>=7 and row 63 junk, zero FC weight).
# ----------------------------------------------------------------------------
E1_ROWS, O1_ROWS = 240, 224          # 15*16 and 14*16
M2_ROWS = 224                        # conv2 output rows (14*16)
B2_ROWS = 256                        # conv3 input buffer rows
B3_ROWS = 88                         # conv4 input buffer rows
M4_ROWS = 64                         # conv4 output rows (7*9 + 1 pad)


# ----------------------------------------------------------------------------
# The fused encoder kernel (one grid step == one image).
# ----------------------------------------------------------------------------
def _encoder_kernel(xe_ref, xo_ref,
                    w1t_ref, b1t_ref, maske_ref, masko_ref,
                    w2_ref, b2_ref, mask2_ref,
                    w3_ref, b3_ref, sel3_ref,
                    w4_ref, b4_ref,
                    wfc_ref, bfc_ref, eye_ref,
                    out_ref,
                    e1, o1, bb2, bb3,
                    *, latent_dim):
    f32 = jnp.float32

    def leaky(v):
        return jnp.where(v >= 0.0, v, LEAKY_SLOPE * v)

    def dot(a, b):
        return jnp.dot(a, b, preferred_element_type=f32)

    # ---- conv1 (1 -> 32, stride 1), emitted directly in conv2's stride-2 ----
    # ---- deinterleaved plane layout via folded weights: 2 MXU matmuls.   ----
    e1[...] = leaky(dot(xe_ref[0], w1t_ref[...]) + b1t_ref[...]) * maske_ref[...]
    o1[...] = leaky(dot(xo_ref[0], w1t_ref[...]) + b1t_ref[...]) * masko_ref[...]

    # ---- conv2 (32 -> 64, stride 2): 3 merged-kw matmuls, K = 96,        ----
    # ---- computed only at the 14x14 output resolution (pitch-16 rows).   ----
    acc2 = (dot(e1[0:224, :], w2_ref[0]) +
            dot(o1[0:224, :], w2_ref[1]) +
            dot(e1[16:240, :], w2_ref[2]))
    y2 = leaky(acc2 + b2_ref[...]) * mask2_ref[...]          # [224, 64]

    # Scatter y2 into conv3's padded kw-concatenated buffer with three
    # contiguous row-shifted lane-group stores; halo rows re-zeroed per step.
    bb2[0:17, :] = jnp.zeros((17, 192), f32)
    bb2[239:256, :] = jnp.zeros((17, 192), f32)
    bb2[17:241, 0:64] = y2
    bb2[16:240, 64:128] = y2
    bb2[15:239, 128:192] = y2

    # ---- conv3 (64 -> 64, stride 2): full-res stride-1 compute with       ----
    # ---- K = 192, then stride-2 row/col pick via one small selection dot. ----
    acc3 = (dot(bb2[0:224, :], w3_ref[0]) +
            dot(bb2[16:240, :], w3_ref[1]) +
            dot(bb2[32:256, :], w3_ref[2]))
    y3f = leaky(acc3 + b3_ref[...])                           # [224, 64]
    y3 = dot(sel3_ref[...], y3f)                              # [64, 64] pitch-9 7x7

    bb3[0:10, :] = jnp.zeros((10, 192), f32)
    bb3[72:82, :] = jnp.zeros((10, 192), f32)
    bb3[10:74, 0:64] = y3
    bb3[9:73, 64:128] = y3
    bb3[8:72, 128:192] = y3

    # ---- conv4 (64 -> 64, stride 1): 3 merged-kw matmuls, K = 192. ----
    acc4 = (dot(bb3[0:64, :], w4_ref[0]) +
            dot(bb3[9:73, :], w4_ref[1]) +
            dot(bb3[18:82, :], w4_ref[2]))
    y4 = leaky(acc4 + b4_ref[...])                            # [64, 64]

    # ---- Linear(3136, latent). latent_dim is tiny, so a short reduce loop. ----
    logits = bfc_ref[...]                                     # [1, latent]
    for l in range(latent_dim):
        s = jnp.sum(y4 * wfc_ref[l], axis=0, keepdims=True)   # [1, 64]
        s = jnp.sum(s, axis=1, keepdims=True)                  # [1, 1]
        logits = logits + s * eye_ref[l:l + 1, :]
    out_ref[0] = jnp.broadcast_to(logits, (8, latent_dim))


# ----------------------------------------------------------------------------
# Host-side constant preparation (tiny, one-time layout work).
# ----------------------------------------------------------------------------
def _prep_constants(params, latent_dim):
    f32 = jnp.float32
    w1, b1 = params["w1"].astype(f32), params["b1"].astype(f32)
    w2, b2 = params["w2"].astype(f32), params["b2"].astype(f32)
    w3, b3 = params["w3"].astype(f32), params["b3"].astype(f32)
    w4, b4 = params["w4"].astype(f32), params["b4"].astype(f32)

    # conv1 weights folded so that one [*, 16] patch row produces the 3
    # horizontally consecutive conv1 outputs of one plane entry (96 lanes).
    w1t = jnp.zeros((16, 96), f32)
    for g in range(3):
        for dr in range(3):
            for kw in range(3):
                p = dr * 5 + (kw + g)
                w1t = w1t.at[p, 32 * g:32 * (g + 1)].set(w1[:, 0, dr, kw])
    b1t = jnp.tile(b1, 3).reshape(1, 96)

    # Plane validity masks: zero padding rows/cols and the unused j>=14 tail.
    lane_g = jnp.arange(96) // 32
    def plane_mask(n_i, row0_is_pad):
        rows = n_i * 16
        i = jnp.arange(rows) // 16
        j = jnp.arange(rows) % 16
        ok = (j < 14)[:, None] & ~((j == 0)[:, None] & (lane_g == 0)[None, :])
        if row0_is_pad:
            ok = ok & (i >= 1)[:, None]
        return ok.astype(f32)
    mask_e = plane_mask(15, True)      # [240, 96]
    mask_o = plane_mask(14, False)     # [224, 96]

    # Merged-kw conv weights: [kh, kw*cin + ci, cout].
    def merge_w(w, cin):
        return jnp.transpose(w, (2, 3, 1, 0)).reshape(3, 3 * cin, w.shape[0])
    w2m, w3m, w4m = merge_w(w2, 32), merge_w(w3, 64), merge_w(w4, 64)
    b2r, b3r, b4r = b2.reshape(1, 64), b3.reshape(1, 64), b4.reshape(1, 64)

    # conv2 junk-column mask (pitch-16 output rows, wo >= 14 are padding slots).
    mask2 = ((jnp.arange(M2_ROWS) % 16) < 14).astype(f32).reshape(M2_ROWS, 1)

    # Stride-2 selection for conv3: pick full-res rows (2h, 2w) into pitch-9 7x7.
    r = jnp.arange(M4_ROWS)
    h4, w4i = r // 9, r % 9
    src = 2 * h4 * 16 + 2 * w4i
    valid = ((w4i < 7) & (r < 63)).astype(f32)
    sel3 = jax.nn.one_hot(jnp.where(valid > 0, src, 0), M2_ROWS, dtype=f32)
    sel3 = sel3 * valid[:, None]                               # [64, 224]

    # FC weights permuted from NCHW flatten order into the kernel's
    # (m = h*9 + w, channel) layout, junk positions get zero weight.
    wfc = params["w_fc"].astype(f32).reshape(64, 7, 7, latent_dim)  # [c,h,w,l]
    wfc = jnp.transpose(wfc, (3, 1, 2, 0))                     # [l, h, w, c]
    wfc = jnp.pad(wfc, ((0, 0), (0, 0), (0, 2), (0, 0)))       # [l, 7, 9, c]
    wfc = wfc.reshape(latent_dim, 63, 64)
    wfc = jnp.pad(wfc, ((0, 0), (0, 1), (0, 0)))               # [l, 64, 64]
    bfc = params["b_fc"].astype(f32).reshape(1, latent_dim)
    eye = jnp.eye(latent_dim, dtype=f32)

    return (w1t, b1t, mask_e, mask_o, w2m, b2r, mask2,
            w3m, b3r, sel3, w4m, b4r, wfc, bfc, eye)


# ----------------------------------------------------------------------------
# Host-side input prep: plane-ordered im2col of the single-channel image so
# that conv1's output lands directly in conv2's deinterleaved plane layout.
# Each patch row holds the 3x5 input window feeding 3 consecutive outputs.
# ----------------------------------------------------------------------------
def _prep_inputs(x_nchw):
    B = x_nchw.shape[0]
    x = x_nchw[:, 0].astype(jnp.float32)                       # [B, 28, 28]
    canvas = jnp.zeros((B, 32, 36), jnp.float32)
    canvas = canvas.at[:, 2:30, 2:30].set(x)
    dr = jnp.arange(3)[None, None, :, None]
    dc = jnp.arange(5)[None, None, None, :]
    jj = (2 * jnp.arange(16))[None, :, None, None]
    i_e = (2 * jnp.arange(15))[:, None, None, None]
    i_o = (2 * jnp.arange(14) + 1)[:, None, None, None]
    cols = jj + dc
    xe = canvas[:, i_e + dr, cols].reshape(B, E1_ROWS, 15)
    xo = canvas[:, i_o + dr, cols].reshape(B, O1_ROWS, 15)
    xe = jnp.pad(xe, ((0, 0), (0, 0), (0, 1)))                 # [B, 240, 16]
    xo = jnp.pad(xo, ((0, 0), (0, 0), (0, 1)))                 # [B, 224, 16]
    return xe, xo


def _const_spec(arr):
    zeros = (0,) * arr.ndim
    return pl.BlockSpec(arr.shape, lambda b, z=zeros: z)


# ----------------------------------------------------------------------------
# Public forward: NCHW float32 in, [B, latent] out (matches PyTorch).
# ----------------------------------------------------------------------------
def encoder_forward(x_nchw, params, latent_dim=2):
    B = x_nchw.shape[0]
    consts = _prep_constants(params, latent_dim)
    xe, xo = _prep_inputs(x_nchw)

    kernel = functools.partial(_encoder_kernel, latent_dim=latent_dim)

    in_specs = [
        pl.BlockSpec((1, E1_ROWS, 16), lambda b: (b, 0, 0)),
        pl.BlockSpec((1, O1_ROWS, 16), lambda b: (b, 0, 0)),
    ] + [_const_spec(c) for c in consts]

    out = pl.pallas_call(
        kernel,
        out_shape=jax.ShapeDtypeStruct((B, 8, latent_dim), jnp.float32),
        grid=(B,),
        in_specs=in_specs,
        out_specs=pl.BlockSpec((1, 8, latent_dim), lambda b: (b, 0, 0)),
        scratch_shapes=[
            pltpu.VMEM((E1_ROWS, 96), jnp.float32),    # conv2 even-row plane
            pltpu.VMEM((O1_ROWS, 96), jnp.float32),    # conv2 odd-row plane
            pltpu.VMEM((B2_ROWS, 192), jnp.float32),   # conv3 padded 3-tap input
            pltpu.VMEM((B3_ROWS, 192), jnp.float32),   # conv4 padded 3-tap input
        ],
        compiler_params=pltpu.CompilerParams(
            dimension_semantics=("parallel",)),
    )(xe, xo, *consts)

    return out[:, 0, :]


# ----------------------------------------------------------------------------
# Deterministic parameter init (synthetic, small values).
# ----------------------------------------------------------------------------
def init_params(key, latent_dim=2):
    ks = jax.random.split(key, 10)

    def conv_w(k, cout, cin):
        scale = 1.0 / jnp.sqrt(cin * 9.0)
        return jax.random.uniform(k, (cout, cin, 3, 3), jnp.float32, -scale, scale)

    def vec(k, n, fan_in):
        scale = 1.0 / jnp.sqrt(float(fan_in))
        return jax.random.uniform(k, (n,), jnp.float32, -scale, scale)

    return {
        "w1": conv_w(ks[0], 32, 1),  "b1": vec(ks[1], 32, 9),
        "w2": conv_w(ks[2], 64, 32), "b2": vec(ks[3], 64, 32 * 9),
        "w3": conv_w(ks[4], 64, 64), "b3": vec(ks[5], 64, 64 * 9),
        "w4": conv_w(ks[6], 64, 64), "b4": vec(ks[7], 64, 64 * 9),
        "w_fc": jax.random.uniform(ks[8], (3136, latent_dim), jnp.float32,
                                   -1.0 / jnp.sqrt(3136.0), 1.0 / jnp.sqrt(3136.0)),
        "b_fc": vec(ks[9], latent_dim, 3136),
    }


# ----------------------------------------------------------------------------
# Pure-JAX (XLA conv) reference for verification.
# ----------------------------------------------------------------------------
def reference_forward(x_nchw, params):
    def conv(x, w, b, stride):
        y = jax.lax.conv_general_dilated(
            x, w, (stride, stride), ((1, 1), (1, 1)),
            dimension_numbers=("NCHW", "OIHW", "NCHW"))
        y = y + b[None, :, None, None]
        return jnp.where(y >= 0.0, y, LEAKY_SLOPE * y)

    x = conv(x_nchw, params["w1"], params["b1"], 1)
    x = conv(x, params["w2"], params["b2"], 2)
    x = conv(x, params["w3"], params["b3"], 2)
    x = conv(x, params["w4"], params["b4"], 1)
    x = x.reshape(x.shape[0], -1)
    return x @ params["w_fc"] + params["b_fc"]


if __name__ == "__main__":
    key = jax.random.PRNGKey(0)
    k_x, k_p = jax.random.split(key)

    # Input consistent with Linear(3136, 2): [B, 1, 28, 28], NCHW like PyTorch.
    x = jax.random.normal(k_x, (2, 1, 28, 28), jnp.float32)
    params = init_params(k_p, latent_dim=2)

    fwd = jax.jit(encoder_forward)
    out = jax.block_until_ready(fwd(x, params))
    assert out.shape == (2, 2), out.shape

    ref = jax.block_until_ready(reference_forward(x, params))
    assert jnp.allclose(out, ref, atol=1e-3, rtol=1e-3), (out, ref)

    print("KERNEL_OK")
</pallas_src>

<mosaic_0001>
module attributes {stable_mosaic.version = 11 : i64} {
  func.func @_encoder_kernel(%arg0: i32, %arg1: memref<1x240x16xf32, #tpu.memory_space<vmem>>, %arg2: memref<1x224x16xf32, #tpu.memory_space<vmem>>, %arg3: memref<16x96xf32, #tpu.memory_space<vmem>>, %arg4: memref<1x96xf32, #tpu.memory_space<vmem>>, %arg5: memref<240x96xf32, #tpu.memory_space<vmem>>, %arg6: memref<224x96xf32, #tpu.memory_space<vmem>>, %arg7: memref<3x96x64xf32, #tpu.memory_space<vmem>>, %arg8: memref<1x64xf32, #tpu.memory_space<vmem>>, %arg9: memref<224x1xf32, #tpu.memory_space<vmem>>, %arg10: memref<3x192x64xf32, #tpu.memory_space<vmem>>, %arg11: memref<1x64xf32, #tpu.memory_space<vmem>>, %arg12: memref<64x224xf32, #tpu.memory_space<vmem>>, %arg13: memref<3x192x64xf32, #tpu.memory_space<vmem>>, %arg14: memref<1x64xf32, #tpu.memory_space<vmem>>, %arg15: memref<2x64x64xf32, #tpu.memory_space<vmem>>, %arg16: memref<1x2xf32, #tpu.memory_space<vmem>>, %arg17: memref<2x2xf32, #tpu.memory_space<vmem>>, %arg18: memref<1x8x2xf32, #tpu.memory_space<vmem>>, %arg19: memref<240x96xf32, #tpu.memory_space<vmem>>, %arg20: memref<224x96xf32, #tpu.memory_space<vmem>>, %arg21: memref<256x192xf32, #tpu.memory_space<vmem>>, %arg22: memref<88x192xf32, #tpu.memory_space<vmem>>) attributes {dimension_semantics = [#tpu.dimension_semantics<parallel>], iteration_bounds = array<i64: 2>, scalar_prefetch = 0 : i64, scratch_operands = 4 : i64, tpu.core_type = #tpu.core_type<tc>, window_params = [{transform_indices = @transform_0, window_bounds = array<i64: 1, 240, 16>}, {transform_indices = @transform_1, window_bounds = array<i64: 1, 224, 16>}, {pipeline_mode = #tpu.pipeline_mode<synchronous>, transform_indices = @transform_2, window_bounds = array<i64: 16, 96>}, {pipeline_mode = #tpu.pipeline_mode<synchronous>, transform_indices = @transform_3, window_bounds = array<i64: 1, 96>}, {pipeline_mode = #tpu.pipeline_mode<synchronous>, transform_indices = @transform_4, window_bounds = array<i64: 240, 96>}, {pipeline_mode = #tpu.pipeline_mode<synchronous>, transform_indices = @transform_5, window_bounds = array<i64: 224, 96>}, {pipeline_mode = #tpu.pipeline_mode<synchronous>, transform_indices = @transform_6, window_bounds = array<i64: 3, 96, 64>}, {pipeline_mode = #tpu.pipeline_mode<synchronous>, transform_indices = @transform_7, window_bounds = array<i64: 1, 64>}, {pipeline_mode = #tpu.pipeline_mode<synchronous>, transform_indices = @transform_8, window_bounds = array<i64: 224, 1>}, {pipeline_mode = #tpu.pipeline_mode<synchronous>, transform_indices = @transform_9, window_bounds = array<i64: 3, 192, 64>}, {pipeline_mode = #tpu.pipeline_mode<synchronous>, transform_indices = @transform_10, window_bounds = array<i64: 1, 64>}, {pipeline_mode = #tpu.pipeline_mode<synchronous>, transform_indices = @transform_11, window_bounds = array<i64: 64, 224>}, {pipeline_mode = #tpu.pipeline_mode<synchronous>, transform_indices = @transform_12, window_bounds = array<i64: 3, 192, 64>}, {pipeline_mode = #tpu.pipeline_mode<synchronous>, transform_indices = @transform_13, window_bounds = array<i64: 1, 64>}, {pipeline_mode = #tpu.pipeline_mode<synchronous>, transform_indices = @transform_14, window_bounds = array<i64: 2, 64, 64>}, {pipeline_mode = #tpu.pipeline_mode<synchronous>, transform_indices = @transform_15, window_bounds = array<i64: 1, 2>}, {pipeline_mode = #tpu.pipeline_mode<synchronous>, transform_indices = @transform_16, window_bounds = array<i64: 2, 2>}, {transform_indices = @transform_17, window_bounds = array<i64: 1, 8, 2>}]} {
    %c0 = arith.constant 0 : index
    %c0_0 = arith.constant 0 : index
    %c0_1 = arith.constant 0 : index
    %0 = vector.load %arg1[%c0, %c0_0, %c0_1] : memref<1x240x16xf32, #tpu.memory_space<vmem>>, vector<1x240x16xf32>
    %1 = vector.shape_cast %0 : vector<1x240x16xf32> to vector<240x16xf32>
    %c0_2 = arith.constant 0 : index
    %c0_3 = arith.constant 0 : index
    %2 = vector.load %arg3[%c0_2, %c0_3] : memref<16x96xf32, #tpu.memory_space<vmem>>, vector<16x96xf32>
    %cst = arith.constant dense<0.000000e+00> : vector<240x96xf32>
    %3 = tpu.matmul %1, %2, %cst {dimension_numbers = #tpu.dot_dimension_numbers<[1], [0], [0], [1], [0, 0, 1, 1], [], []>} : vector<240x16xf32>, vector<16x96xf32>, vector<240x96xf32> -> vector<240x96xf32>
    %c0_4 = arith.constant 0 : index
    %c0_5 = arith.constant 0 : index
    %4 = vector.load %arg4[%c0_4, %c0_5] : memref<1x96xf32, #tpu.memory_space<vmem>>, vector<1x96xf32>
    %5 = vector.broadcast %4 : vector<1x96xf32> to vector<240x96xf32>
    %6 = arith.addf %3, %5 : vector<240x96xf32>
    %cst_6 = arith.constant 0.000000e+00 : f32
    %7 = vector.broadcast %cst_6 : f32 to vector<240x96xf32>
    %8 = arith.cmpf oge, %6, %7 : vector<240x96xf32>
    %cst_7 = arith.constant 0.00999999977 : f32
    %9 = vector.broadcast %cst_7 : f32 to vector<240x96xf32>
    %10 = arith.mulf %9, %6 : vector<240x96xf32>
    %11 = arith.select %8, %6, %10 : vector<240x96xi1>, vector<240x96xf32>
    %c0_8 = arith.constant 0 : index
    %c0_9 = arith.constant 0 : index
    %12 = vector.load %arg5[%c0_8, %c0_9] : memref<240x96xf32, #tpu.memory_space<vmem>>, vector<240x96xf32>
    %13 = arith.mulf %11, %12 : vector<240x96xf32>
    %c0_10 = arith.constant 0 : index
    %c0_11 = arith.constant 0 : index
    %14 = vector.load %arg19[%c0_10, %c0_11] : memref<240x96xf32, #tpu.memory_space<vmem>>, vector<240x96xf32>
    tpu.vector_store %arg19[%c0_10, %c0_11], %13 {strides = array<i32>} : memref<240x96xf32, #tpu.memory_space<vmem>>, vector<240x96xf32>,
    %c0_12 = arith.constant 0 : index
    %c0_13 = arith.constant 0 : index
    %c0_14 = arith.constant 0 : index
    %15 = vector.load %arg2[%c0_12, %c0_13, %c0_14] : memref<1x224x16xf32, #tpu.memory_space<vmem>>, vector<1x224x16xf32>
    %16 = vector.shape_cast %15 : vector<1x224x16xf32> to vector<224x16xf32>
    %c0_15 = arith.constant 0 : index
    %c0_16 = arith.constant 0 : index
    %17 = vector.load %arg3[%c0_15, %c0_16] : memref<16x96xf32, #tpu.memory_space<vmem>>, vector<16x96xf32>
    %cst_17 = arith.constant dense<0.000000e+00> : vector<224x96xf32>
    %18 = tpu.matmul %16, %17, %cst_17 {dimension_numbers = #tpu.dot_dimension_numbers<[1], [0], [0], [1], [0, 0, 1, 1], [], []>} : vector<224x16xf32>, vector<16x96xf32>, vector<224x96xf32> -> vector<224x96xf32>
    %c0_18 = arith.constant 0 : index
    %c0_19 = arith.constant 0 : index
    %19 = vector.load %arg4[%c0_18, %c0_19] : memref<1x96xf32, #tpu.memory_space<vmem>>, vector<1x96xf32>
    %20 = vector.broadcast %19 : vector<1x96xf32> to vector<224x96xf32>
    %21 = arith.addf %18, %20 : vector<224x96xf32>
    %cst_20 = arith.constant 0.000000e+00 : f32
    %22 = vector.broadcast %cst_20 : f32 to vector<224x96xf32>
    %23 = arith.cmpf oge, %21, %22 : vector<224x96xf32>
    %cst_21 = arith.constant 0.00999999977 : f32
    %24 = vector.broadcast %cst_21 : f32 to vector<224x96xf32>
    %25 = arith.mulf %24, %21 : vector<224x96xf32>
    %26 = arith.select %23, %21, %25 : vector<224x96xi1>, vector<224x96xf32>
    %c0_22 = arith.constant 0 : index
    %c0_23 = arith.constant 0 : index
    %27 = vector.load %arg6[%c0_22, %c0_23] : memref<224x96xf32, #tpu.memory_space<vmem>>, vector<224x96xf32>
    %28 = arith.mulf %26, %27 : vector<224x96xf32>
    %c0_24 = arith.constant 0 : index
    %c0_25 = arith.constant 0 : index
    %29 = vector.load %arg20[%c0_24, %c0_25] : memref<224x96xf32, #tpu.memory_space<vmem>>, vector<224x96xf32>
    tpu.vector_store %arg20[%c0_24, %c0_25], %28 {strides = array<i32>} : memref<224x96xf32, #tpu.memory_space<vmem>>, vector<224x96xf32>,
    %c0_26 = arith.constant 0 : index
    %c0_27 = arith.constant 0 : index
    %30 = vector.load %arg19[%c0_26, %c0_27] : memref<240x96xf32, #tpu.memory_space<vmem>>, vector<224x96xf32>
    %c0_28 = arith.constant 0 : index
    %c0_29 = arith.constant 0 : index
    %c0_30 = arith.constant 0 : index
    %31 = vector.load %arg7[%c0_28, %c0_29, %c0_30] : memref<3x96x64xf32, #tpu.memory_space<vmem>>, vector<1x96x64xf32>
    %32 = vector.shape_cast %31 : vector<1x96x64xf32> to vector<96x64xf32>
    %cst_31 = arith.constant dense<0.000000e+00> : vector<224x64xf32>
    %33 = tpu.matmul %30, %32, %cst_31 {dimension_numbers = #tpu.dot_dimension_numbers<[1], [0], [0], [1], [0, 0, 1, 1], [], []>} : vector<224x96xf32>, vector<96x64xf32>, vector<224x64xf32> -> vector<224x64xf32>
    %c0_32 = arith.constant 0 : index
    %c0_33 = arith.constant 0 : index
    %34 = vector.load %arg20[%c0_32, %c0_33] : memref<224x96xf32, #tpu.memory_space<vmem>>, vector<224x96xf32>
    %c1 = arith.constant 1 : index
    %c0_34 = arith.constant 0 : index
    %c0_35 = arith.constant 0 : index
    %35 = vector.load %arg7[%c1, %c0_34, %c0_35] : memref<3x96x64xf32, #tpu.memory_space<vmem>>, vector<1x96x64xf32>
    %36 = vector.shape_cast %35 : vector<1x96x64xf32> to vector<96x64xf32>
    %cst_36 = arith.constant dense<0.000000e+00> : vector<224x64xf32>
    %37 = tpu.matmul %34, %36, %cst_36 {dimension_numbers = #tpu.dot_dimension_numbers<[1], [0], [0], [1], [0, 0, 1, 1], [], []>} : vector<224x96xf32>, vector<96x64xf32>, vector<224x64xf32> -> vector<224x64xf32>
    %38 = arith.addf %33, %37 : vector<224x64xf32>
    %c16 = arith.constant 16 : index
    %c0_37 = arith.constant 0 : index
    %39 = vector.load %arg19[%c16, %c0_37] : memref<240x96xf32, #tpu.memory_space<vmem>>, vector<224x96xf32>
    %c2 = arith.constant 2 : index
    %c0_38 = arith.constant 0 : index
    %c0_39 = arith.constant 0 : index
    %40 = vector.load %arg7[%c2, %c0_38, %c0_39] : memref<3x96x64xf32, #tpu.memory_space<vmem>>, vector<1x96x64xf32>
    %41 = vector.shape_cast %40 : vector<1x96x64xf32> to vector<96x64xf32>
    %cst_40 = arith.constant dense<0.000000e+00> : vector<224x64xf32>
    %42 = tpu.matmul %39, %41, %cst_40 {dimension_numbers = #tpu.dot_dimension_numbers<[1], [0], [0], [1], [0, 0, 1, 1], [], []>} : vector<224x96xf32>, vector<96x64xf32>, vector<224x64xf32> -> vector<224x64xf32>
    %43 = arith.addf %38, %42 : vector<224x64xf32>
    %c0_41 = arith.constant 0 : index
    %c0_42 = arith.constant 0 : index
    %44 = vector.load %arg8[%c0_41, %c0_42] : memref<1x64xf32, #tpu.memory_space<vmem>>, vector<1x64xf32>
    %45 = vector.broadcast %44 : vector<1x64xf32> to vector<224x64xf32>
    %46 = arith.addf %43, %45 : vector<224x64xf32>
    %cst_43 = arith.constant 0.000000e+00 : f32
    %47 = vector.broadcast %cst_43 : f32 to vector<224x64xf32>
    %48 = arith.cmpf oge, %46, %47 : vector<224x64xf32>
    %cst_44 = arith.constant 0.00999999977 : f32
    %49 = vector.broadcast %cst_44 : f32 to vector<224x64xf32>
    %50 = arith.mulf %49, %46 : vector<224x64xf32>
    %51 = arith.select %48, %46, %50 : vector<224x64xi1>, vector<224x64xf32>
    %c0_45 = arith.constant 0 : index
    %c0_46 = arith.constant 0 : index
    %52 = vector.load %arg9[%c0_45, %c0_46] : memref<224x1xf32, #tpu.memory_space<vmem>>, vector<224x1xf32>
    %53 = vector.broadcast %52 : vector<224x1xf32> to vector<224x64xf32>
    %54 = arith.mulf %51, %53 : vector<224x64xf32>
    %cst_47 = arith.constant 0.000000e+00 : f32
    %55 = vector.broadcast %cst_47 : f32 to vector<17x192xf32>
    %c0_48 = arith.constant 0 : index
    %c0_49 = arith.constant 0 : index
    %56 = vector.load %arg21[%c0_48, %c0_49] : memref<256x192xf32, #tpu.memory_space<vmem>>, vector<17x192xf32>
    tpu.vector_store %arg21[%c0_48, %c0_49], %55 {strides = array<i32>} : memref<256x192xf32, #tpu.memory_space<vmem>>, vector<17x192xf32>,
    %cst_50 = arith.constant 0.000000e+00 : f32
    %57 = vector.broadcast %cst_50 : f32 to vector<17x192xf32>
    %c239 = arith.constant 239 : index
    %c0_51 = arith.constant 0 : index
    %58 = vector.load %arg21[%c239, %c0_51] : memref<256x192xf32, #tpu.memory_space<vmem>>, vector<17x192xf32>
    tpu.vector_store %arg21[%c239, %c0_51], %57 {strides = array<i32>} : memref<256x192xf32, #tpu.memory_space<vmem>>, vector<17x192xf32>,
    %c17 = arith.constant 17 : index
    %c0_52 = arith.constant 0 : index
    %59 = vector.load %arg21[%c17, %c0_52] : memref<256x192xf32, #tpu.memory_space<vmem>>, vector<224x64xf32>
    tpu.vector_store %arg21[%c17, %c0_52], %54 {strides = array<i32>} : memref<256x192xf32, #tpu.memory_space<vmem>>, vector<224x64xf32>,
    %c16_53 = arith.constant 16 : index
    %c64 = arith.constant 64 : index
    %60 = vector.load %arg21[%c16_53, %c64] : memref<256x192xf32, #tpu.memory_space<vmem>>, vector<224x64xf32>
    tpu.vector_store %arg21[%c16_53, %c64], %54 {strides = array<i32>} : memref<256x192xf32, #tpu.memory_space<vmem>>, vector<224x64xf32>,
    %c15 = arith.constant 15 : index
    %c128 = arith.constant 128 : index
    %61 = vector.load %arg21[%c15, %c128] : memref<256x192xf32, #tpu.memory_space<vmem>>, vector<224x64xf32>
    tpu.vector_store %arg21[%c15, %c128], %54 {strides = array<i32>} : memref<256x192xf32, #tpu.memory_space<vmem>>, vector<224x64xf32>,
    %c0_54 = arith.constant 0 : index
    %c0_55 = arith.constant 0 : index
    %62 = vector.load %arg21[%c0_54, %c0_55] : memref<256x192xf32, #tpu.memory_space<vmem>>, vector<224x192xf32>
    %c0_56 = arith.constant 0 : index
    %c0_57 = arith.constant 0 : index
    %c0_58 = arith.constant 0 : index
    %63 = vector.load %arg10[%c0_56, %c0_57, %c0_58] : memref<3x192x64xf32, #tpu.memory_space<vmem>>, vector<1x192x64xf32>
    %64 = vector.shape_cast %63 : vector<1x192x64xf32> to vector<192x64xf32>
    %cst_59 = arith.constant dense<0.000000e+00> : vector<224x64xf32>
    %65 = tpu.matmul %62, %64, %cst_59 {dimension_numbers = #tpu.dot_dimension_numbers<[1], [0], [0], [1], [0, 0, 1, 1], [], []>} : vector<224x192xf32>, vector<192x64xf32>, vector<224x64xf32> -> vector<224x64xf32>
    %c16_60 = arith.constant 16 : index
    %c0_61 = arith.constant 0 : index
    %66 = vector.load %arg21[%c16_60, %c0_61] : memref<256x192xf32, #tpu.memory_space<vmem>>, vector<224x192xf32>
    %c1_62 = arith.constant 1 : index
    %c0_63 = arith.constant 0 : index
    %c0_64 = arith.constant 0 : index
    %67 = vector.load %arg10[%c1_62, %c0_63, %c0_64] : memref<3x192x64xf32, #tpu.memory_space<vmem>>, vector<1x192x64xf32>
    %68 = vector.shape_cast %67 : vector<1x192x64xf32> to vector<192x64xf32>
    %cst_65 = arith.constant dense<0.000000e+00> : vector<224x64xf32>
    %69 = tpu.matmul %66, %68, %cst_65 {dimension_numbers = #tpu.dot_dimension_numbers<[1], [0], [0], [1], [0, 0, 1, 1], [], []>} : vector<224x192xf32>, vector<192x64xf32>, vector<224x64xf32> -> vector<224x64xf32>
    %70 = arith.addf %65, %69 : vector<224x64xf32>
    %c32 = arith.constant 32 : index
    %c0_66 = arith.constant 0 : index
    %71 = vector.load %arg21[%c32, %c0_66] : memref<256x192xf32, #tpu.memory_space<vmem>>, vector<224x192xf32>
    %c2_67 = arith.constant 2 : index
    %c0_68 = arith.constant 0 : index
    %c0_69 = arith.constant 0 : index
    %72 = vector.load %arg10[%c2_67, %c0_68, %c0_69] : memref<3x192x64xf32, #tpu.memory_space<vmem>>, vector<1x192x64xf32>
    %73 = vector.shape_cast %72 : vector<1x192x64xf32> to vector<192x64xf32>
    %cst_70 = arith.constant dense<0.000000e+00> : vector<224x64xf32>
    %74 = tpu.matmul %71, %73, %cst_70 {dimension_numbers = #tpu.dot_dimension_numbers<[1], [0], [0], [1], [0, 0, 1, 1], [], []>} : vector<224x192xf32>, vector<192x64xf32>, vector<224x64xf32> -> vector<224x64xf32>
    %75 = arith.addf %70, %74 : vector<224x64xf32>
    %c0_71 = arith.constant 0 : index
    %c0_72 = arith.constant 0 : index
    %76 = vector.load %arg11[%c0_71, %c0_72] : memref<1x64xf32, #tpu.memory_space<vmem>>, vector<1x64xf32>
    %77 = vector.broadcast %76 : vector<1x64xf32> to vector<224x64xf32>
    %78 = arith.addf %75, %77 : vector<224x64xf32>
    %cst_73 = arith.constant 0.000000e+00 : f32
    %79 = vector.broadcast %cst_73 : f32 to vector<224x64xf32>
    %80 = arith.cmpf oge, %78, %79 : vector<224x64xf32>
    %cst_74 = arith.constant 0.00999999977 : f32
    %81 = vector.broadcast %cst_74 : f32 to vector<224x64xf32>
    %82 = arith.mulf %81, %78 : vector<224x64xf32>
    %83 = arith.select %80, %78, %82 : vector<224x64xi1>, vector<224x64xf32>
    %c0_75 = arith.constant 0 : index
    %c0_76 = arith.constant 0 : index
    %84 = vector.load %arg12[%c0_75, %c0_76] : memref<64x224xf32, #tpu.memory_space<vmem>>, vector<64x224xf32>
    %cst_77 = arith.constant dense<0.000000e+00> : vector<64x64xf32>
    %85 = tpu.matmul %84, %83, %cst_77 {dimension_numbers = #tpu.dot_dimension_numbers<[1], [0], [0], [1], [0, 0, 1, 1], [], []>} : vector<64x224xf32>, vector<224x64xf32>, vector<64x64xf32> -> vector<64x64xf32>
    %cst_78 = arith.constant 0.000000e+00 : f32
    %86 = vector.broadcast %cst_78 : f32 to vector<10x192xf32>
    %c0_79 = arith.constant 0 : index
    %c0_80 = arith.constant 0 : index
    %87 = vector.load %arg22[%c0_79, %c0_80] : memref<88x192xf32, #tpu.memory_space<vmem>>, vector<10x192xf32>
    tpu.vector_store %arg22[%c0_79, %c0_80], %86 {strides = array<i32>} : memref<88x192xf32, #tpu.memory_space<vmem>>, vector<10x192xf32>,
    %cst_81 = arith.constant 0.000000e+00 : f32
    %88 = vector.broadcast %cst_81 : f32 to vector<10x192xf32>
    %c72 = arith.constant 72 : index
    %c0_82 = arith.constant 0 : index
    %89 = vector.load %arg22[%c72, %c0_82] : memref<88x192xf32, #tpu.memory_space<vmem>>, vector<10x192xf32>
    tpu.vector_store %arg22[%c72, %c0_82], %88 {strides = array<i32>} : memref<88x192xf32, #tpu.memory_space<vmem>>, vector<10x192xf32>,
    %c10 = arith.constant 10 : index
    %c0_83 = arith.constant 0 : index
    %90 = vector.load %arg22[%c10, %c0_83] : memref<88x192xf32, #tpu.memory_space<vmem>>, vector<64x64xf32>
    tpu.vector_store %arg22[%c10, %c0_83], %85 {strides = array<i32>} : memref<88x192xf32, #tpu.memory_space<vmem>>, vector<64x64xf32>,
    %c9 = arith.constant 9 : index
    %c64_84 = arith.constant 64 : index
    %91 = vector.load %arg22[%c9, %c64_84] : memref<88x192xf32, #tpu.memory_space<vmem>>, vector<64x64xf32>
    tpu.vector_store %arg22[%c9, %c64_84], %85 {strides = array<i32>} : memref<88x192xf32, #tpu.memory_space<vmem>>, vector<64x64xf32>,
    %c8 = arith.constant 8 : index
    %c128_85 = arith.constant 128 : index
    %92 = vector.load %arg22[%c8, %c128_85] : memref<88x192xf32, #tpu.memory_space<vmem>>, vector<64x64xf32>
    tpu.vector_store %arg22[%c8, %c128_85], %85 {strides = array<i32>} : memref<88x192xf32, #tpu.memory_space<vmem>>, vector<64x64xf32>,
    %c0_86 = arith.constant 0 : index
    %c0_87 = arith.constant 0 : index
    %93 = vector.load %arg22[%c0_86, %c0_87] : memref<88x192xf32, #tpu.memory_space<vmem>>, vector<64x192xf32>
    %c0_88 = arith.constant 0 : index
    %c0_89 = arith.constant 0 : index
    %c0_90 = arith.constant 0 : index
    %94 = vector.load %arg13[%c0_88, %c0_89, %c0_90] : memref<3x192x64xf32, #tpu.memory_space<vmem>>, vector<1x192x64xf32>
    %95 = vector.shape_cast %94 : vector<1x192x64xf32> to vector<192x64xf32>
    %cst_91 = arith.constant dense<0.000000e+00> : vector<64x64xf32>
    %96 = tpu.matmul %93, %95, %cst_91 {dimension_numbers = #tpu.dot_dimension_numbers<[1], [0], [0], [1], [0, 0, 1, 1], [], []>} : vector<64x192xf32>, vector<192x64xf32>, vector<64x64xf32> -> vector<64x64xf32>
    %c9_92 = arith.constant 9 : index
    %c0_93 = arith.constant 0 : index
    %97 = vector.load %arg22[%c9_92, %c0_93] : memref<88x192xf32, #tpu.memory_space<vmem>>, vector<64x192xf32>
    %c1_94 = arith.constant 1 : index
    %c0_95 = arith.constant 0 : index
    %c0_96 = arith.constant 0 : index
    %98 = vector.load %arg13[%c1_94, %c0_95, %c0_96] : memref<3x192x64xf32, #tpu.memory_space<vmem>>, vector<1x192x64xf32>
    %99 = vector.shape_cast %98 : vector<1x192x64xf32> to vector<192x64xf32>
    %cst_97 = arith.constant dense<0.000000e+00> : vector<64x64xf32>
    %100 = tpu.matmul %97, %99, %cst_97 {dimension_numbers = #tpu.dot_dimension_numbers<[1], [0], [0], [1], [0, 0, 1, 1], [], []>} : vector<64x192xf32>, vector<192x64xf32>, vector<64x64xf32> -> vector<64x64xf32>
    %101 = arith.addf %96, %100 : vector<64x64xf32>
    %c18 = arith.constant 18 : index
    %c0_98 = arith.constant 0 : index
    %102 = vector.load %arg22[%c18, %c0_98] : memref<88x192xf32, #tpu.memory_space<vmem>>, vector<64x192xf32>
    %c2_99 = arith.constant 2 : index
    %c0_100 = arith.constant 0 : index
    %c0_101 = arith.constant 0 : index
    %103 = vector.load %arg13[%c2_99, %c0_100, %c0_101] : memref<3x192x64xf32, #tpu.memory_space<vmem>>, vector<1x192x64xf32>
    %104 = vector.shape_cast %103 : vector<1x192x64xf32> to vector<192x64xf32>
    %cst_102 = arith.constant dense<0.000000e+00> : vector<64x64xf32>
    %105 = tpu.matmul %102, %104, %cst_102 {dimension_numbers = #tpu.dot_dimension_numbers<[1], [0], [0], [1], [0, 0, 1, 1], [], []>} : vector<64x192xf32>, vector<192x64xf32>, vector<64x64xf32> -> vector<64x64xf32>
    %106 = arith.addf %101, %105 : vector<64x64xf32>
    %c0_103 = arith.constant 0 : index
    %c0_104 = arith.constant 0 : index
    %107 = vector.load %arg14[%c0_103, %c0_104] : memref<1x64xf32, #tpu.memory_space<vmem>>, vector<1x64xf32>
    %108 = vector.broadcast %107 : vector<1x64xf32> to vector<64x64xf32>
    %109 = arith.addf %106, %108 : vector<64x64xf32>
    %cst_105 = arith.constant 0.000000e+00 : f32
    %110 = vector.broadcast %cst_105 : f32 to vector<64x64xf32>
    %111 = arith.cmpf oge, %109, %110 : vector<64x64xf32>
    %cst_106 = arith.constant 0.00999999977 : f32
    %112 = vector.broadcast %cst_106 : f32 to vector<64x64xf32>
    %113 = arith.mulf %112, %109 : vector<64x64xf32>
    %114 = arith.select %111, %109, %113 : vector<64x64xi1>, vector<64x64xf32>
    %c0_107 = arith.constant 0 : index
    %c0_108 = arith.constant 0 : index
    %115 = vector.load %arg16[%c0_107, %c0_108] : memref<1x2xf32, #tpu.memory_space<vmem>>, vector<1x2xf32>
    %c0_109 = arith.constant 0 : index
    %c0_110 = arith.constant 0 : index
    %c0_111 = arith.constant 0 : index
    %116 = vector.load %arg15[%c0_109, %c0_110, %c0_111] : memref<2x64x64xf32, #tpu.memory_space<vmem>>, vector<1x64x64xf32>
    %117 = vector.shape_cast %116 : vector<1x64x64xf32> to vector<64x64xf32>
    %118 = arith.mulf %114, %117 : vector<64x64xf32>
    %cst_112 = arith.constant dense<0.000000e+00> : vector<64xf32>
    %119 = vector.multi_reduction <add>, %118, %cst_112 [0] : vector<64x64xf32> to vector<64xf32>
    %120 = vector.shape_cast %119 : vector<64xf32> to vector<1x64xf32>
    %cst_113 = arith.constant dense<0.000000e+00> : vector<1xf32>
    %121 = vector.multi_reduction <add>, %120, %cst_113 [1] : vector<1x64xf32> to vector<1xf32>
    %122 = vector.shape_cast %121 : vector<1xf32> to vector<1x1xf32>
    %c0_114 = arith.constant 0 : index
    %c0_115 = arith.constant 0 : index
    %123 = vector.load %arg17[%c0_114, %c0_115] : memref<2x2xf32, #tpu.memory_space<vmem>>, vector<1x2xf32>
    %124 = vector.broadcast %122 : vector<1x1xf32> to vector<1x2xf32>
    %125 = arith.mulf %124, %123 : vector<1x2xf32>
    %126 = arith.addf %115, %125 : vector<1x2xf32>
    %c1_116 = arith.constant 1 : index
    %c0_117 = arith.constant 0 : index
    %c0_118 = arith.constant 0 : index
    %127 = vector.load %arg15[%c1_116, %c0_117, %c0_118] : memref<2x64x64xf32, #tpu.memory_space<vmem>>, vector<1x64x64xf32>
    %128 = vector.shape_cast %127 : vector<1x64x64xf32> to vector<64x64xf32>
    %129 = arith.mulf %114, %128 : vector<64x64xf32>
    %cst_119 = arith.constant dense<0.000000e+00> : vector<64xf32>
    %130 = vector.multi_reduction <add>, %129, %cst_119 [0] : vector<64x64xf32> to vector<64xf32>
    %131 = vector.shape_cast %130 : vector<64xf32> to vector<1x64xf32>
    %cst_120 = arith.constant dense<0.000000e+00> : vector<1xf32>
    %132 = vector.multi_reduction <add>, %131, %cst_120 [1] : vector<1x64xf32> to vector<1xf32>
    %133 = vector.shape_cast %132 : vector<1xf32> to vector<1x1xf32>
    %c1_121 = arith.constant 1 : index
    %c0_122 = arith.constant 0 : index
    %134 = vector.load %arg17[%c1_121, %c0_122] : memref<2x2xf32, #tpu.memory_space<vmem>>, vector<1x2xf32>
    %135 = vector.broadcast %133 : vector<1x1xf32> to vector<1x2xf32>
    %136 = arith.mulf %135, %134 : vector<1x2xf32>
    %137 = arith.addf %126, %136 : vector<1x2xf32>
    %138 = vector.shape_cast %137 : vector<1x2xf32> to vector<1x2xf32>
    %139 = vector.broadcast %138 : vector<1x2xf32> to vector<8x2xf32>
    %c0_123 = arith.constant 0 : index
    %c0_124 = arith.constant 0 : index
    %c0_125 = arith.constant 0 : index
    %140 = vector.load %arg18[%c0_123, %c0_124, %c0_125] : memref<1x8x2xf32, #tpu.memory_space<vmem>>, vector<1x8x2xf32>
    %141 = vector.shape_cast %140 : vector<1x8x2xf32> to vector<8x2xf32>
    %142 = vector.shape_cast %139 : vector<8x2xf32> to vector<1x8x2xf32>
    tpu.vector_store %arg18[%c0_123, %c0_124, %c0_125], %142 {strides = array<i32>} : memref<1x8x2xf32, #tpu.memory_space<vmem>>, vector<1x8x2xf32>,
    return
  }
  func.func @transform_0(%arg0: i32) -> (i32, i32, i32) {
    %c0_i32 = arith.constant 0 : i32
    %c0_i32_0 = arith.constant 0 : i32
    %c0_i32_1 = arith.constant 0 : i32
    return %arg0, %c0_i32, %c0_i32_0 : i32, i32, i32
  }
  func.func @transform_1(%arg0: i32) -> (i32, i32, i32) {
    %c0_i32 = arith.constant 0 : i32
    %c0_i32_0 = arith.constant 0 : i32
    %c0_i32_1 = arith.constant 0 : i32
    return %arg0, %c0_i32, %c0_i32_0 : i32, i32, i32
  }
  func.func @transform_2(%arg0: i32) -> (i32, i32) {
    %c0_i32 = arith.constant 0 : i32
    %c0_i32_0 = arith.constant 0 : i32
    %c0_i32_1 = arith.constant 0 : i32
    return %c0_i32, %c0_i32_0 : i32, i32
  }
  func.func @transform_3(%arg0: i32) -> (i32, i32) {
    %c0_i32 = arith.constant 0 : i32
    %c0_i32_0 = arith.constant 0 : i32
    %c0_i32_1 = arith.constant 0 : i32
    return %c0_i32, %c0_i32_0 : i32, i32
  }
  func.func @transform_4(%arg0: i32) -> (i32, i32) {
    %c0_i32 = arith.constant 0 : i32
    %c0_i32_0 = arith.constant 0 : i32
    %c0_i32_1 = arith.constant 0 : i32
    return %c0_i32, %c0_i32_0 : i32, i32
  }
  func.func @transform_5(%arg0: i32) -> (i32, i32) {
    %c0_i32 = arith.constant 0 : i32
    %c0_i32_0 = arith.constant 0 : i32
    %c0_i32_1 = arith.constant 0 : i32
    return %c0_i32, %c0_i32_0 : i32, i32
  }
  func.func @transform_6(%arg0: i32) -> (i32, i32, i32) {
    %c0_i32 = arith.constant 0 : i32
    %c0_i32_0 = arith.constant 0 : i32
    %c0_i32_1 = arith.constant 0 : i32
    %c0_i32_2 = arith.constant 0 : i32
    return %c0_i32, %c0_i32_0, %c0_i32_1 : i32, i32, i32
  }
  func.func @transform_7(%arg0: i32) -> (i32, i32) {
    %c0_i32 = arith.constant 0 : i32
    %c0_i32_0 = arith.constant 0 : i32
    %c0_i32_1 = arith.constant 0 : i32
    return %c0_i32, %c0_i32_0 : i32, i32
  }
  func.func @transform_8(%arg0: i32) -> (i32, i32) {
    %c0_i32 = arith.constant 0 : i32
    %c0_i32_0 = arith.constant 0 : i32
    %c0_i32_1 = arith.constant 0 : i32
    return %c0_i32, %c0_i32_0 : i32, i32
  }
  func.func @transform_9(%arg0: i32) -> (i32, i32, i32) {
    %c0_i32 = arith.constant 0 : i32
    %c0_i32_0 = arith.constant 0 : i32
    %c0_i32_1 = arith.constant 0 : i32
    %c0_i32_2 = arith.constant 0 : i32
    return %c0_i32, %c0_i32_0, %c0_i32_1 : i32, i32, i32
  }
  func.func @transform_10(%arg0: i32) -> (i32, i32) {
    %c0_i32 = arith.constant 0 : i32
    %c0_i32_0 = arith.constant 0 : i32
    %c0_i32_1 = arith.constant 0 : i32
    return %c0_i32, %c0_i32_0 : i32, i32
  }
  func.func @transform_11(%arg0: i32) -> (i32, i32) {
    %c0_i32 = arith.constant 0 : i32
    %c0_i32_0 = arith.constant 0 : i32
    %c0_i32_1 = arith.constant 0 : i32
    return %c0_i32, %c0_i32_0 : i32, i32
  }
  func.func @transform_12(%arg0: i32) -> (i32, i32, i32) {
    %c0_i32 = arith.constant 0 : i32
    %c0_i32_0 = arith.constant 0 : i32
    %c0_i32_1 = arith.constant 0 : i32
    %c0_i32_2 = arith.constant 0 : i32
    return %c0_i32, %c0_i32_0, %c0_i32_1 : i32, i32, i32
  }
  func.func @transform_13(%arg0: i32) -> (i32, i32) {
    %c0_i32 = arith.constant 0 : i32
    %c0_i32_0 = arith.constant 0 : i32
    %c0_i32_1 = arith.constant 0 : i32
    return %c0_i32, %c0_i32_0 : i32, i32
  }
  func.func @transform_14(%arg0: i32) -> (i32, i32, i32) {
    %c0_i32 = arith.constant 0 : i32
    %c0_i32_0 = arith.constant 0 : i32
    %c0_i32_1 = arith.constant 0 : i32
    %c0_i32_2 = arith.constant 0 : i32
    return %c0_i32, %c0_i32_0, %c0_i32_1 : i32, i32, i32
  }
  func.func @transform_15(%arg0: i32) -> (i32, i32) {
    %c0_i32 = arith.constant 0 : i32
    %c0_i32_0 = arith.constant 0 : i32
    %c0_i32_1 = arith.constant 0 : i32
    return %c0_i32, %c0_i32_0 : i32, i32
  }
  func.func @transform_16(%arg0: i32) -> (i32, i32) {
    %c0_i32 = arith.constant 0 : i32
    %c0_i32_0 = arith.constant 0 : i32
    %c0_i32_1 = arith.constant 0 : i32
    return %c0_i32, %c0_i32_0 : i32, i32
  }
  func.func @transform_17(%arg0: i32) -> (i32, i32, i32) {
    %c0_i32 = arith.constant 0 : i32
    %c0_i32_0 = arith.constant 0 : i32
    %c0_i32_1 = arith.constant 0 : i32
    return %arg0, %c0_i32, %c0_i32_0 : i32, i32, i32
  }
}

</mosaic_0001>

<llo_original>
// kernel: tile.8
$region0: #{tile.8}
  #allocation0 [shape = 's32[1]{0}', space=sflag, size = 0x4, scoped, tag = 'scoped memory for tile.8']
  %s0 = inlined_call_operand.vmem [shape: f32[32], index: 0, kind: input, shape index: {}]
  %s1 = inlined_call_operand.vmem [shape: f32[3,32], index: 1, kind: output, shape index: {}]
  // Predicated region
  $region2: #{tile.8} parent=0 // pred_check
    _
  $region3: #{tile.8} parent=0 // pred_check_branch
    %3 = sbr.rel (0) target = $region5
  $region4: #{tile.8} parent=0 // pred_region
    _
  $region5: #{tile.8} parent=0 // pred_fallthru
    _
  %v4 = vld [vmem:[%s0] ss:$0 sm:$0xff]
  %5 = vst [vmem:[%s1] sm:$0xf] %v4

// kernel: tile.9
$region0: #{tile.9}
  %s0 = inlined_call_operand.vmem [shape: f32[3,32], index: 0, kind: input, shape index: {}]
  %s1 = inlined_call_operand.vmem [shape: f32[1,96], index: 1, kind: output, shape index: {}]
  $region1: #{tile.9} parent=0
    #allocation0 [shape = 'u8[4096]{0}', space=vmem, size = 0x1000, scoped, tag = 'scoped mem for output reshape']
    #allocation1 [shape = 'u8[4096]{0}', space=vmem, size = 0x1000, scoped, tag = 'scoped mem for input reshape']
    %s3 = sshllo.u32 0, 4
    %v4 = vld [vmem:[%s0] sm:%s3]
    %5 = vst [vmem:[#allocation1] sm:%s3] %v4
    %v6 = vld [vmem:[#allocation1] sm:$0x1]
    %vm7 = vcmask 261120
    %8 = vst.msk [vmem:[#allocation0] sm:$0x1] %vm7, %v6
    %s9 = scalar_lea.vmem [#allocation1], 2
    %v10 = vld [vmem:[%s9] sm:$0x1]
    %11 = vrot.lane.b32.xlu0 %v10, 64
    %v12 = vpop.permute.xlu0 %11
    %vm13 = vcmask 785920
    %14 = vst.msk [vmem:[#allocation0] sm:$0x1] %vm13, %v12
    %s15 = scalar_lea.vmem [#allocation1], 1
    %v16 = vld [vmem:[%s15] sm:$0x1]
    %17 = vrot.lane.b32.xlu0 %v16, 32
    %v18 = vpop.permute.xlu0 %17
    %vm19 = vcmask 523520
    %20 = vst.msk [vmem:[#allocation0] sm:$0x1] %vm19, %v18
    %s22 = sshllo.u32 0, 1
    %v24 = vld [vmem:[#allocation0] sm:%s22]
    %s25 = sshllo.u32 0, 1
    %26 = vst [vmem:[%s1] sm:%s25] %v24

// kernel: encoder_forward.1
$region0: #{encoder_forward.1}
  #allocation0 [shape = 'u32[]', space=smem, size = 0x4, offset = 0x4, fixed_abs, tag = 'smem constant byte address 0x4 - core index']
  #allocation1 [shape = 'u32[144,128]{1,0:T(1,128)}', space=vmem, size = 0x12000, scoped, tag = 'internal scratch']
  #allocation2 [shape = 'f32[240,96]{1,0:T(8,128)}', space=vmem, size = 0x1e000, scoped, tag = 'scratch operand']
  #allocation3 [shape = 'f32[224,96]{1,0:T(8,128)}', space=vmem, size = 0x1c000, scoped, tag = 'scratch operand']
  #allocation4 [shape = 'f32[256,192]{1,0:T(8,128)}', space=vmem, size = 0x40000, scoped, tag = 'scratch operand']
  #allocation5 [shape = 'f32[88,192]{1,0:T(8,128)}', space=vmem, size = 0x16000, scoped, tag = 'scratch operand']
  %s0 = inlined_call_operand.vmem [shape: f32[2,240,16], index: 0, kind: input, shape index: {}]
  %s1 = inlined_call_operand.vmem [shape: f32[2,224,16], index: 1, kind: input, shape index: {}]
  %s2 = inlined_call_operand.vmem [shape: f32[16,96], index: 2, kind: input, shape index: {}]
  %s3 = inlined_call_operand.vmem [shape: f32[1,96], index: 3, kind: input, shape index: {}]
  %s4 = inlined_call_operand.vmem [shape: f32[240,96], index: 4, kind: input, shape index: {}]
  %s5 = inlined_call_operand.vmem [shape: f32[224,96], index: 5, kind: input, shape index: {}]
  %s6 = inlined_call_operand.vmem [shape: f32[3,96,64], index: 6, kind: input, shape index: {}]
  %s7 = inlined_call_operand.vmem [shape: f32[1,64], index: 7, kind: input, shape index: {}]
  %s8 = inlined_call_operand.vmem [shape: f32[224,1], index: 8, kind: input, shape index: {}]
  %s9 = inlined_call_operand.vmem [shape: f32[3,192,64], index: 9, kind: input, shape index: {}]
  %s10 = inlined_call_operand.vmem [shape: f32[1,64], index: 10, kind: input, shape index: {}]
  %s11 = inlined_call_operand.vmem [shape: f32[64,224], index: 11, kind: input, shape index: {}]
  %s12 = inlined_call_operand.vmem [shape: f32[3,192,64], index: 12, kind: input, shape index: {}]
  %s13 = inlined_call_operand.vmem [shape: f32[1,64], index: 13, kind: input, shape index: {}]
  %s14 = inlined_call_operand.vmem [shape: f32[2,64,64], index: 14, kind: input, shape index: {}]
  %s15 = inlined_call_operand.vmem [shape: f32[1,2], index: 15, kind: input, shape index: {}]
  %s16 = inlined_call_operand.vmem [shape: f32[2,2], index: 16, kind: input, shape index: {}]
  %s17 = inlined_call_operand.vmem [shape: f32[2,8,2], index: 17, kind: output, shape index: {}]
  %s18 = sld [smem:[#allocation0]]
  $region101: #{encoder_forward.1} parent=0
    _
  %s20 = ssub.s32 1, %s18
  %s21 = scalar_select 0, %s20, %s18
  loop: start=0, step=1, limit=4
  $region2: #{encoder_forward.1} parent=0 // loop_pre_header
    _
  $region3: #{encoder_forward.1} parent=0 // loop_header
    %s23 = sphi 0, %s27
    %p24 = scmp.ge.s32.totalorder %s23, 4
    %s33 = sphi 0, %s35
    %s36 = sphi 0, %s33
    %s37 = sphi 0, %s36
    %s53 = sphi 0, %s37
    %s59 = sphi 0, %s61
    %s62 = sphi 0, %s59
    %s63 = sphi 0, %s62
    %s79 = sphi 0, %s63
    %s83 = sphi 0, %s83
    %s85 = sphi 0, %s83
    %s86 = sphi 0, %s85
    %s100 = sphi 0, %s86
    %s104 = sphi 0, %s104
    %s106 = sphi 0, %s104
    %s107 = sphi 0, %s106
    %s121 = sphi 0, %s107
    %s125 = sphi 0, %s125
    %s127 = sphi 0, %s125
    %s128 = sphi 0, %s127
    %s142 = sphi 0, %s128
    %s146 = sphi 0, %s146
    %s148 = sphi 0, %s146
    %s149 = sphi 0, %s148
    %s163 = sphi 0, %s149
    %s167 = sphi 0, %s167
    %s169 = sphi 0, %s167
    %s170 = sphi 0, %s169
    %s184 = sphi 0, %s170
    %s188 = sphi 0, %s188
    %s190 = sphi 0, %s188
    %s191 = sphi 0, %s190
    %s205 = sphi 0, %s191
    %s209 = sphi 0, %s209
    %s211 = sphi 0, %s209
    %s212 = sphi 0, %s211
    %s226 = sphi 0, %s212
    %s230 = sphi 0, %s230
    %s232 = sphi 0, %s230
    %s233 = sphi 0, %s232
    %s247 = sphi 0, %s233
    %s251 = sphi 0, %s251
    %s253 = sphi 0, %s251
    %s254 = sphi 0, %s253
    %s268 = sphi 0, %s254
    %s272 = sphi 0, %s272
    %s274 = sphi 0, %s272
    %s275 = sphi 0, %s274
    %s289 = sphi 0, %s275
    %s293 = sphi 0, %s293
    %s295 = sphi 0, %s293
    %s296 = sphi 0, %s295
    %s310 = sphi 0, %s296
    %s314 = sphi 0, %s314
    %s316 = sphi 0, %s314
    %s317 = sphi 0, %s316
    %s331 = sphi 0, %s317
    %s335 = sphi 0, %s335
    %s337 = sphi 0, %s335
    %s338 = sphi 0, %s337
    %s352 = sphi 0, %s338
    %s356 = sphi 0, %s356
    %s358 = sphi 0, %s356
    %s359 = sphi 0, %s358
    %s373 = sphi 0, %s359
    %s377 = sphi 0, %s377
    %s379 = sphi 0, %s377
    %s380 = sphi 0, %s379
    %s394 = sphi 0, %s380
    %s400 = sphi 0, %s402
    %s403 = sphi 0, %s400
    %s404 = sphi 0, %s403
    %s420 = sphi 0, %s404
  $region4: #{encoder_forward.1} parent=0 // loop_header_branch
    %26 = sbr.rel (%p24) target = $region8
  $region5: #{encoder_forward.1} parent=0 // loop_body
    %s28 = ssub.s32 %s23, 1
    %s29 = ssub.s32 %s23, 2
    %s30 = sadd.s32 %s23, 1
    %s31 = ssub.s32 %s23, %s30
    %p32 = scmp.eq.s32.totalorder %s31, 0
    %s34 = sadd.s32 %s33, 1
    %s35 = scalar_select %p32, %s33, %s34
    %p38 = pneg %p32
    %p39 = scmp.eq.s32.totalorder %s23, 1
    %p40 = por %p38, %p39
    %p41 = scmp.ne.s32.totalorder %s33, %s36
    %p42 = scmp.eq.s32.totalorder %s23, 0
    %p43 = por %p41, %p42
    %p44 = scmp.ne.s32.totalorder %s33, %s36
    %p45 = scmp.eq.s32.totalorder %s28, 1
    %p46 = por %p44, %p45
    %p47 = scmp.ne.s32.totalorder %s36, %s37
    %p48 = scmp.eq.s32.totalorder %s28, 0
    %p49 = por %p47, %p48
    %p50 = scmp.ne.s32.totalorder %s36, %s37
    %p51 = scmp.eq.s32.totalorder %s29, 1
    %p52 = por %p50, %p51
    %p54 = scmp.ne.s32.totalorder %s37, %s53
    %p55 = scmp.eq.s32.totalorder %s29, 0
    %p56 = por %p54, %p55
    %s57 = ssub.s32 %s23, %s30
    %p58 = scmp.eq.s32.totalorder %s57, 0
    %s60 = sadd.s32 %s59, 1
    %s61 = scalar_select %p58, %s59, %s60
    %p64 = pneg %p58
    %p65 = scmp.eq.s32.totalorder %s23, 1
    %p66 = por %p64, %p65
    %p67 = scmp.ne.s32.totalorder %s59, %s62
    %p68 = scmp.eq.s32.totalorder %s23, 0
    %p69 = por %p67, %p68
    %p70 = scmp.ne.s32.totalorder %s59, %s62
    %p71 = scmp.eq.s32.totalorder %s28, 1
    %p72 = por %p70, %p71
    %p73 = scmp.ne.s32.totalorder %s62, %s63
    %p74 = scmp.eq.s32.totalorder %s28, 0
    %p75 = por %p73, %p74
    %p76 = scmp.ne.s32.totalorder %s62, %s63
    %p77 = scmp.eq.s32.totalorder %s29, 1
    %p78 = por %p76, %p77
    %p80 = scmp.ne.s32.totalorder %s63, %s79
    %p81 = scmp.eq.s32.totalorder %s29, 0
    %p82 = por %p80, %p81
    %s84 = sadd.s32 %s83, 1
    %p87 = scmp.eq.s32.totalorder %s23, 1
    %p88 = scmp.ne.s32.totalorder %s83, %s85
    %p89 = scmp.eq.s32.totalorder %s23, 0
    %p90 = por %p88, %p89
    %p91 = scmp.ne.s32.totalorder %s83, %s85
    %p92 = scmp.eq.s32.totalorder %s28, 1
    %p93 = por %p91, %p92
    %p94 = scmp.ne.s32.totalorder %s85, %s86
    %p95 = scmp.eq.s32.totalorder %s28, 0
    %p96 = por %p94, %p95
    %p97 = scmp.ne.s32.totalorder %s85, %s86
    %p98 = scmp.eq.s32.totalorder %s29, 1
    %p99 = por %p97, %p98
    %p101 = scmp.ne.s32.totalorder %s86, %s100
    %p102 = scmp.eq.s32.totalorder %s29, 0
    %p103 = por %p101, %p102
    %s105 = sadd.s32 %s104, 1
    %p108 = scmp.eq.s32.totalorder %s23, 1
    %p109 = scmp.ne.s32.totalorder %s104, %s106
    %p110 = scmp.eq.s32.totalorder %s23, 0
    %p111 = por %p109, %p110
    %p112 = scmp.ne.s32.totalorder %s104, %s106
    %p113 = scmp.eq.s32.totalorder %s28, 1
    %p114 = por %p112, %p113
    %p115 = scmp.ne.s32.totalorder %s106, %s107
    %p116 = scmp.eq.s32.totalorder %s28, 0
    %p117 = por %p115, %p116
    %p118 = scmp.ne.s32.totalorder %s106, %s107
    %p119 = scmp.eq.s32.totalorder %s29, 1
    %p120 = por %p118, %p119
    %p122 = scmp.ne.s32.totalorder %s107, %s121
    %p123 = scmp.eq.s32.totalorder %s29, 0
    %p124 = por %p122, %p123
    %s126 = sadd.s32 %s125, 1
    %p129 = scmp.eq.s32.totalorder %s23, 1
    %p130 = scmp.ne.s32.totalorder %s125, %s127
    %p131 = scmp.eq.s32.totalorder %s23, 0
    %p132 = por %p130, %p131
    %p133 = scmp.ne.s32.totalorder %s125, %s127
    %p134 = scmp.eq.s32.totalorder %s28, 1
    %p135 = por %p133, %p134
    %p136 = scmp.ne.s32.totalorder %s127, %s128
    %p137 = scmp.eq.s32.totalorder %s28, 0
    %p138 = por %p136, %p137
    %p139 = scmp.ne.s32.totalorder %s127, %s128
    %p140 = scmp.eq.s32.totalorder %s29, 1
    %p141 = por %p139, %p140
    %p143 = scmp.ne.s32.totalorder %s128, %s142
    %p144 = scmp.eq.s32.totalorder %s29, 0
    %p145 = por %p143, %p144
    %s147 = sadd.s32 %s146, 1
    %p150 = scmp.eq.s32.totalorder %s23, 1
    %p151 = scmp.ne.s32.totalorder %s146, %s148
    %p152 = scmp.eq.s32.totalorder %s23, 0
    %p153 = por %p151, %p152
    %p154 = scmp.ne.s32.totalorder %s146, %s148
    %p155 = scmp.eq.s32.totalorder %s28, 1
    %p156 = por %p154, %p155
    %p157 = scmp.ne.s32.totalorder %s148, %s149
    %p158 = scmp.eq.s32.totalorder %s28, 0
    %p159 = por %p157, %p158
    %p160 = scmp.ne.s32.totalorder %s148, %s149
    %p161 = scmp.eq.s32.totalorder %s29, 1
    %p162 = por %p160, %p161
    %p164 = scmp.ne.s32.totalorder %s149, %s163
    %p165 = scmp.eq.s32.totalorder %s29, 0
    %p166 = por %p164, %p165
    %s168 = sadd.s32 %s167, 1
    %p171 = scmp.eq.s32.totalorder %s23, 1
    %p172 = scmp.ne.s32.totalorder %s167, %s169
    %p173 = scmp.eq.s32.totalorder %s23, 0
    %p174 = por %p172, %p173
    %p175 = scmp.ne.s32.totalorder %s167, %s169
    %p176 = scmp.eq.s32.totalorder %s28, 1
    %p177 = por %p175, %p176
    %p178 = scmp.ne.s32.totalorder %s169, %s170
    %p179 = scmp.eq.s32.totalorder %s28, 0
    %p180 = por %p178, %p179
    %p181 = scmp.ne.s32.totalorder %s169, %s170
    %p182 = scmp.eq.s32.totalorder %s29, 1
    %p183 = por %p181, %p182
    %p185 = scmp.ne.s32.totalorder %s170, %s184
    %p186 = scmp.eq.s32.totalorder %s29, 0
    %p187 = por %p185, %p186
    %s189 = sadd.s32 %s188, 1
    %p192 = scmp.eq.s32.totalorder %s23, 1
    %p193 = scmp.ne.s32.totalorder %s188, %s190
    %p194 = scmp.eq.s32.totalorder %s23, 0
    %p195 = por %p193, %p194
    %p196 = scmp.ne.s32.totalorder %s188, %s190
    %p197 = scmp.eq.s32.totalorder %s28, 1
    %p198 = por %p196, %p197
    %p199 = scmp.ne.s32.totalorder %s190, %s191
    %p200 = scmp.eq.s32.totalorder %s28, 0
    %p201 = por %p199, %p200
    %p202 = scmp.ne.s32.totalorder %s190, %s191
    %p203 = scmp.eq.s32.totalorder %s29, 1
    %p204 = por %p202, %p203
    %p206 = scmp.ne.s32.totalorder %s191, %s205
    %p207 = scmp.eq.s32.totalorder %s29, 0
    %p208 = por %p206, %p207
    %s210 = sadd.s32 %s209, 1
    %p213 = scmp.eq.s32.totalorder %s23, 1
    %p214 = scmp.ne.s32.totalorder %s209, %s211
    %p215 = scmp.eq.s32.totalorder %s23, 0
    %p216 = por %p214, %p215
    %p217 = scmp.ne.s32.totalorder %s209, %s211
    %p218 = scmp.eq.s32.totalorder %s28, 1
    %p219 = por %p217, %p218
    %p220 = scmp.ne.s32.totalorder %s211, %s212
    %p221 = scmp.eq.s32.totalorder %s28, 0
    %p222 = por %p220, %p221
    %p223 = scmp.ne.s32.totalorder %s211, %s212
    %p224 = scmp.eq.s32.totalorder %s29, 1
    %p225 = por %p223, %p224
    %p227 = scmp.ne.s32.totalorder %s212, %s226
    %p228 = scmp.eq.s32.totalorder %s29, 0
    %p229 = por %p227, %p228
    %s231 = sadd.s32 %s230, 1
    %p234 = scmp.eq.s32.totalorder %s23, 1
    %p235 = scmp.ne.s32.totalorder %s230, %s232
    %p236 = scmp.eq.s32.totalorder %s23, 0
    %p237 = por %p235, %p236
    %p238 = scmp.ne.s32.totalorder %s230, %s232
    %p239 = scmp.eq.s32.totalorder %s28, 1
    %p240 = por %p238, %p239
    %p241 = scmp.ne.s32.totalorder %s232, %s233
    %p242 = scmp.eq.s32.totalorder %s28, 0
    %p243 = por %p241, %p242
    %p244 = scmp.ne.s32.totalorder %s232, %s233
    %p245 = scmp.eq.s32.totalorder %s29, 1
    %p246 = por %p244, %p245
    %p248 = scmp.ne.s32.totalorder %s233, %s247
    %p249 = scmp.eq.s32.totalorder %s29, 0
    %p250 = por %p248, %p249
    %s252 = sadd.s32 %s251, 1
    %p255 = scmp.eq.s32.totalorder %s23, 1
    %p256 = scmp.ne.s32.totalorder %s251, %s253
    %p257 = scmp.eq.s32.totalorder %s23, 0
    %p258 = por %p256, %p257
    %p259 = scmp.ne.s32.totalorder %s251, %s253
    %p260 = scmp.eq.s32.totalorder %s28, 1
    %p261 = por %p259, %p260
    %p262 = scmp.ne.s32.totalorder %s253, %s254
    %p263 = scmp.eq.s32.totalorder %s28, 0
    %p264 = por %p262, %p263
    %p265 = scmp.ne.s32.totalorder %s253, %s254
    %p266 = scmp.eq.s32.totalorder %s29, 1
    %p267 = por %p265, %p266
    %p269 = scmp.ne.s32.totalorder %s254, %s268
    %p270 = scmp.eq.s32.totalorder %s29, 0
    %p271 = por %p269, %p270
    %s273 = sadd.s32 %s272, 1
    %p276 = scmp.eq.s32.totalorder %s23, 1
    %p277 = scmp.ne.s32.totalorder %s272, %s274
    %p278 = scmp.eq.s32.totalorder %s23, 0
    %p279 = por %p277, %p278
    %p280 = scmp.ne.s32.totalorder %s272, %s274
    %p281 = scmp.eq.s32.totalorder %s28, 1
    %p282 = por %p280, %p281
    %p283 = scmp.ne.s32.totalorder %s274, %s275
    %p284 = scmp.eq.s32.totalorder %s28, 0
    %p285 = por %p283, %p284
    %p286 = scmp.ne.s32.totalorder %s274, %s275
    %p287 = scmp.eq.s32.totalorder %s29, 1
    %p288 = por %p286, %p287
    %p290 = scmp.ne.s32.totalorder %s275, %s289
    %p291 = scmp.eq.s32.totalorder %s29, 0
    %p292 = por %p290, %p291
    %s294 = sadd.s32 %s293, 1
    %p297 = scmp.eq.s32.totalorder %s23, 1
    %p298 = scmp.ne.s32.totalorder %s293, %s295
    %p299 = scmp.eq.s32.totalorder %s23, 0
    %p300 = por %p298, %p299
    %p301 = scmp.ne.s32.totalorder %s293, %s295
    %p302 = scmp.eq.s32.totalorder %s28, 1
    %p303 = por %p301, %p302
    %p304 = scmp.ne.s32.totalorder %s295, %s296
    %p305 = scmp.eq.s32.totalorder %s28, 0
    %p306 = por %p304, %p305
    %p307 = scmp.ne.s32.totalorder %s295, %s296
    %p308 = scmp.eq.s32.totalorder %s29, 1
    %p309 = por %p307, %p308
    %p311 = scmp.ne.s32.totalorder %s296, %s310
    %p312 = scmp.eq.s32.totalorder %s29, 0
    %p313 = por %p311, %p312
    %s315 = sadd.s32 %s314, 1
    %p318 = scmp.eq.s32.totalorder %s23, 1
    %p319 = scmp.ne.s32.totalorder %s314, %s316
    %p320 = scmp.eq.s32.totalorder %s23, 0
    %p321 = por %p319, %p320
    %p322 = scmp.ne.s32.totalorder %s314, %s316
    %p323 = scmp.eq.s32.totalorder %s28, 1
    %p324 = por %p322, %p323
    %p325 = scmp.ne.s32.totalorder %s316, %s317
    %p326 = scmp.eq.s32.totalorder %s28, 0
    %p327 = por %p325, %p326
    %p328 = scmp.ne.s32.totalorder %s316, %s317
    %p329 = scmp.eq.s32.totalorder %s29, 1
    %p330 = por %p328, %p329
    %p332 = scmp.ne.s32.totalorder %s317, %s331
    %p333 = scmp.eq.s32.totalorder %s29, 0
    %p334 = por %p332, %p333
    %s336 = sadd.s32 %s335, 1
    %p339 = scmp.eq.s32.totalorder %s23, 1
    %p340 = scmp.ne.s32.totalorder %s335, %s337
    %p341 = scmp.eq.s32.totalorder %s23, 0
    %p342 = por %p340, %p341
    %p343 = scmp.ne.s32.totalorder %s335, %s337
    %p344 = scmp.eq.s32.totalorder %s28, 1
    %p345 = por %p343, %p344
    %p346 = scmp.ne.s32.totalorder %s337, %s338
    %p347 = scmp.eq.s32.totalorder %s28, 0
    %p348 = por %p346, %p347
    %p349 = scmp.ne.s32.totalorder %s337, %s338
    %p350 = scmp.eq.s32.totalorder %s29, 1
    %p351 = por %p349, %p350
    %p353 = scmp.ne.s32.totalorder %s338, %s352
    %p354 = scmp.eq.s32.totalorder %s29, 0
    %p355 = por %p353, %p354
    %s357 = sadd.s32 %s356, 1
    %p360 = scmp.eq.s32.totalorder %s23, 1
    %p361 = scmp.ne.s32.totalorder %s356, %s358
    %p362 = scmp.eq.s32.totalorder %s23, 0
    %p363 = por %p361, %p362
    %p364 = scmp.ne.s32.totalorder %s356, %s358
    %p365 = scmp.eq.s32.totalorder %s28, 1
    %p366 = por %p364, %p365
    %p367 = scmp.ne.s32.totalorder %s358, %s359
    %p368 = scmp.eq.s32.totalorder %s28, 0
    %p369 = por %p367, %p368
    %p370 = scmp.ne.s32.totalorder %s358, %s359
    %p371 = scmp.eq.s32.totalorder %s29, 1
    %p372 = por %p370, %p371
    %p374 = scmp.ne.s32.totalorder %s359, %s373
    %p375 = scmp.eq.s32.totalorder %s29, 0
    %p376 = por %p374, %p375
    %s378 = sadd.s32 %s377, 1
    %p381 = scmp.eq.s32.totalorder %s23, 1
    %p382 = scmp.ne.s32.totalorder %s377, %s379
    %p383 = scmp.eq.s32.totalorder %s23, 0
    %p384 = por %p382, %p383
    %p385 = scmp.ne.s32.totalorder %s377, %s379
    %p386 = scmp.eq.s32.totalorder %s28, 1
    %p387 = por %p385, %p386
    %p388 = scmp.ne.s32.totalorder %s379, %s380
    %p389 = scmp.eq.s32.totalorder %s28, 0
    %p390 = por %p388, %p389
    %p391 = scmp.ne.s32.totalorder %s379, %s380
    %p392 = scmp.eq.s32.totalorder %s29, 1
    %p393 = por %p391, %p392
    %p395 = scmp.ne.s32.totalorder %s380, %s394
    %p396 = scmp.eq.s32.totalorder %s29, 0
    %p397 = por %p395, %p396
    %s398 = ssub.s32 %s23, %s30
    %p399 = scmp.eq.s32.totalorder %s398, 0
    %s401 = sadd.s32 %s400, 1
    %s402 = scalar_select %p399, %s400, %s401
    %p405 = pneg %p399
    %p406 = scmp.eq.s32.totalorder %s23, 1
    %p407 = por %p405, %p406
    %p408 = scmp.ne.s32.totalorder %s400, %s403
    %p409 = scmp.eq.s32.totalorder %s23, 0
    %p410 = por %p408, %p409
    %p411 = scmp.ne.s32.totalorder %s400, %s403
    %p412 = scmp.eq.s32.totalorder %s28, 1
    %p413 = por %p411, %p412
    %p414 = scmp.ne.s32.totalorder %s403, %s404
    %p415 = scmp.eq.s32.totalorder %s28, 0
    %p416 = por %p414, %p415
    %p417 = scmp.ne.s32.totalorder %s403, %s404
    %p418 = scmp.eq.s32.totalorder %s29, 1
    %p419 = por %p417, %p418
    %p421 = scmp.ne.s32.totalorder %s404, %s420
    %p422 = scmp.eq.s32.totalorder %s29, 0
    %p423 = por %p421, %p422
    %p424 = scmp.le.s32.totalorder 1, %s23
    %p425 = scmp.lt.s32.totalorder %s23, 3
    %p426 = pnand %p424, %p425
    %p427 = pneg %p426
    // Predicated region
    $region9: #{encoder_forward.1} parent=5 // pred_check
      _
    $region10: #{encoder_forward.1} parent=5 // pred_check_branch
      %429 = sbr.rel (%p426) target = $region12
    $region11: #{encoder_forward.1} parent=5 // pred_region
      %s430 = ssub.s32 %s23, 1
      // Predicated region
      $region13: #{encoder_forward.1} parent=11 // pred_check
        %p431 = pneg %p96
      $region14: #{encoder_forward.1} parent=11 // pred_check_branch
        %433 = sbr.rel (%p431) target = $region16
      $region15: #{encoder_forward.1} parent=11 // pred_region
        _
      $region16: #{encoder_forward.1} parent=11 // pred_fallthru
        _
      // Predicated region
      $region17: #{encoder_forward.1} parent=11 // pred_check
        %p434 = pneg %p117
      $region18: #{encoder_forward.1} parent=11 // pred_check_branch
        %436 = sbr.rel (%p434) target = $region20
      $region19: #{encoder_forward.1} parent=11 // pred_region
        _
      $region20: #{encoder_forward.1} parent=11 // pred_fallthru
        _
      // Predicated region
      $region21: #{encoder_forward.1} parent=11 // pred_check
        %p437 = pneg %p138
      $region22: #{encoder_forward.1} parent=11 // pred_check_branch
        %439 = sbr.rel (%p437) target = $region24
      $region23: #{encoder_forward.1} parent=11 // pred_region
        _
      $region24: #{encoder_forward.1} parent=11 // pred_fallthru
        _
      // Predicated region
      $region25: #{encoder_forward.1} parent=11 // pred_check
        %p440 = pneg %p159
      $region26: #{encoder_forward.1} parent=11 // pred_check_branch
        %442 = sbr.rel (%p440) target = $region28
      $region27: #{encoder_forward.1} parent=11 // pred_region
        _
      $region28: #{encoder_forward.1} parent=11 // pred_fallthru
        _
      // Predicated region
      $region29: #{encoder_forward.1} parent=11 // pred_check
        %p443 = pneg %p180
      $region30: #{encoder_forward.1} parent=11 // pred_check_branch
        %445 = sbr.rel (%p443) target = $region32
      $region31: #{encoder_forward.1} parent=11 // pred_region
        _
      $region32: #{encoder_forward.1} parent=11 // pred_fallthru
        _
      // Predicated region
      $region33: #{encoder_forward.1} parent=11 // pred_check
        %p446 = pneg %p201
      $region34: #{encoder_forward.1} parent=11 // pred_check_branch
        %448 = sbr.rel (%p446) target = $region36
      $region35: #{encoder_forward.1} parent=11 // pred_region
        _
      $region36: #{encoder_forward.1} parent=11 // pred_fallthru
        _
      // Predicated region
      $region37: #{encoder_forward.1} parent=11 // pred_check
        %p449 = pneg %p222
      $region38: #{encoder_forward.1} parent=11 // pred_check_branch
        %451 = sbr.rel (%p449) target = $region40
      $region39: #{encoder_forward.1} parent=11 // pred_region
        _
      $region40: #{encoder_forward.1} parent=11 // pred_fallthru
        _
      // Predicated region
      $region41: #{encoder_forward.1} parent=11 // pred_check
        %p452 = pneg %p243
      $region42: #{encoder_forward.1} parent=11 // pred_check_branch
        %454 = sbr.rel (%p452) target = $region44
      $region43: #{encoder_forward.1} parent=11 // pred_region
        _
      $region44: #{encoder_forward.1} parent=11 // pred_fallthru
        _
      // Predicated region
      $region45: #{encoder_forward.1} parent=11 // pred_check
        %p455 = pneg %p264
      $region46: #{encoder_forward.1} parent=11 // pred_check_branch
        %457 = sbr.rel (%p455) target = $region48
      $region47: #{encoder_forward.1} parent=11 // pred_region
        _
      $region48: #{encoder_forward.1} parent=11 // pred_fallthru
        _
      // Predicated region
      $region49: #{encoder_forward.1} parent=11 // pred_check
        %p458 = pneg %p285
      $region50: #{encoder_forward.1} parent=11 // pred_check_branch
        %460 = sbr.rel (%p458) target = $region52
      $region51: #{encoder_forward.1} parent=11 // pred_region
        _
      $region52: #{encoder_forward.1} parent=11 // pred_fallthru
        _
      // Predicated region
      $region53: #{encoder_forward.1} parent=11 // pred_check
        %p461 = pneg %p306
      $region54: #{encoder_forward.1} parent=11 // pred_check_branch
        %463 = sbr.rel (%p461) target = $region56
      $region55: #{encoder_forward.1} parent=11 // pred_region
        _
      $region56: #{encoder_forward.1} parent=11 // pred_fallthru
        _
      // Predicated region
      $region57: #{encoder_forward.1} parent=11 // pred_check
        %p464 = pneg %p327
      $region58: #{encoder_forward.1} parent=11 // pred_check_branch
        %466 = sbr.rel (%p464) target = $region60
      $region59: #{encoder_forward.1} parent=11 // pred_region
        _
      $region60: #{encoder_forward.1} parent=11 // pred_fallthru
        _
      // Predicated region
      $region61: #{encoder_forward.1} parent=11 // pred_check
        %p467 = pneg %p348
      $region62: #{encoder_forward.1} parent=11 // pred_check_branch
        %469 = sbr.rel (%p467) target = $region64
      $region63: #{encoder_forward.1} parent=11 // pred_region
        _
      $region64: #{encoder_forward.1} parent=11 // pred_fallthru
        _
      // Predicated region
      $region65: #{encoder_forward.1} parent=11 // pred_check
        %p470 = pneg %p369
      $region66: #{encoder_forward.1} parent=11 // pred_check_branch
        %472 = sbr.rel (%p470) target = $region68
      $region67: #{encoder_forward.1} parent=11 // pred_region
        _
      $region68: #{encoder_forward.1} parent=11 // pred_fallthru
        _
      // Predicated region
      $region69: #{encoder_forward.1} parent=11 // pred_check
        %p473 = pneg %p390
      $region70: #{encoder_forward.1} parent=11 // pred_check_branch
        %475 = sbr.rel (%p473) target = $region72
      $region71: #{encoder_forward.1} parent=11 // pred_region
        _
      $region72: #{encoder_forward.1} parent=11 // pred_fallthru
        _
    $region12: #{encoder_forward.1} parent=5 // pred_fallthru
      _
    %p476 = scmp.lt.s32.totalorder %s23, 2
    // Predicated region
    $region73: #{encoder_forward.1} parent=5 // pred_check
      %p477 = pneg %p476
    $region74: #{encoder_forward.1} parent=5 // pred_check_branch
      %479 = sbr.rel (%p477) target = $region76
    $region75: #{encoder_forward.1} parent=5 // pred_region
      // Predicated region
      $region77: #{encoder_forward.1} parent=75 // pred_check
        %p480 = pneg %p43
      $region78: #{encoder_forward.1} parent=75 // pred_check_branch
        %482 = sbr.rel (%p480) target = $region80
      $region79: #{encoder_forward.1} parent=75 // pred_region
        %p483 = scmp.lt.s32.totalorder %s23, 1
        %s484 = scalar_select %p483, %s23, 1
        %s485 = smul.addr %s484, 30
        %s486 = smul.addr %s485, 8
        %s487 = scalar_lea.vmem %s0, %s486
      $region80: #{encoder_forward.1} parent=75 // pred_fallthru
        _
      // Predicated region
      $region81: #{encoder_forward.1} parent=75 // pred_check
        %p488 = pneg %p69
      $region82: #{encoder_forward.1} parent=75 // pred_check_branch
        %490 = sbr.rel (%p488) target = $region84
      $region83: #{encoder_forward.1} parent=75 // pred_region
        %p491 = scmp.lt.s32.totalorder %s23, 1
        %s492 = scalar_select %p491, %s23, 1
        %s493 = smul.addr %s492, 28
        %s494 = smul.addr %s493, 8
        %s495 = scalar_lea.vmem %s1, %s494
      $region84: #{encoder_forward.1} parent=75 // pred_fallthru
        _
    $region76: #{encoder_forward.1} parent=5 // pred_fallthru
      _
    %p496 = scmp.le.s32.totalorder 1, %s23
    %p497 = scmp.lt.s32.totalorder %s23, 3
    %p498 = pnand %p496, %p497
    %p499 = pneg %p498
    // Predicated region
    $region85: #{encoder_forward.1} parent=5 // pred_check
      _
    $region86: #{encoder_forward.1} parent=5 // pred_check_branch
      %501 = sbr.rel (%p498) target = $region88
    $region87: #{encoder_forward.1} parent=5 // pred_region
      %s502 = ssub.s32 %s23, 1
      %p503 = scmp.lt.s32.totalorder %s28, 1
      %s504 = scalar_select %p503, %s28, 1
      %s505 = smul.addr %s504, 30
      %s506 = smul.addr %s505, 8
      %s507 = scalar_lea.vmem %s0, %s506
      %p508 = pneg %p49
      %p509 = pneg %p46
      %p510 = scmp.lt.s32.totalorder %s28, 1
      %s511 = scalar_select %p510, %s28, 1
      %s512 = smul.addr %s511, 28
      %s513 = smul.addr %s512, 8
      %s514 = scalar_lea.vmem %s1, %s513
      %p515 = pneg %p75
      %p516 = pneg %p72
      %p517 = pneg %p96
      %p518 = pneg %p93
      %p519 = pneg %p117
      %p520 = pneg %p114
      %p521 = pneg %p138
      %p522 = pneg %p135
      %p523 = pneg %p159
      %p524 = pneg %p156
      %p525 = pneg %p180
      %p526 = pneg %p177
      %p527 = pneg %p201
      %p528 = pneg %p198
      %p529 = pneg %p222
      %p530 = pneg %p219
      %p531 = pneg %p243
      %p532 = pneg %p240
      %p533 = pneg %p264
      %p534 = pneg %p261
      %p535 = pneg %p285
      %p536 = pneg %p282
      %p537 = pneg %p306
      %p538 = pneg %p303
      %p539 = pneg %p327
      %p540 = pneg %p324
      %p541 = pneg %p348
      %p542 = pneg %p345
      %p543 = pneg %p369
      %p544 = pneg %p366
      %p545 = pneg %p390
      %p546 = pneg %p387
      %p547 = pneg %p416
      %p548 = pneg %p413
      %p549 = scmp.lt.s32.totalorder %s28, 1
      %s550 = scalar_select %p549, %s28, 1
      %s551 = smul.addr %s550, 8
      %s552 = scalar_lea.vmem %s17, %s551
      %p553 = scmp.lt.s32.totalorder %s28, 1
      %s554 = scalar_select %p553, %s28, 1
      %s555 = smul.addr %s554, 30
      %s556 = smul.addr %s555, 8
      %s557 = scalar_lea.vmem %s0, %s556
      %p558 = scmp.lt.s32.totalorder %s28, 1
      %s559 = scalar_select %p558, %s28, 1
      %s560 = smul.addr %s559, 28
      %s561 = smul.addr %s560, 8
      %s562 = scalar_lea.vmem %s1, %s561
      %p563 = scmp.lt.s32.totalorder %s28, 1
      %s564 = scalar_select %p563, %s28, 1
      %s565 = smul.addr %s564, 8
      %s566 = scalar_lea.vmem %s17, %s565
      %v567 = vld [vmem:[%s557] sm:$0xff]
      %v568 = vld [vmem:[%s557 + $0x8] sm:$0xff]
      %v569 = vld [vmem:[%s557 + $0x10] sm:$0xff]
      %v570 = vld [vmem:[%s557 + $0x18] sm:$0xff]
      %v571 = vld [vmem:[%s557 + $0x20] sm:$0xff]
      %v572 = vld [vmem:[%s557 + $0x28] sm:$0xff]
      %v573 = vld [vmem:[%s557 + $0x30] sm:$0xff]
      %v574 = vld [vmem:[%s557 + $0x38] sm:$0xff]
      %v575 = vld [vmem:[%s557 + $0x40] sm:$0xff]
      %v576 = vld [vmem:[%s557 + $0x48] sm:$0xff]
      %v577 = vld [vmem:[%s557 + $0x50] sm:$0xff]
      %v578 = vld [vmem:[%s557 + $0x58] sm:$0xff]
      %v579 = vld [vmem:[%s557 + $0x60] sm:$0xff]
      %v580 = vld [vmem:[%s557 + $0x68] sm:$0xff]
      %v581 = vld [vmem:[%s557 + $0x70] sm:$0xff]
      %v582 = vld [vmem:[%s557 + $0x78] sm:$0xff]
      %v583 = vld [vmem:[%s557 + $0x80] sm:$0xff]
      %v584 = vld [vmem:[%s557 + $0x88] sm:$0xff]
      %v585 = vld [vmem:[%s557 + $0x90] sm:$0xff]
      %v586 = vld [vmem:[%s557 + $0x98] sm:$0xff]
      %v587 = vld [vmem:[%s557 + $0xa0] sm:$0xff]
      %v588 = vld [vmem:[%s557 + $0xa8] sm:$0xff]
      %v589 = vld [vmem:[%s557 + $0xb0] sm:$0xff]
      %v590 = vld [vmem:[%s557 + $0xb8] sm:$0xff]
      %v591 = vld [vmem:[%s557 + $0xc0] sm:$0xff]
      %v592 = vld [vmem:[%s557 + $0xc8] sm:$0xff]
      %v593 = vld [vmem:[%s557 + $0xd0] sm:$0xff]
      %v594 = vld [vmem:[%s557 + $0xd8] sm:$0xff]
      %v595 = vld [vmem:[%s557 + $0xe0] sm:$0xff]
      %v596 = vld [vmem:[%s557 + $0xe8] sm:$0xff]
      %v597 = vld [vmem:[%s2] sm:$0xff]
      %v598 = vld [vmem:[%s2 + $0x8] sm:$0xff]
      %v599 = vld [vmem:[%s3] sm:$0x1]
      %v601 = vlaneseq
      %v602 = vshrl.u32 %v601, 7
      %v603 = vsub.s32 0, %v602
      %v604 = vrot.slane %v599, %v603
      %vm606 = vcmask 130048
      %v608 = vsel %vm606, %v567, 0
      %v611 = vsel %vm606, %v568, 0
      %v614 = vsel %vm606, %v569, 0
      %v617 = vsel %vm606, %v570, 0
      %v620 = vsel %vm606, %v571, 0
      %v623 = vsel %vm606, %v572, 0
      %v626 = vsel %vm606, %v573, 0
      %v629 = vsel %vm606, %v574, 0
      %v632 = vsel %vm606, %v575, 0
      %v635 = vsel %vm606, %v576, 0
      %v638 = vsel %vm606, %v577, 0
      %v641 = vsel %vm606, %v578, 0
      %v644 = vsel %vm606, %v579, 0
      %v647 = vsel %vm606, %v580, 0
      %v650 = vsel %vm606, %v581, 0
      %v653 = vsel %vm606, %v582, 0
      %v656 = vsel %vm606, %v583, 0
      %v659 = vsel %vm606, %v584, 0
      %v662 = vsel %vm606, %v585, 0
      %v665 = vsel %vm606, %v586, 0
      %v668 = vsel %vm606, %v587, 0
      %v671 = vsel %vm606, %v588, 0
      %v674 = vsel %vm606, %v589, 0
      %v677 = vsel %vm606, %v590, 0
      %v680 = vsel %vm606, %v591, 0
      %v683 = vsel %vm606, %v592, 0
      %v686 = vsel %vm606, %v593, 0
      %v689 = vsel %vm606, %v594, 0
      %v692 = vsel %vm606, %v595, 0
      %v695 = vsel %vm606, %v596, 0
      %697 = vmatprep.subr.mxu0 0.0
      %698 = vmatpush1.msra.mxu0 %v597
      %699 = vmatprep.subr.mxu0 0.0
      %700 = vmatpush1.msra.mxu0 %v598
      %701 = vmatprep.subr.mxu0 0.0
      %702 = vmatpush1.msra.mxu0 0.0
      %703 = vmatprep.subr.mxu0 0.0
      %704 = vmatpush1.msra.mxu0 0.0
      %705 = vmatprep.subr.mxu0 0.0
      %706 = vmatpush1.msra.mxu0 0.0
      %707 = vmatprep.subr.mxu0 0.0
      %708 = vmatpush1.msra.mxu0 0.0
      %709 = vmatprep.subr.mxu0 0.0
      %710 = vmatpush1.msra.mxu0 0.0
      %711 = vmatprep.subr.mxu0 0.0
      %712 = vmatpush1.msra.mxu0 0.0
      %713 = vmatprep.subr.mxu0 0.0
      %714 = vmatpush1.msra.mxu0 0.0
      %715 = vmatprep.subr.mxu0 0.0
      %716 = vmatpush1.msra.mxu0 0.0
      %717 = vmatprep.subr.mxu0 0.0
      %718 = vmatpush1.msra.mxu0 0.0
      %719 = vmatprep.subr.mxu0 0.0
      %720 = vmatpush1.msra.mxu0 0.0
      %721 = vmatprep.subr.mxu0 0.0
      %722 = vmatpush1.msra.mxu0 0.0
      %723 = vmatprep.subr.mxu0 0.0
      %724 = vmatpush1.msra.mxu0 0.0
      %725 = vmatprep.subr.mxu0 0.0
      %726 = vmatpush1.msra.mxu0 0.0
      %727 = vmatprep.subr.mxu0 0.0
      %728 = vmatpush1.msra.mxu0 0.0
      %729 = vmatprep.subr.mxu0 0.0
      %730 = vmatpush1.msra.mxu0 0.0
      %731 = vmatprep.subr.mxu0 0.0
      %732 = vmatpush1.msra.mxu0 0.0
      %733 = vmatprep.subr.mxu0 0.0
      %734 = vmatpush1.msra.mxu0 0.0
      %735 = vmatprep.subr.mxu0 0.0
      %736 = vmatpush1.msra.mxu0 0.0
      %737 = vmatprep.subr.mxu0 0.0
      %738 = vmatpush1.msra.mxu0 0.0
      %739 = vmatprep.subr.mxu0 0.0
      %740 = vmatpush1.msra.mxu0 0.0
      %741 = vmatprep.subr.mxu0 0.0
      %742 = vmatpush1.msra.mxu0 0.0
      %743 = vmatprep.subr.mxu0 0.0
      %744 = vmatpush1.msra.mxu0 0.0
      %745 = vmatprep.subr.mxu0 0.0
      %746 = vmatpush1.msra.mxu0 0.0
      %747 = vmatprep.subr.mxu0 0.0
      %748 = vmatpush1.msra.mxu0 0.0
      %749 = vmatprep.subr.mxu0 0.0
      %750 = vmatpush1.msra.mxu0 0.0
      %751 = vmatprep.subr.mxu0 0.0
      %752 = vmatpush1.msra.mxu0 0.0
      %753 = vmatprep.subr.mxu0 0.0
      %754 = vmatpush1.msra.mxu0 0.0
      %755 = vmatprep.subr.mxu0 0.0
      %756 = vmatpush1.msra.mxu0 0.0
      %757 = vmatprep.subr.mxu0 0.0
      %758 = vmatpush1.msra.mxu0 0.0
      %759 = vmatprep.subr.mxu0 0.0
      %760 = vmatpush1.msra.mxu0 0.0
      %761 = vmatprep.mubr.f32.mxu0 0.0
      %762 = vmatmul.mubr.f32.gmra.mrb[0].mxu0 %v608
      %v763 = vpop.f32.mrb[0].mxu0
      %v764 = vadd.f32 %v604, %v763
      %v765 = vpop.f32.mrb[0].mxu0
      %766 = vmatprep.mubr.f32.mxu0 0.0
      %767 = vmatmul.mubr.f32.gmra.mrb[0].mxu0 %v611
      %v768 = vpop.f32.mrb[0].mxu0
      %v769 = vadd.f32 %v604, %v768
      %v770 = vpop.f32.mrb[0].mxu0
      %771 = vmatprep.mubr.f32.mxu0 0.0
      %772 = vmatmul.mubr.f32.gmra.mrb[0].mxu0 %v614
      %v773 = vpop.f32.mrb[0].mxu0
      %v774 = vadd.f32 %v604, %v773
      %v775 = vpop.f32.mrb[0].mxu0
      %776 = vmatprep.mubr.f32.mxu0 0.0
      %777 = vmatmul.mubr.f32.gmra.mrb[0].mxu0 %v617
      %v778 = vpop.f32.mrb[0].mxu0
      %v779 = vadd.f32 %v604, %v778
      %v780 = vpop.f32.mrb[0].mxu0
      %781 = vmatprep.mubr.f32.mxu0 0.0
      %782 = vmatmul.mubr.f32.gmra.mrb[0].mxu0 %v620
      %v783 = vpop.f32.mrb[0].mxu0
      %v784 = vadd.f32 %v604, %v783
      %v785 = vpop.f32.mrb[0].mxu0
      %786 = vmatprep.mubr.f32.mxu0 0.0
      %787 = vmatmul.mubr.f32.gmra.mrb[0].mxu0 %v623
      %v788 = vpop.f32.mrb[0].mxu0
      %v789 = vadd.f32 %v604, %v788
      %v790 = vpop.f32.mrb[0].mxu0
      %791 = vmatprep.mubr.f32.mxu0 0.0
      %792 = vmatmul.mubr.f32.gmra.mrb[0].mxu0 %v626
      %v793 = vpop.f32.mrb[0].mxu0
      %v794 = vadd.f32 %v604, %v793
      %v795 = vpop.f32.mrb[0].mxu0
      %796 = vmatprep.mubr.f32.mxu0 0.0
      %797 = vmatmul.mubr.f32.gmra.mrb[0].mxu0 %v629
      %v798 = vpop.f32.mrb[0].mxu0
      %v799 = vadd.f32 %v604, %v798
      %v800 = vpop.f32.mrb[0].mxu0
      %801 = vmatprep.mubr.f32.mxu0 0.0
      %802 = vmatmul.mubr.f32.gmra.mrb[0].mxu0 %v632
      %v803 = vpop.f32.mrb[0].mxu0
      %v804 = vadd.f32 %v604, %v803
      %v805 = vpop.f32.mrb[0].mxu0
      %806 = vmatprep.mubr.f32.mxu0 0.0
      %807 = vmatmul.mubr.f32.gmra.mrb[0].mxu0 %v635
      %v808 = vpop.f32.mrb[0].mxu0
      %v809 = vadd.f32 %v604, %v808
      %v810 = vpop.f32.mrb[0].mxu0
      %811 = vmatprep.mubr.f32.mxu0 0.0
      %812 = vmatmul.mubr.f32.gmra.mrb[0].mxu0 %v638
      %v813 = vpop.f32.mrb[0].mxu0
      %v814 = vadd.f32 %v604, %v813
      %v815 = vpop.f32.mrb[0].mxu0
      %816 = vmatprep.mubr.f32.mxu0 0.0
      %817 = vmatmul.mubr.f32.gmra.mrb[0].mxu0 %v641
      %v818 = vpop.f32.mrb[0].mxu0
      %v819 = vadd.f32 %v604, %v818
      %v820 = vpop.f32.mrb[0].mxu0
      %821 = vmatprep.mubr.f32.mxu0 0.0
      %822 = vmatmul.mubr.f32.gmra.mrb[0].mxu0 %v644
      %v823 = vpop.f32.mrb[0].mxu0
      %v824 = vadd.f32 %v604, %v823
      %v825 = vpop.f32.mrb[0].mxu0
      %826 = vmatprep.mubr.f32.mxu0 0.0
      %827 = vmatmul.mubr.f32.gmra.mrb[0].mxu0 %v647
      %v828 = vpop.f32.mrb[0].mxu0
      %v829 = vadd.f32 %v604, %v828
      %v830 = vpop.f32.mrb[0].mxu0
      %831 = vmatprep.mubr.f32.mxu0 0.0
      %832 = vmatmul.mubr.f32.gmra.mrb[0].mxu0 %v650
      %v833 = vpop.f32.mrb[0].mxu0
      %v834 = vadd.f32 %v604, %v833
      %v835 = vpop.f32.mrb[0].mxu0
      %836 = vmatprep.mubr.f32.mxu0 0.0
      %837 = vmatmul.mubr.f32.gmra.mrb[0].mxu0 %v653
      %v838 = vpop.f32.mrb[0].mxu0
      %v839 = vadd.f32 %v604, %v838
      %v840 = vpop.f32.mrb[0].mxu0
      %841 = vmatprep.mubr.f32.mxu0 0.0
      %842 = vmatmul.mubr.f32.gmra.mrb[0].mxu0 %v656
      %v843 = vpop.f32.mrb[0].mxu0
      %v844 = vadd.f32 %v604, %v843
      %v845 = vpop.f32.mrb[0].mxu0
      %846 = vmatprep.mubr.f32.mxu0 0.0
      %847 = vmatmul.mubr.f32.gmra.mrb[0].mxu0 %v659
      %v848 = vpop.f32.mrb[0].mxu0
      %v849 = vadd.f32 %v604, %v848
      %v850 = vpop.f32.mrb[0].mxu0
      %851 = vmatprep.mubr.f32.mxu0 0.0
      %852 = vmatmul.mubr.f32.gmra.mrb[0].mxu0 %v662
      %v853 = vpop.f32.mrb[0].mxu0
      %v854 = vadd.f32 %v604, %v853
      %v855 = vpop.f32.mrb[0].mxu0
      %856 = vmatprep.mubr.f32.mxu0 0.0
      %857 = vmatmul.mubr.f32.gmra.mrb[0].mxu0 %v665
      %v858 = vpop.f32.mrb[0].mxu0
      %v859 = vadd.f32 %v604, %v858
      %v860 = vpop.f32.mrb[0].mxu0
      %861 = vmatprep.mubr.f32.mxu0 0.0
      %862 = vmatmul.mubr.f32.gmra.mrb[0].mxu0 %v668
      %v863 = vpop.f32.mrb[0].mxu0
      %v864 = vadd.f32 %v604, %v863
      %v865 = vpop.f32.mrb[0].mxu0
      %866 = vmatprep.mubr.f32.mxu0 0.0
      %867 = vmatmul.mubr.f32.gmra.mrb[0].mxu0 %v671
      %v868 = vpop.f32.mrb[0].mxu0
      %v869 = vadd.f32 %v604, %v868
      %v870 = vpop.f32.mrb[0].mxu0
      %871 = vmatprep.mubr.f32.mxu0 0.0
      %872 = vmatmul.mubr.f32.gmra.mrb[0].mxu0 %v674
      %v873 = vpop.f32.mrb[0].mxu0
      %v874 = vadd.f32 %v604, %v873
      %v875 = vpop.f32.mrb[0].mxu0
      %876 = vmatprep.mubr.f32.mxu0 0.0
      %877 = vmatmul.mubr.f32.gmra.mrb[0].mxu0 %v677
      %v878 = vpop.f32.mrb[0].mxu0
      %v879 = vadd.f32 %v604, %v878
      %v880 = vpop.f32.mrb[0].mxu0
      %881 = vmatprep.mubr.f32.mxu0 0.0
      %882 = vmatmul.mubr.f32.gmra.mrb[0].mxu0 %v680
      %v883 = vpop.f32.mrb[0].mxu0
      %v884 = vadd.f32 %v604, %v883
      %v885 = vpop.f32.mrb[0].mxu0
      %886 = vmatprep.mubr.f32.mxu0 0.0
      %887 = vmatmul.mubr.f32.gmra.mrb[0].mxu0 %v683
      %v888 = vpop.f32.mrb[0].mxu0
      %v889 = vadd.f32 %v604, %v888
      %v890 = vpop.f32.mrb[0].mxu0
      %891 = vmatprep.mubr.f32.mxu0 0.0
      %892 = vmatmul.mubr.f32.gmra.mrb[0].mxu0 %v686
      %v893 = vpop.f32.mrb[0].mxu0
      %v894 = vadd.f32 %v604, %v893
      %v895 = vpop.f32.mrb[0].mxu0
      %896 = vmatprep.mubr.f32.mxu0 0.0
      %897 = vmatmul.mubr.f32.gmra.mrb[0].mxu0 %v689
      %v898 = vpop.f32.mrb[0].mxu0
      %v899 = vadd.f32 %v604, %v898
      %v900 = vpop.f32.mrb[0].mxu0
      %901 = vmatprep.mubr.f32.mxu0 0.0
      %902 = vmatmul.mubr.f32.gmra.mrb[0].mxu0 %v692
      %v903 = vpop.f32.mrb[0].mxu0
      %v904 = vadd.f32 %v604, %v903
      %v905 = vpop.f32.mrb[0].mxu0
      %906 = vmatprep.mubr.f32.mxu0 0.0
      %907 = vmatmul.mubr.f32.gmra.mrb[0].mxu0 %v695
      %v908 = vpop.f32.mrb[0].mxu0
      %v909 = vadd.f32 %v604, %v908
      %v910 = vpop.f32.mrb[0].mxu0
      %911 = vdwg.mxu0
      %vm912 = vcmp.ge.f32.partialorder %v764, 0.0
      %vm913 = vcmp.ge.f32.partialorder %v769, 0.0
      %vm914 = vcmp.ge.f32.partialorder %v774, 0.0
      %vm915 = vcmp.ge.f32.partialorder %v779, 0.0
      %vm916 = vcmp.ge.f32.partialorder %v784, 0.0
      %vm917 = vcmp.ge.f32.partialorder %v789, 0.0
      %vm918 = vcmp.ge.f32.partialorder %v794, 0.0
      %vm919 = vcmp.ge.f32.partialorder %v799, 0.0
      %vm920 = vcmp.ge.f32.partialorder %v804, 0.0
      %vm921 = vcmp.ge.f32.partialorder %v809, 0.0
      %vm922 = vcmp.ge.f32.partialorder %v814, 0.0
      %vm923 = vcmp.ge.f32.partialorder %v819, 0.0
      %vm924 = vcmp.ge.f32.partialorder %v824, 0.0
      %vm925 = vcmp.ge.f32.partialorder %v829, 0.0
      %vm926 = vcmp.ge.f32.partialorder %v834, 0.0
      %vm927 = vcmp.ge.f32.partialorder %v839, 0.0
      %vm928 = vcmp.ge.f32.partialorder %v844, 0.0
      %vm929 = vcmp.ge.f32.partialorder %v849, 0.0
      %vm930 = vcmp.ge.f32.partialorder %v854, 0.0
      %vm931 = vcmp.ge.f32.partialorder %v859, 0.0
      %vm932 = vcmp.ge.f32.partialorder %v864, 0.0
      %vm933 = vcmp.ge.f32.partialorder %v869, 0.0
      %vm934 = vcmp.ge.f32.partialorder %v874, 0.0
      %vm935 = vcmp.ge.f32.partialorder %v879, 0.0
      %vm936 = vcmp.ge.f32.partialorder %v884, 0.0
      %vm937 = vcmp.ge.f32.partialorder %v889, 0.0
      %vm938 = vcmp.ge.f32.partialorder %v894, 0.0
      %vm939 = vcmp.ge.f32.partialorder %v899, 0.0
      %vm940 = vcmp.ge.f32.partialorder %v904, 0.0
      %vm941 = vcmp.ge.f32.partialorder %v909, 0.0
      %v942 = vmul.f32 %v764, 0.01
      %v943 = vmul.f32 %v769, 0.01
      %v944 = vmul.f32 %v774, 0.01
      %v945 = vmul.f32 %v779, 0.01
      %v946 = vmul.f32 %v784, 0.01
      %v947 = vmul.f32 %v789, 0.01
      %v948 = vmul.f32 %v794, 0.01
      %v949 = vmul.f32 %v799, 0.01
      %v950 = vmul.f32 %v804, 0.01
      %v951 = vmul.f32 %v809, 0.01
      %v952 = vmul.f32 %v814, 0.01
      %v953 = vmul.f32 %v819, 0.01
      %v954 = vmul.f32 %v824, 0.01
      %v955 = vmul.f32 %v829, 0.01
      %v956 = vmul.f32 %v834, 0.01
      %v957 = vmul.f32 %v839, 0.01
      %v958 = vmul.f32 %v844, 0.01
      %v959 = vmul.f32 %v849, 0.01
      %v960 = vmul.f32 %v854, 0.01
      %v961 = vmul.f32 %v859, 0.01
      %v962 = vmul.f32 %v864, 0.01
      %v963 = vmul.f32 %v869, 0.01
      %v964 = vmul.f32 %v874, 0.01
      %v965 = vmul.f32 %v879, 0.01
      %v966 = vmul.f32 %v884, 0.01
      %v967 = vmul.f32 %v889, 0.01
      %v968 = vmul.f32 %v894, 0.01
      %v969 = vmul.f32 %v899, 0.01
      %v970 = vmul.f32 %v904, 0.01
      %v971 = vmul.f32 %v909, 0.01
      %v972 = vsel %vm912, %v764, %v942
      %v973 = vsel %vm913, %v769, %v943
      %v974 = vsel %vm914, %v774, %v944
      %v975 = vsel %vm915, %v779, %v945
      %v976 = vsel %vm916, %v784, %v946
      %v977 = vsel %vm917, %v789, %v947
      %v978 = vsel %vm918, %v794, %v948
      %v979 = vsel %vm919, %v799, %v949
      %v980 = vsel %vm920, %v804, %v950
      %v981 = vsel %vm921, %v809, %v951
      %v982 = vsel %vm922, %v814, %v952
      %v983 = vsel %vm923, %v819, %v953
      %v984 = vsel %vm924, %v824, %v954
      %v985 = vsel %vm925, %v829, %v955
      %v986 = vsel %vm926, %v834, %v956
      %v987 = vsel %vm927, %v839, %v957
      %v988 = vsel %vm928, %v844, %v958
      %v989 = vsel %vm929, %v849, %v959
      %v990 = vsel %vm930, %v854, %v960
      %v991 = vsel %vm931, %v859, %v961
      %v992 = vsel %vm932, %v864, %v962
      %v993 = vsel %vm933, %v869, %v963
      %v994 = vsel %vm934, %v874, %v964
      %v995 = vsel %vm935, %v879, %v965
      %v996 = vsel %vm936, %v884, %v966
      %v997 = vsel %vm937, %v889, %v967
      %v998 = vsel %vm938, %v894, %v968
      %v999 = vsel %vm939, %v899, %v969
      %v1000 = vsel %vm940, %v904, %v970
      %v1001 = vsel %vm941, %v909, %v971
      %v1002 = vld [vmem:[%s4] sm:$0xff]
      %v1003 = vld [vmem:[%s4 + $0x8] sm:$0xff]
      %v1004 = vld [vmem:[%s4 + $0x10] sm:$0xff]
      %v1005 = vld [vmem:[%s4 + $0x18] sm:$0xff]
      %v1006 = vld [vmem:[%s4 + $0x20] sm:$0xff]
      %v1007 = vld [vmem:[%s4 + $0x28] sm:$0xff]
      %v1008 = vld [vmem:[%s4 + $0x30] sm:$0xff]
      %v1009 = vld [vmem:[%s4 + $0x38] sm:$0xff]
      %v1010 = vld [vmem:[%s4 + $0x40] sm:$0xff]
      %v1011 = vld [vmem:[%s4 + $0x48] sm:$0xff]
      %v1012 = vld [vmem:[%s4 + $0x50] sm:$0xff]
      %v1013 = vld [vmem:[%s4 + $0x58] sm:$0xff]
      %v1014 = vld [vmem:[%s4 + $0x60] sm:$0xff]
      %v1015 = vld [vmem:[%s4 + $0x68] sm:$0xff]
      %v1016 = vld [vmem:[%s4 + $0x70] sm:$0xff]
      %v1017 = vld [vmem:[%s4 + $0x78] sm:$0xff]
      %v1018 = vld [vmem:[%s4 + $0x80] sm:$0xff]
      %v1019 = vld [vmem:[%s4 + $0x88] sm:$0xff]
      %v1020 = vld [vmem:[%s4 + $0x90] sm:$0xff]
      %v1021 = vld [vmem:[%s4 + $0x98] sm:$0xff]
      %v1022 = vld [vmem:[%s4 + $0xa0] sm:$0xff]
      %v1023 = vld [vmem:[%s4 + $0xa8] sm:$0xff]
      %v1024 = vld [vmem:[%s4 + $0xb0] sm:$0xff]
      %v1025 = vld [vmem:[%s4 + $0xb8] sm:$0xff]
      %v1026 = vld [vmem:[%s4 + $0xc0] sm:$0xff]
      %v1027 = vld [vmem:[%s4 + $0xc8] sm:$0xff]
      %v1028 = vld [vmem:[%s4 + $0xd0] sm:$0xff]
      %v1029 = vld [vmem:[%s4 + $0xd8] sm:$0xff]
      %v1030 = vld [vmem:[%s4 + $0xe0] sm:$0xff]
      %v1031 = vld [vmem:[%s4 + $0xe8] sm:$0xff]
      %v1032 = vmul.f32 %v972, %v1002
      %v1033 = vmul.f32 %v973, %v1003
      %v1034 = vmul.f32 %v974, %v1004
      %v1035 = vmul.f32 %v975, %v1005
      %v1036 = vmul.f32 %v976, %v1006
      %v1037 = vmul.f32 %v977, %v1007
      %v1038 = vmul.f32 %v978, %v1008
      %v1039 = vmul.f32 %v979, %v1009
      %v1040 = vmul.f32 %v980, %v1010
      %v1041 = vmul.f32 %v981, %v1011
      %v1042 = vmul.f32 %v982, %v1012
      %v1043 = vmul.f32 %v983, %v1013
      %v1044 = vmul.f32 %v984, %v1014
      %v1045 = vmul.f32 %v985, %v1015
      %v1046 = vmul.f32 %v986, %v1016
      %v1047 = vmul.f32 %v987, %v1017
      %v1048 = vmul.f32 %v988, %v1018
      %v1049 = vmul.f32 %v989, %v1019
      %v1050 = vmul.f32 %v990, %v1020
      %v1051 = vmul.f32 %v991, %v1021
      %v1052 = vmul.f32 %v992, %v1022
      %v1053 = vmul.f32 %v993, %v1023
      %v1054 = vmul.f32 %v994, %v1024
      %v1055 = vmul.f32 %v995, %v1025
      %v1056 = vmul.f32 %v996, %v1026
      %v1057 = vmul.f32 %v997, %v1027
      %v1058 = vmul.f32 %v998, %v1028
      %v1059 = vmul.f32 %v999, %v1029
      %v1060 = vmul.f32 %v1000, %v1030
      %v1061 = vmul.f32 %v1001, %v1031
      %vm1062 = vcmask 785408
      %1063 = vst.msk [vmem:[#allocation2] sm:$0xff] %vm1062, %v1032
      %1064 = vst.msk [vmem:[#allocation2 + $0x8] sm:$0xff] %vm1062, %v1033
      %1065 = vst.msk [vmem:[#allocation2 + $0x10] sm:$0xff] %vm1062, %v1034
      %1066 = vst.msk [vmem:[#allocation2 + $0x18] sm:$0xff] %vm1062, %v1035
      %1067 = vst.msk [vmem:[#allocation2 + $0x20] sm:$0xff] %vm1062, %v1036
      %1068 = vst.msk [vmem:[#allocation2 + $0x28] sm:$0xff] %vm1062, %v1037
      %1069 = vst.msk [vmem:[#allocation2 + $0x30] sm:$0xff] %vm1062, %v1038
      %1070 = vst.msk [vmem:[#allocation2 + $0x38] sm:$0xff] %vm1062, %v1039
      %1071 = vst.msk [vmem:[#allocation2 + $0x40] sm:$0xff] %vm1062, %v1040
      %1072 = vst.msk [vmem:[#allocation2 + $0x48] sm:$0xff] %vm1062, %v1041
      %1073 = vst.msk [vmem:[#allocation2 + $0x50] sm:$0xff] %vm1062, %v1042
      %1074 = vst.msk [vmem:[#allocation2 + $0x58] sm:$0xff] %vm1062, %v1043
      %1075 = vst.msk [vmem:[#allocation2 + $0x60] sm:$0xff] %vm1062, %v1044
      %1076 = vst.msk [vmem:[#allocation2 + $0x68] sm:$0xff] %vm1062, %v1045
      %1077 = vst.msk [vmem:[#allocation2 + $0x70] sm:$0xff] %vm1062, %v1046
      %1078 = vst.msk [vmem:[#allocation2 + $0x78] sm:$0xff] %vm1062, %v1047
      %1079 = vst.msk [vmem:[#allocation2 + $0x80] sm:$0xff] %vm1062, %v1048
      %1080 = vst.msk [vmem:[#allocation2 + $0x88] sm:$0xff] %vm1062, %v1049
      %1081 = vst.msk [vmem:[#allocation2 + $0x90] sm:$0xff] %vm1062, %v1050
      %1082 = vst.msk [vmem:[#allocation2 + $0x98] sm:$0xff] %vm1062, %v1051
      %1083 = vst.msk [vmem:[#allocation2 + $0xa0] sm:$0xff] %vm1062, %v1052
      %1084 = vst.msk [vmem:[#allocation2 + $0xa8] sm:$0xff] %vm1062, %v1053
      %1085 = vst.msk [vmem:[#allocation2 + $0xb0] sm:$0xff] %vm1062, %v1054
      %1086 = vst.msk [vmem:[#allocation2 + $0xb8] sm:$0xff] %vm1062, %v1055
      %1087 = vst.msk [vmem:[#allocation2 + $0xc0] sm:$0xff] %vm1062, %v1056
      %1088 = vst.msk [vmem:[#allocation2 + $0xc8] sm:$0xff] %vm1062, %v1057
      %1089 = vst.msk [vmem:[#allocation2 + $0xd0] sm:$0xff] %vm1062, %v1058
      %1090 = vst.msk [vmem:[#allocation2 + $0xd8] sm:$0xff] %vm1062, %v1059
      %1091 = vst.msk [vmem:[#allocation2 + $0xe0] sm:$0xff] %vm1062, %v1060
      %1092 = vst.msk [vmem:[#allocation2 + $0xe8] sm:$0xff] %vm1062, %v1061
      %v1093 = vld [vmem:[%s562] sm:$0xff]
      %v1094 = vld [vmem:[%s562 + $0x8] sm:$0xff]
      %v1095 = vld [vmem:[%s562 + $0x10] sm:$0xff]
      %v1096 = vld [vmem:[%s562 + $0x18] sm:$0xff]
      %v1097 = vld [vmem:[%s562 + $0x20] sm:$0xff]
      %v1098 = vld [vmem:[%s562 + $0x28] sm:$0xff]
      %v1099 = vld [vmem:[%s562 + $0x30] sm:$0xff]
      %v1100 = vld [vmem:[%s562 + $0x38] sm:$0xff]
      %v1101 = vld [vmem:[%s562 + $0x40] sm:$0xff]
      %v1102 = vld [vmem:[%s562 + $0x48] sm:$0xff]
      %v1103 = vld [vmem:[%s562 + $0x50] sm:$0xff]
      %v1104 = vld [vmem:[%s562 + $0x58] sm:$0xff]
      %v1105 = vld [vmem:[%s562 + $0x60] sm:$0xff]
      %v1106 = vld [vmem:[%s562 + $0x68] sm:$0xff]
      %v1107 = vld [vmem:[%s562 + $0x70] sm:$0xff]
      %v1108 = vld [vmem:[%s562 + $0x78] sm:$0xff]
      %v1109 = vld [vmem:[%s562 + $0x80] sm:$0xff]
      %v1110 = vld [vmem:[%s562 + $0x88] sm:$0xff]
      %v1111 = vld [vmem:[%s562 + $0x90] sm:$0xff]
      %v1112 = vld [vmem:[%s562 + $0x98] sm:$0xff]
      %v1113 = vld [vmem:[%s562 + $0xa0] sm:$0xff]
      %v1114 = vld [vmem:[%s562 + $0xa8] sm:$0xff]
      %v1115 = vld [vmem:[%s562 + $0xb0] sm:$0xff]
      %v1116 = vld [vmem:[%s562 + $0xb8] sm:$0xff]
      %v1117 = vld [vmem:[%s562 + $0xc0] sm:$0xff]
      %v1118 = vld [vmem:[%s562 + $0xc8] sm:$0xff]
      %v1119 = vld [vmem:[%s562 + $0xd0] sm:$0xff]
      %v1120 = vld [vmem:[%s562 + $0xd8] sm:$0xff]
      %v1121 = vld [vmem:[%s2] sm:$0xff]
      %v1122 = vld [vmem:[%s2 + $0x8] sm:$0xff]
      %v1123 = vld [vmem:[%s3] sm:$0x1]
      %v1125 = vlaneseq
      %v1126 = vshrl.u32 %v1125, 7
      %v1127 = vsub.s32 0, %v1126
      %v1128 = vrot.slane %v1123, %v1127
      %v1131 = vsel %vm606, %v1093, 0
      %v1134 = vsel %vm606, %v1094, 0
      %v1137 = vsel %vm606, %v1095, 0
      %v1140 = vsel %vm606, %v1096, 0
      %v1143 = vsel %vm606, %v1097, 0
      %v1146 = vsel %vm606, %v1098, 0
      %v1149 = vsel %vm606, %v1099, 0
      %v1152 = vsel %vm606, %v1100, 0
      %v1155 = vsel %vm606, %v1101, 0
      %v1158 = vsel %vm606, %v1102, 0
      %v1161 = vsel %vm606, %v1103, 0
      %v1164 = vsel %vm606, %v1104, 0
      %v1167 = vsel %vm606, %v1105, 0
      %v1170 = vsel %vm606, %v1106, 0
      %v1173 = vsel %vm606, %v1107, 0
      %v1176 = vsel %vm606, %v1108, 0
      %v1179 = vsel %vm606, %v1109, 0
      %v1182 = vsel %vm606, %v1110, 0
      %v1185 = vsel %vm606, %v1111, 0
      %v1188 = vsel %vm606, %v1112, 0
      %v1191 = vsel %vm606, %v1113, 0
      %v1194 = vsel %vm606, %v1114, 0
      %v1197 = vsel %vm606, %v1115, 0
      %v1200 = vsel %vm606, %v1116, 0
      %v1203 = vsel %vm606, %v1117, 0
      %v1206 = vsel %vm606, %v1118, 0
      %v1209 = vsel %vm606, %v1119, 0
      %v1212 = vsel %vm606, %v1120, 0
      %1214 = vmatprep.subr.mxu0 0.0
      %1215 = vmatpush1.msra.mxu0 %v1121
      %1216 = vmatprep.subr.mxu0 0.0
      %1217 = vmatpush1.msra.mxu0 %v1122
      %1218 = vmatprep.subr.mxu0 0.0
      %1219 = vmatpush1.msra.mxu0 0.0
      %1220 = vmatprep.subr.mxu0 0.0
      %1221 = vmatpush1.msra.mxu0 0.0
      %1222 = vmatprep.subr.mxu0 0.0
      %1223 = vmatpush1.msra.mxu0 0.0
      %1224 = vmatprep.subr.mxu0 0.0
      %1225 = vmatpush1.msra.mxu0 0.0
      %1226 = vmatprep.subr.mxu0 0.0
      %1227 = vmatpush1.msra.mxu0 0.0
      %1228 = vmatprep.subr.mxu0 0.0
      %1229 = vmatpush1.msra.mxu0 0.0
      %1230 = vmatprep.subr.mxu0 0.0
      %1231 = vmatpush1.msra.mxu0 0.0
      %1232 = vmatprep.subr.mxu0 0.0
      %1233 = vmatpush1.msra.mxu0 0.0
      %1234 = vmatprep.subr.mxu0 0.0
      %1235 = vmatpush1.msra.mxu0 0.0
      %1236 = vmatprep.subr.mxu0 0.0
      %1237 = vmatpush1.msra.mxu0 0.0
      %1238 = vmatprep.subr.mxu0 0.0
      %1239 = vmatpush1.msra.mxu0 0.0
      %1240 = vmatprep.subr.mxu0 0.0
      %1241 = vmatpush1.msra.mxu0 0.0
      %1242 = vmatprep.subr.mxu0 0.0
      %1243 = vmatpush1.msra.mxu0 0.0
      %1244 = vmatprep.subr.mxu0 0.0
      %1245 = vmatpush1.msra.mxu0 0.0
      %1246 = vmatprep.subr.mxu0 0.0
      %1247 = vmatpush1.msra.mxu0 0.0
      %1248 = vmatprep.subr.mxu0 0.0
      %1249 = vmatpush1.msra.mxu0 0.0
      %1250 = vmatprep.subr.mxu0 0.0
      %1251 = vmatpush1.msra.mxu0 0.0
      %1252 = vmatprep.subr.mxu0 0.0
      %1253 = vmatpush1.msra.mxu0 0.0
      %1254 = vmatprep.subr.mxu0 0.0
      %1255 = vmatpush1.msra.mxu0 0.0
      %1256 = vmatprep.subr.mxu0 0.0
      %1257 = vmatpush1.msra.mxu0 0.0
      %1258 = vmatprep.subr.mxu0 0.0
      %1259 = vmatpush1.msra.mxu0 0.0
      %1260 = vmatprep.subr.mxu0 0.0
      %1261 = vmatpush1.msra.mxu0 0.0
      %1262 = vmatprep.subr.mxu0 0.0
      %1263 = vmatpush1.msra.mxu0 0.0
      %1264 = vmatprep.subr.mxu0 0.0
      %1265 = vmatpush1.msra.mxu0 0.0
      %1266 = vmatprep.subr.mxu0 0.0
      %1267 = vmatpush1.msra.mxu0 0.0
      %1268 = vmatprep.subr.mxu0 0.0
      %1269 = vmatpush1.msra.mxu0 0.0
      %1270 = vmatprep.subr.mxu0 0.0
      %1271 = vmatpush1.msra.mxu0 0.0
      %1272 = vmatprep.subr.mxu0 0.0
      %1273 = vmatpush1.msra.mxu0 0.0
      %1274 = vmatprep.subr.mxu0 0.0
      %1275 = vmatpush1.msra.mxu0 0.0
      %1276 = vmatprep.subr.mxu0 0.0
      %1277 = vmatpush1.msra.mxu0 0.0
      %1278 = vmatprep.mubr.f32.mxu0 0.0
      %1279 = vmatmul.mubr.f32.gmra.mrb[0].mxu0 %v1131
      %v1280 = vpop.f32.mrb[0].mxu0
      %v1281 = vadd.f32 %v1128, %v1280
      %v1282 = vpop.f32.mrb[0].mxu0
      %1283 = vmatprep.mubr.f32.mxu0 0.0
      %1284 = vmatmul.mubr.f32.gmra.mrb[0].mxu0 %v1134
      %v1285 = vpop.f32.mrb[0].mxu0
      %v1286 = vadd.f32 %v1128, %v1285
      %v1287 = vpop.f32.mrb[0].mxu0
      %1288 = vmatprep.mubr.f32.mxu0 0.0
      %1289 = vmatmul.mubr.f32.gmra.mrb[0].mxu0 %v1137
      %v1290 = vpop.f32.mrb[0].mxu0
      %v1291 = vadd.f32 %v1128, %v1290
      %v1292 = vpop.f32.mrb[0].mxu0
      %1293 = vmatprep.mubr.f32.mxu0 0.0
      %1294 = vmatmul.mubr.f32.gmra.mrb[0].mxu0 %v1140
      %v1295 = vpop.f32.mrb[0].mxu0
      %v1296 = vadd.f32 %v1128, %v1295
      %v1297 = vpop.f32.mrb[0].mxu0
      %1298 = vmatprep.mubr.f32.mxu0 0.0
      %1299 = vmatmul.mubr.f32.gmra.mrb[0].mxu0 %v1143
      %v1300 = vpop.f32.mrb[0].mxu0
      %v1301 = vadd.f32 %v1128, %v1300
      %v1302 = vpop.f32.mrb[0].mxu0
      %1303 = vmatprep.mubr.f32.mxu0 0.0
      %1304 = vmatmul.mubr.f32.gmra.mrb[0].mxu0 %v1146
      %v1305 = vpop.f32.mrb[0].mxu0
      %v1306 = vadd.f32 %v1128, %v1305
      %v1307 = vpop.f32.mrb[0].mxu0
      %1308 = vmatprep.mubr.f32.mxu0 0.0
      %1309 = vmatmul.mubr.f32.gmra.mrb[0].mxu0 %v1149
      %v1310 = vpop.f32.mrb[0].mxu0
      %v1311 = vadd.f32 %v1128, %v1310
      %v1312 = vpop.f32.mrb[0].mxu0
      %1313 = vmatprep.mubr.f32.mxu0 0.0
      %1314 = vmatmul.mubr.f32.gmra.mrb[0].mxu0 %v1152
      %v1315 = vpop.f32.mrb[0].mxu0
      %v1316 = vadd.f32 %v1128, %v1315
      %v1317 = vpop.f32.mrb[0].mxu0
      %1318 = vmatprep.mubr.f32.mxu0 0.0
      %1319 = vmatmul.mubr.f32.gmra.mrb[0].mxu0 %v1155
      %v1320 = vpop.f32.mrb[0].mxu0
      %v1321 = vadd.f32 %v1128, %v1320
      %v1322 = vpop.f32.mrb[0].mxu0
      %1323 = vmatprep.mubr.f32.mxu0 0.0
      %1324 = vmatmul.mubr.f32.gmra.mrb[0].mxu0 %v1158
      %v1325 = vpop.f32.mrb[0].mxu0
      %v1326 = vadd.f32 %v1128, %v1325
      %v1327 = vpop.f32.mrb[0].mxu0
      %1328 = vmatprep.mubr.f32.mxu0 0.0
      %1329 = vmatmul.mubr.f32.gmra.mrb[0].mxu0 %v1161
      %v1330 = vpop.f32.mrb[0].mxu0
      %v1331 = vadd.f32 %v1128, %v1330
      %v1332 = vpop.f32.mrb[0].mxu0
      %1333 = vmatprep.mubr.f32.mxu0 0.0
      %1334 = vmatmul.mubr.f32.gmra.mrb[0].mxu0 %v1164
      %v1335 = vpop.f32.mrb[0].mxu0
      %v1336 = vadd.f32 %v1128, %v1335
      %v1337 = vpop.f32.mrb[0].mxu0
      %1338 = vmatprep.mubr.f32.mxu0 0.0
      %1339 = vmatmul.mubr.f32.gmra.mrb[0].mxu0 %v1167
      %v1340 = vpop.f32.mrb[0].mxu0
      %v1341 = vadd.f32 %v1128, %v1340
      %v1342 = vpop.f32.mrb[0].mxu0
      %1343 = vmatprep.mubr.f32.mxu0 0.0
      %1344 = vmatmul.mubr.f32.gmra.mrb[0].mxu0 %v1170
      %v1345 = vpop.f32.mrb[0].mxu0
      %v1346 = vadd.f32 %v1128, %v1345
      %v1347 = vpop.f32.mrb[0].mxu0
      %1348 = vmatprep.mubr.f32.mxu0 0.0
      %1349 = vmatmul.mubr.f32.gmra.mrb[0].mxu0 %v1173
      %v1350 = vpop.f32.mrb[0].mxu0
      %v1351 = vadd.f32 %v1128, %v1350
      %v1352 = vpop.f32.mrb[0].mxu0
      %1353 = vmatprep.mubr.f32.mxu0 0.0
      %1354 = vmatmul.mubr.f32.gmra.mrb[0].mxu0 %v1176
      %v1355 = vpop.f32.mrb[0].mxu0
      %v1356 = vadd.f32 %v1128, %v1355
      %v1357 = vpop.f32.mrb[0].mxu0
      %1358 = vmatprep.mubr.f32.mxu0 0.0
      %1359 = vmatmul.mubr.f32.gmra.mrb[0].mxu0 %v1179
      %v1360 = vpop.f32.mrb[0].mxu0
      %v1361 = vadd.f32 %v1128, %v1360
      %v1362 = vpop.f32.mrb[0].mxu0
      %1363 = vmatprep.mubr.f32.mxu0 0.0
      %1364 = vmatmul.mubr.f32.gmra.mrb[0].mxu0 %v1182
      %v1365 = vpop.f32.mrb[0].mxu0
      %v1366 = vadd.f32 %v1128, %v1365
      %v1367 = vpop.f32.mrb[0].mxu0
      %1368 = vmatprep.mubr.f32.mxu0 0.0
      %1369 = vmatmul.mubr.f32.gmra.mrb[0].mxu0 %v1185
      %v1370 = vpop.f32.mrb[0].mxu0
      %v1371 = vadd.f32 %v1128, %v1370
      %v1372 = vpop.f32.mrb[0].mxu0
      %1373 = vmatprep.mubr.f32.mxu0 0.0
      %1374 = vmatmul.mubr.f32.gmra.mrb[0].mxu0 %v1188
      %v1375 = vpop.f32.mrb[0].mxu0
      %v1376 = vadd.f32 %v1128, %v1375
      %v1377 = vpop.f32.mrb[0].mxu0
      %1378 = vmatprep.mubr.f32.mxu0 0.0
      %1379 = vmatmul.mubr.f32.gmra.mrb[0].mxu0 %v1191
      %v1380 = vpop.f32.mrb[0].mxu0
      %v1381 = vadd.f32 %v1128, %v1380
      %v1382 = vpop.f32.mrb[0].mxu0
      %1383 = vmatprep.mubr.f32.mxu0 0.0
      %1384 = vmatmul.mubr.f32.gmra.mrb[0].mxu0 %v1194
      %v1385 = vpop.f32.mrb[0].mxu0
      %v1386 = vadd.f32 %v1128, %v1385
      %v1387 = vpop.f32.mrb[0].mxu0
      %1388 = vmatprep.mubr.f32.mxu0 0.0
      %1389 = vmatmul.mubr.f32.gmra.mrb[0].mxu0 %v1197
      %v1390 = vpop.f32.mrb[0].mxu0
      %v1391 = vadd.f32 %v1128, %v1390
      %v1392 = vpop.f32.mrb[0].mxu0
      %1393 = vmatprep.mubr.f32.mxu0 0.0
      %1394 = vmatmul.mubr.f32.gmra.mrb[0].mxu0 %v1200
      %v1395 = vpop.f32.mrb[0].mxu0
      %v1396 = vadd.f32 %v1128, %v1395
      %v1397 = vpop.f32.mrb[0].mxu0
      %1398 = vmatprep.mubr.f32.mxu0 0.0
      %1399 = vmatmul.mubr.f32.gmra.mrb[0].mxu0 %v1203
      %v1400 = vpop.f32.mrb[0].mxu0
      %v1401 = vadd.f32 %v1128, %v1400
      %v1402 = vpop.f32.mrb[0].mxu0
      %1403 = vmatprep.mubr.f32.mxu0 0.0
      %1404 = vmatmul.mubr.f32.gmra.mrb[0].mxu0 %v1206
      %v1405 = vpop.f32.mrb[0].mxu0
      %v1406 = vadd.f32 %v1128, %v1405
      %v1407 = vpop.f32.mrb[0].mxu0
      %1408 = vmatprep.mubr.f32.mxu0 0.0
      %1409 = vmatmul.mubr.f32.gmra.mrb[0].mxu0 %v1209
      %v1410 = vpop.f32.mrb[0].mxu0
      %v1411 = vadd.f32 %v1128, %v1410
      %v1412 = vpop.f32.mrb[0].mxu0
      %1413 = vmatprep.mubr.f32.mxu0 0.0
      %1414 = vmatmul.mubr.f32.gmra.mrb[0].mxu0 %v1212
      %v1415 = vpop.f32.mrb[0].mxu0
      %v1416 = vadd.f32 %v1128, %v1415
      %v1417 = vpop.f32.mrb[0].mxu0
      %1418 = vdwg.mxu0
      %vm1419 = vcmp.ge.f32.partialorder %v1281, 0.0
      %vm1420 = vcmp.ge.f32.partialorder %v1286, 0.0
      %vm1421 = vcmp.ge.f32.partialorder %v1291, 0.0
      %vm1422 = vcmp.ge.f32.partialorder %v1296, 0.0
      %vm1423 = vcmp.ge.f32.partialorder %v1301, 0.0
      %vm1424 = vcmp.ge.f32.partialorder %v1306, 0.0
      %vm1425 = vcmp.ge.f32.partialorder %v1311, 0.0
      %vm1426 = vcmp.ge.f32.partialorder %v1316, 0.0
      %vm1427 = vcmp.ge.f32.partialorder %v1321, 0.0
      %vm1428 = vcmp.ge.f32.partialorder %v1326, 0.0
      %vm1429 = vcmp.ge.f32.partialorder %v1331, 0.0
      %vm1430 = vcmp.ge.f32.partialorder %v1336, 0.0
      %vm1431 = vcmp.ge.f32.partialorder %v1341, 0.0
      %vm1432 = vcmp.ge.f32.partialorder %v1346, 0.0
      %vm1433 = vcmp.ge.f32.partialorder %v1351, 0.0
      %vm1434 = vcmp.ge.f32.partialorder %v1356, 0.0
      %vm1435 = vcmp.ge.f32.partialorder %v1361, 0.0
      %vm1436 = vcmp.ge.f32.partialorder %v1366, 0.0
      %vm1437 = vcmp.ge.f32.partialorder %v1371, 0.0
      %vm1438 = vcmp.ge.f32.partialorder %v1376, 0.0
      %vm1439 = vcmp.ge.f32.partialorder %v1381, 0.0
      %vm1440 = vcmp.ge.f32.partialorder %v1386, 0.0
      %vm1441 = vcmp.ge.f32.partialorder %v1391, 0.0
      %vm1442 = vcmp.ge.f32.partialorder %v1396, 0.0
      %vm1443 = vcmp.ge.f32.partialorder %v1401, 0.0
      %vm1444 = vcmp.ge.f32.partialorder %v1406, 0.0
      %vm1445 = vcmp.ge.f32.partialorder %v1411, 0.0
      %vm1446 = vcmp.ge.f32.partialorder %v1416, 0.0
      %v1447 = vmul.f32 %v1281, 0.01
      %v1448 = vmul.f32 %v1286, 0.01
      %v1449 = vmul.f32 %v1291, 0.01
      %v1450 = vmul.f32 %v1296, 0.01
      %v1451 = vmul.f32 %v1301, 0.01
      %v1452 = vmul.f32 %v1306, 0.01
      %v1453 = vmul.f32 %v1311, 0.01
      %v1454 = vmul.f32 %v1316, 0.01
      %v1455 = vmul.f32 %v1321, 0.01
      %v1456 = vmul.f32 %v1326, 0.01
      %v1457 = vmul.f32 %v1331, 0.01
      %v1458 = vmul.f32 %v1336, 0.01
      %v1459 = vmul.f32 %v1341, 0.01
      %v1460 = vmul.f32 %v1346, 0.01
      %v1461 = vmul.f32 %v1351, 0.01
      %v1462 = vmul.f32 %v1356, 0.01
      %v1463 = vmul.f32 %v1361, 0.01
      %v1464 = vmul.f32 %v1366, 0.01
      %v1465 = vmul.f32 %v1371, 0.01
      %v1466 = vmul.f32 %v1376, 0.01
      %v1467 = vmul.f32 %v1381, 0.01
      %v1468 = vmul.f32 %v1386, 0.01
      %v1469 = vmul.f32 %v1391, 0.01
      %v1470 = vmul.f32 %v1396, 0.01
      %v1471 = vmul.f32 %v1401, 0.01
      %v1472 = vmul.f32 %v1406, 0.01
      %v1473 = vmul.f32 %v1411, 0.01
      %v1474 = vmul.f32 %v1416, 0.01
      %v1475 = vsel %vm1419, %v1281, %v1447
      %v1476 = vsel %vm1420, %v1286, %v1448
      %v1477 = vsel %vm1421, %v1291, %v1449
      %v1478 = vsel %vm1422, %v1296, %v1450
      %v1479 = vsel %vm1423, %v1301, %v1451
      %v1480 = vsel %vm1424, %v1306, %v1452
      %v1481 = vsel %vm1425, %v1311, %v1453
      %v1482 = vsel %vm1426, %v1316, %v1454
      %v1483 = vsel %vm1427, %v1321, %v1455
      %v1484 = vsel %vm1428, %v1326, %v1456
      %v1485 = vsel %vm1429, %v1331, %v1457
      %v1486 = vsel %vm1430, %v1336, %v1458
      %v1487 = vsel %vm1431, %v1341, %v1459
      %v1488 = vsel %vm1432, %v1346, %v1460
      %v1489 = vsel %vm1433, %v1351, %v1461
      %v1490 = vsel %vm1434, %v1356, %v1462
      %v1491 = vsel %vm1435, %v1361, %v1463
      %v1492 = vsel %vm1436, %v1366, %v1464
      %v1493 = vsel %vm1437, %v1371, %v1465
      %v1494 = vsel %vm1438, %v1376, %v1466
      %v1495 = vsel %vm1439, %v1381, %v1467
      %v1496 = vsel %vm1440, %v1386, %v1468
      %v1497 = vsel %vm1441, %v1391, %v1469
      %v1498 = vsel %vm1442, %v1396, %v1470
      %v1499 = vsel %vm1443, %v1401, %v1471
      %v1500 = vsel %vm1444, %v1406, %v1472
      %v1501 = vsel %vm1445, %v1411, %v1473
      %v1502 = vsel %vm1446, %v1416, %v1474
      %v1503 = vld [vmem:[%s5] sm:$0xff]
      %v1504 = vld [vmem:[%s5 + $0x8] sm:$0xff]
      %v1505 = vld [vmem:[%s5 + $0x10] sm:$0xff]
      %v1506 = vld [vmem:[%s5 + $0x18] sm:$0xff]
      %v1507 = vld [vmem:[%s5 + $0x20] sm:$0xff]
      %v1508 = vld [vmem:[%s5 + $0x28] sm:$0xff]
      %v1509 = vld [vmem:[%s5 + $0x30] sm:$0xff]
      %v1510 = vld [vmem:[%s5 + $0x38] sm:$0xff]
      %v1511 = vld [vmem:[%s5 + $0x40] sm:$0xff]
      %v1512 = vld [vmem:[%s5 + $0x48] sm:$0xff]
      %v1513 = vld [vmem:[%s5 + $0x50] sm:$0xff]
      %v1514 = vld [vmem:[%s5 + $0x58] sm:$0xff]
      %v1515 = vld [vmem:[%s5 + $0x60] sm:$0xff]
      %v1516 = vld [vmem:[%s5 + $0x68] sm:$0xff]
      %v1517 = vld [vmem:[%s5 + $0x70] sm:$0xff]
      %v1518 = vld [vmem:[%s5 + $0x78] sm:$0xff]
      %v1519 = vld [vmem:[%s5 + $0x80] sm:$0xff]
      %v1520 = vld [vmem:[%s5 + $0x88] sm:$0xff]
      %v1521 = vld [vmem:[%s5 + $0x90] sm:$0xff]
      %v1522 = vld [vmem:[%s5 + $0x98] sm:$0xff]
      %v1523 = vld [vmem:[%s5 + $0xa0] sm:$0xff]
      %v1524 = vld [vmem:[%s5 + $0xa8] sm:$0xff]
      %v1525 = vld [vmem:[%s5 + $0xb0] sm:$0xff]
      %v1526 = vld [vmem:[%s5 + $0xb8] sm:$0xff]
      %v1527 = vld [vmem:[%s5 + $0xc0] sm:$0xff]
      %v1528 = vld [vmem:[%s5 + $0xc8] sm:$0xff]
      %v1529 = vld [vmem:[%s5 + $0xd0] sm:$0xff]
      %v1530 = vld [vmem:[%s5 + $0xd8] sm:$0xff]
      %v1531 = vmul.f32 %v1475, %v1503
      %v1532 = vmul.f32 %v1476, %v1504
      %v1533 = vmul.f32 %v1477, %v1505
      %v1534 = vmul.f32 %v1478, %v1506
      %v1535 = vmul.f32 %v1479, %v1507
      %v1536 = vmul.f32 %v1480, %v1508
      %v1537 = vmul.f32 %v1481, %v1509
      %v1538 = vmul.f32 %v1482, %v1510
      %v1539 = vmul.f32 %v1483, %v1511
      %v1540 = vmul.f32 %v1484, %v1512
      %v1541 = vmul.f32 %v1485, %v1513
      %v1542 = vmul.f32 %v1486, %v1514
      %v1543 = vmul.f32 %v1487, %v1515
      %v1544 = vmul.f32 %v1488, %v1516
      %v1545 = vmul.f32 %v1489, %v1517
      %v1546 = vmul.f32 %v1490, %v1518
      %v1547 = vmul.f32 %v1491, %v1519
      %v1548 = vmul.f32 %v1492, %v1520
      %v1549 = vmul.f32 %v1493, %v1521
      %v1550 = vmul.f32 %v1494, %v1522
      %v1551 = vmul.f32 %v1495, %v1523
      %v1552 = vmul.f32 %v1496, %v1524
      %v1553 = vmul.f32 %v1497, %v1525
      %v1554 = vmul.f32 %v1498, %v1526
      %v1555 = vmul.f32 %v1499, %v1527
      %v1556 = vmul.f32 %v1500, %v1528
      %v1557 = vmul.f32 %v1501, %v1529
      %v1558 = vmul.f32 %v1502, %v1530
      %1559 = vst.msk [vmem:[#allocation3] sm:$0xff] %vm1062, %v1531
      %1560 = vst.msk [vmem:[#allocation3 + $0x8] sm:$0xff] %vm1062, %v1532
      %1561 = vst.msk [vmem:[#allocation3 + $0x10] sm:$0xff] %vm1062, %v1533
      %1562 = vst.msk [vmem:[#allocation3 + $0x18] sm:$0xff] %vm1062, %v1534
      %1563 = vst.msk [vmem:[#allocation3 + $0x20] sm:$0xff] %vm1062, %v1535
      %1564 = vst.msk [vmem:[#allocation3 + $0x28] sm:$0xff] %vm1062, %v1536
      %1565 = vst.msk [vmem:[#allocation3 + $0x30] sm:$0xff] %vm1062, %v1537
      %1566 = vst.msk [vmem:[#allocation3 + $0x38] sm:$0xff] %vm1062, %v1538
      %1567 = vst.msk [vmem:[#allocation3 + $0x40] sm:$0xff] %vm1062, %v1539
      %1568 = vst.msk [vmem:[#allocation3 + $0x48] sm:$0xff] %vm1062, %v1540
      %1569 = vst.msk [vmem:[#allocation3 + $0x50] sm:$0xff] %vm1062, %v1541
      %1570 = vst.msk [vmem:[#allocation3 + $0x58] sm:$0xff] %vm1062, %v1542
      %1571 = vst.msk [vmem:[#allocation3 + $0x60] sm:$0xff] %vm1062, %v1543
      %1572 = vst.msk [vmem:[#allocation3 + $0x68] sm:$0xff] %vm1062, %v1544
      %1573 = vst.msk [vmem:[#allocation3 + $0x70] sm:$0xff] %vm1062, %v1545
      %1574 = vst.msk [vmem:[#allocation3 + $0x78] sm:$0xff] %vm1062, %v1546
      %1575 = vst.msk [vmem:[#allocation3 + $0x80] sm:$0xff] %vm1062, %v1547
      %1576 = vst.msk [vmem:[#allocation3 + $0x88] sm:$0xff] %vm1062, %v1548
      %1577 = vst.msk [vmem:[#allocation3 + $0x90] sm:$0xff] %vm1062, %v1549
      %1578 = vst.msk [vmem:[#allocation3 + $0x98] sm:$0xff] %vm1062, %v1550
      %1579 = vst.msk [vmem:[#allocation3 + $0xa0] sm:$0xff] %vm1062, %v1551
      %1580 = vst.msk [vmem:[#allocation3 + $0xa8] sm:$0xff] %vm1062, %v1552
      %1581 = vst.msk [vmem:[#allocation3 + $0xb0] sm:$0xff] %vm1062, %v1553
      %1582 = vst.msk [vmem:[#allocation3 + $0xb8] sm:$0xff] %vm1062, %v1554
      %1583 = vst.msk [vmem:[#allocation3 + $0xc0] sm:$0xff] %vm1062, %v1555
      %1584 = vst.msk [vmem:[#allocation3 + $0xc8] sm:$0xff] %vm1062, %v1556
      %1585 = vst.msk [vmem:[#allocation3 + $0xd0] sm:$0xff] %vm1062, %v1557
      %1586 = vst.msk [vmem:[#allocation3 + $0xd8] sm:$0xff] %vm1062, %v1558
      %v1587 = vld [vmem:[#allocation2] sm:$0xff]
      %v1588 = vld [vmem:[#allocation2 + $0x8] sm:$0xff]
      %v1589 = vld [vmem:[#allocation2 + $0x10] sm:$0xff]
      %v1590 = vld [vmem:[#allocation2 + $0x18] sm:$0xff]
      %v1591 = vld [vmem:[#allocation2 + $0x20] sm:$0xff]
      %v1592 = vld [vmem:[#allocation2 + $0x28] sm:$0xff]
      %v1593 = vld [vmem:[#allocation2 + $0x30] sm:$0xff]
      %v1594 = vld [vmem:[#allocation2 + $0x38] sm:$0xff]
      %v1595 = vld [vmem:[#allocation2 + $0x40] sm:$0xff]
      %v1596 = vld [vmem:[#allocation2 + $0x48] sm:$0xff]
      %v1597 = vld [vmem:[#allocation2 + $0x50] sm:$0xff]
      %v1598 = vld [vmem:[#allocation2 + $0x58] sm:$0xff]
      %v1599 = vld [vmem:[#allocation2 + $0x60] sm:$0xff]
      %v1600 = vld [vmem:[#allocation2 + $0x68] sm:$0xff]
      %v1601 = vld [vmem:[#allocation2 + $0x70] sm:$0xff]
      %v1602 = vld [vmem:[#allocation2 + $0x78] sm:$0xff]
      %v1603 = vld [vmem:[#allocation2 + $0x80] sm:$0xff]
      %v1604 = vld [vmem:[#allocation2 + $0x88] sm:$0xff]
      %v1605 = vld [vmem:[#allocation2 + $0x90] sm:$0xff]
      %v1606 = vld [vmem:[#allocation2 + $0x98] sm:$0xff]
      %v1607 = vld [vmem:[#allocation2 + $0xa0] sm:$0xff]
      %v1608 = vld [vmem:[#allocation2 + $0xa8] sm:$0xff]
      %v1609 = vld [vmem:[#allocation2 + $0xb0] sm:$0xff]
      %v1610 = vld [vmem:[#allocation2 + $0xb8] sm:$0xff]
      %v1611 = vld [vmem:[#allocation2 + $0xc0] sm:$0xff]
      %v1612 = vld [vmem:[#allocation2 + $0xc8] sm:$0xff]
      %v1613 = vld [vmem:[#allocation2 + $0xd0] sm:$0xff]
      %v1614 = vld [vmem:[#allocation2 + $0xd8] sm:$0xff]
      %v1615 = vld [vmem:[%s6] sm:$0xff]
      %v1616 = vld [vmem:[%s6 + $0x8] sm:$0xff]
      %v1617 = vld [vmem:[%s6 + $0x10] sm:$0xff]
      %v1618 = vld [vmem:[%s6 + $0x18] sm:$0xff]
      %v1619 = vld [vmem:[%s6 + $0x20] sm:$0xff]
      %v1620 = vld [vmem:[%s6 + $0x28] sm:$0xff]
      %v1621 = vld [vmem:[%s6 + $0x30] sm:$0xff]
      %v1622 = vld [vmem:[%s6 + $0x38] sm:$0xff]
      %v1623 = vld [vmem:[%s6 + $0x40] sm:$0xff]
      %v1624 = vld [vmem:[%s6 + $0x48] sm:$0xff]
      %v1625 = vld [vmem:[%s6 + $0x50] sm:$0xff]
      %v1626 = vld [vmem:[%s6 + $0x58] sm:$0xff]
      %v1627 = vld [vmem:[#allocation3] sm:$0xff]
      %v1628 = vld [vmem:[#allocation3 + $0x8] sm:$0xff]
      %v1629 = vld [vmem:[#allocation3 + $0x10] sm:$0xff]
      %v1630 = vld [vmem:[#allocation3 + $0x18] sm:$0xff]
      %v1631 = vld [vmem:[#allocation3 + $0x20] sm:$0xff]
      %v1632 = vld [vmem:[#allocation3 + $0x28] sm:$0xff]
      %v1633 = vld [vmem:[#allocation3 + $0x30] sm:$0xff]
      %v1634 = vld [vmem:[#allocation3 + $0x38] sm:$0xff]
      %v1635 = vld [vmem:[#allocation3 + $0x40] sm:$0xff]
      %v1636 = vld [vmem:[#allocation3 + $0x48] sm:$0xff]
      %v1637 = vld [vmem:[#allocation3 + $0x50] sm:$0xff]
      %v1638 = vld [vmem:[#allocation3 + $0x58] sm:$0xff]
      %v1639 = vld [vmem:[#allocation3 + $0x60] sm:$0xff]
      %v1640 = vld [vmem:[#allocation3 + $0x68] sm:$0xff]
      %v1641 = vld [vmem:[#allocation3 + $0x70] sm:$0xff]
      %v1642 = vld [vmem:[#allocation3 + $0x78] sm:$0xff]
      %v1643 = vld [vmem:[#allocation3 + $0x80] sm:$0xff]
      %v1644 = vld [vmem:[#allocation3 + $0x88] sm:$0xff]
      %v1645 = vld [vmem:[#allocation3 + $0x90] sm:$0xff]
      %v1646 = vld [vmem:[#allocation3 + $0x98] sm:$0xff]
      %v1647 = vld [vmem:[#allocation3 + $0xa0] sm:$0xff]
      %v1648 = vld [vmem:[#allocation3 + $0xa8] sm:$0xff]
      %v1649 = vld [vmem:[#allocation3 + $0xb0] sm:$0xff]
      %v1650 = vld [vmem:[#allocation3 + $0xb8] sm:$0xff]
      %v1651 = vld [vmem:[#allocation3 + $0xc0] sm:$0xff]
      %v1652 = vld [vmem:[#allocation3 + $0xc8] sm:$0xff]
      %v1653 = vld [vmem:[#allocation3 + $0xd0] sm:$0xff]
      %v1654 = vld [vmem:[#allocation3 + $0xd8] sm:$0xff]
      %s1655 = scalar_lea.vmem %s6, 96
      %v1656 = vld [vmem:[%s1655] sm:$0xff]
      %v1657 = vld [vmem:[%s1655 + $0x8] sm:$0xff]
      %v1658 = vld [vmem:[%s1655 + $0x10] sm:$0xff]
      %v1659 = vld [vmem:[%s1655 + $0x18] sm:$0xff]
      %v1660 = vld [vmem:[%s1655 + $0x20] sm:$0xff]
      %v1661 = vld [vmem:[%s1655 + $0x28] sm:$0xff]
      %v1662 = vld [vmem:[%s1655 + $0x30] sm:$0xff]
      %v1663 = vld [vmem:[%s1655 + $0x38] sm:$0xff]
      %v1664 = vld [vmem:[%s1655 + $0x40] sm:$0xff]
      %v1665 = vld [vmem:[%s1655 + $0x48] sm:$0xff]
      %v1666 = vld [vmem:[%s1655 + $0x50] sm:$0xff]
      %v1667 = vld [vmem:[%s1655 + $0x58] sm:$0xff]
      %v1669 = vsel %vm1062, %v1627, 0
      %v1672 = vsel %vm1062, %v1628, 0
      %v1675 = vsel %vm1062, %v1629, 0
      %v1678 = vsel %vm1062, %v1630, 0
      %v1681 = vsel %vm1062, %v1631, 0
      %v1684 = vsel %vm1062, %v1632, 0
      %v1687 = vsel %vm1062, %v1633, 0
      %v1690 = vsel %vm1062, %v1634, 0
      %v1693 = vsel %vm1062, %v1635, 0
      %v1696 = vsel %vm1062, %v1636, 0
      %v1699 = vsel %vm1062, %v1637, 0
      %v1702 = vsel %vm1062, %v1638, 0
      %v1705 = vsel %vm1062, %v1639, 0
      %v1708 = vsel %vm1062, %v1640, 0
      %v1711 = vsel %vm1062, %v1641, 0
      %v1714 = vsel %vm1062, %v1642, 0
      %v1717 = vsel %vm1062, %v1643, 0
      %v1720 = vsel %vm1062, %v1644, 0
      %v1723 = vsel %vm1062, %v1645, 0
      %v1726 = vsel %vm1062, %v1646, 0
      %v1729 = vsel %vm1062, %v1647, 0
      %v1732 = vsel %vm1062, %v1648, 0
      %v1735 = vsel %vm1062, %v1649, 0
      %v1738 = vsel %vm1062, %v1650, 0
      %v1741 = vsel %vm1062, %v1651, 0
      %v1744 = vsel %vm1062, %v1652, 0
      %v1747 = vsel %vm1062, %v1653, 0
      %v1750 = vsel %vm1062, %v1654, 0
      %1752 = vmatprep.subr.mxu0 0.0
      %1753 = vmatpush1.msra.mxu0 %v1656
      %1754 = vmatprep.subr.mxu0 0.0
      %1755 = vmatpush1.msra.mxu0 %v1657
      %1756 = vmatprep.subr.mxu0 0.0
      %1757 = vmatpush1.msra.mxu0 %v1658
      %1758 = vmatprep.subr.mxu0 0.0
      %1759 = vmatpush1.msra.mxu0 %v1659
      %1760 = vmatprep.subr.mxu0 0.0
      %1761 = vmatpush1.msra.mxu0 %v1660
      %1762 = vmatprep.subr.mxu0 0.0
      %1763 = vmatpush1.msra.mxu0 %v1661
      %1764 = vmatprep.subr.mxu0 0.0
      %1765 = vmatpush1.msra.mxu0 %v1662
      %1766 = vmatprep.subr.mxu0 0.0
      %1767 = vmatpush1.msra.mxu0 %v1663
      %1768 = vmatprep.subr.mxu0 0.0
      %1769 = vmatpush1.msra.mxu0 %v1664
      %1770 = vmatprep.subr.mxu0 0.0
      %1771 = vmatpush1.msra.mxu0 %v1665
      %1772 = vmatprep.subr.mxu0 0.0
      %1773 = vmatpush1.msra.mxu0 %v1666
      %1774 = vmatprep.subr.mxu0 0.0
      %1775 = vmatpush1.msra.mxu0 %v1667
      %1776 = vmatprep.subr.mxu0 0.0
      %1777 = vmatpush1.msra.mxu0 0.0
      %1778 = vmatprep.subr.mxu0 0.0
      %1779 = vmatpush1.msra.mxu0 0.0
      %1780 = vmatprep.subr.mxu0 0.0
      %1781 = vmatpush1.msra.mxu0 0.0
      %1782 = vmatprep.subr.mxu0 0.0
      %1783 = vmatpush1.msra.mxu0 0.0
      %1784 = vmatprep.subr.mxu0 0.0
      %1785 = vmatpush1.msra.mxu0 0.0
      %1786 = vmatprep.subr.mxu0 0.0
      %1787 = vmatpush1.msra.mxu0 0.0
      %1788 = vmatprep.subr.mxu0 0.0
      %1789 = vmatpush1.msra.mxu0 0.0
      %1790 = vmatprep.subr.mxu0 0.0
      %1791 = vmatpush1.msra.mxu0 0.0
      %1792 = vmatprep.subr.mxu0 0.0
      %1793 = vmatpush1.msra.mxu0 0.0
      %1794 = vmatprep.subr.mxu0 0.0
      %1795 = vmatpush1.msra.mxu0 0.0
      %1796 = vmatprep.subr.mxu0 0.0
      %1797 = vmatpush1.msra.mxu0 0.0
      %1798 = vmatprep.subr.mxu0 0.0
      %1799 = vmatpush1.msra.mxu0 0.0
      %1800 = vmatprep.subr.mxu0 0.0
      %1801 = vmatpush1.msra.mxu0 0.0
      %1802 = vmatprep.subr.mxu0 0.0
      %1803 = vmatpush1.msra.mxu0 0.0
      %1804 = vmatprep.subr.mxu0 0.0
      %1805 = vmatpush1.msra.mxu0 0.0
      %1806 = vmatprep.subr.mxu0 0.0
      %1807 = vmatpush1.msra.mxu0 0.0
      %1808 = vmatprep.subr.mxu0 0.0
      %1809 = vmatpush1.msra.mxu0 0.0
      %1810 = vmatprep.subr.mxu0 0.0
      %1811 = vmatpush1.msra.mxu0 0.0
      %1812 = vmatprep.subr.mxu0 0.0
      %1813 = vmatpush1.msra.mxu0 0.0
      %1814 = vmatprep.subr.mxu0 0.0
      %1815 = vmatpush1.msra.mxu0 0.0
      %1816 = vmatprep.mubr.f32.mxu0 0.0
      %1817 = vmatmul.mubr.f32.gmra.mrb[0].mxu0 %v1669
      %v1818 = vpop.f32.mrb[0].mxu0
      %v1819 = vadd.f32 0.0, %v1818
      %v1820 = vpop.f32.mrb[0].mxu0
      %1821 = vmatprep.mubr.f32.mxu0 0.0
      %1822 = vmatmul.mubr.f32.gmra.mrb[0].mxu0 %v1672
      %v1823 = vpop.f32.mrb[0].mxu0
      %v1824 = vadd.f32 0.0, %v1823
      %v1825 = vpop.f32.mrb[0].mxu0
      %1826 = vmatprep.mubr.f32.mxu0 0.0
      %1827 = vmatmul.mubr.f32.gmra.mrb[0].mxu0 %v1675
      %v1828 = vpop.f32.mrb[0].mxu0
      %v1829 = vadd.f32 0.0, %v1828
      %v1830 = vpop.f32.mrb[0].mxu0
      %1831 = vmatprep.mubr.f32.mxu0 0.0
      %1832 = vmatmul.mubr.f32.gmra.mrb[0].mxu0 %v1678
      %v1833 = vpop.f32.mrb[0].mxu0
      %v1834 = vadd.f32 0.0, %v1833
      %v1835 = vpop.f32.mrb[0].mxu0
      %1836 = vmatprep.mubr.f32.mxu0 0.0
      %1837 = vmatmul.mubr.f32.gmra.mrb[0].mxu0 %v1681
      %v1838 = vpop.f32.mrb[0].mxu0
      %v1839 = vadd.f32 0.0, %v1838
      %v1840 = vpop.f32.mrb[0].mxu0
      %1841 = vmatprep.mubr.f32.mxu0 0.0
      %1842 = vmatmul.mubr.f32.gmra.mrb[0].mxu0 %v1684
      %v1843 = vpop.f32.mrb[0].mxu0
      %v1844 = vadd.f32 0.0, %v1843
      %v1845 = vpop.f32.mrb[0].mxu0
      %1846 = vmatprep.mubr.f32.mxu0 0.0
      %1847 = vmatmul.mubr.f32.gmra.mrb[0].mxu0 %v1687
      %v1848 = vpop.f32.mrb[0].mxu0
      %v1849 = vadd.f32 0.0, %v1848
      %v1850 = vpop.f32.mrb[0].mxu0
      %1851 = vmatprep.mubr.f32.mxu0 0.0
      %1852 = vmatmul.mubr.f32.gmra.mrb[0].mxu0 %v1690
      %v1853 = vpop.f32.mrb[0].mxu0
      %v1854 = vadd.f32 0.0, %v1853
      %v1855 = vpop.f32.mrb[0].mxu0
      %1856 = vmatprep.mubr.f32.mxu0 0.0
      %1857 = vmatmul.mubr.f32.gmra.mrb[0].mxu0 %v1693
      %v1858 = vpop.f32.mrb[0].mxu0
      %v1859 = vadd.f32 0.0, %v1858
      %v1860 = vpop.f32.mrb[0].mxu0
      %1861 = vmatprep.mubr.f32.mxu0 0.0
      %1862 = vmatmul.mubr.f32.gmra.mrb[0].mxu0 %v1696
      %v1863 = vpop.f32.mrb[0].mxu0
      %v1864 = vadd.f32 0.0, %v1863
      %v1865 = vpop.f32.mrb[0].mxu0
      %1866 = vmatprep.mubr.f32.mxu0 0.0
      %1867 = vmatmul.mubr.f32.gmra.mrb[0].mxu0 %v1699
      %v1868 = vpop.f32.mrb[0].mxu0
      %v1869 = vadd.f32 0.0, %v1868
      %v1870 = vpop.f32.mrb[0].mxu0
      %1871 = vmatprep.mubr.f32.mxu0 0.0
      %1872 = vmatmul.mubr.f32.gmra.mrb[0].mxu0 %v1702
      %v1873 = vpop.f32.mrb[0].mxu0
      %v1874 = vadd.f32 0.0, %v1873
      %v1875 = vpop.f32.mrb[0].mxu0
      %1876 = vmatprep.mubr.f32.mxu0 0.0
      %1877 = vmatmul.mubr.f32.gmra.mrb[0].mxu0 %v1705
      %v1878 = vpop.f32.mrb[0].mxu0
      %v1879 = vadd.f32 0.0, %v1878
      %v1880 = vpop.f32.mrb[0].mxu0
      %1881 = vmatprep.mubr.f32.mxu0 0.0
      %1882 = vmatmul.mubr.f32.gmra.mrb[0].mxu0 %v1708
      %v1883 = vpop.f32.mrb[0].mxu0
      %v1884 = vadd.f32 0.0, %v1883
      %v1885 = vpop.f32.mrb[0].mxu0
      %1886 = vmatprep.mubr.f32.mxu0 0.0
      %1887 = vmatmul.mubr.f32.gmra.mrb[0].mxu0 %v1711
      %v1888 = vpop.f32.mrb[0].mxu0
      %v1889 = vadd.f32 0.0, %v1888
      %v1890 = vpop.f32.mrb[0].mxu0
      %1891 = vmatprep.mubr.f32.mxu0 0.0
      %1892 = vmatmul.mubr.f32.gmra.mrb[0].mxu0 %v1714
      %v1893 = vpop.f32.mrb[0].mxu0
      %v1894 = vadd.f32 0.0, %v1893
      %v1895 = vpop.f32.mrb[0].mxu0
      %1896 = vmatprep.mubr.f32.mxu0 0.0
      %1897 = vmatmul.mubr.f32.gmra.mrb[0].mxu0 %v1717
      %v1898 = vpop.f32.mrb[0].mxu0
      %v1899 = vadd.f32 0.0, %v1898
      %v1900 = vpop.f32.mrb[0].mxu0
      %1901 = vmatprep.mubr.f32.mxu0 0.0
      %1902 = vmatmul.mubr.f32.gmra.mrb[0].mxu0 %v1720
      %v1903 = vpop.f32.mrb[0].mxu0
      %v1904 = vadd.f32 0.0, %v1903
      %v1905 = vpop.f32.mrb[0].mxu0
      %1906 = vmatprep.mubr.f32.mxu0 0.0
      %1907 = vmatmul.mubr.f32.gmra.mrb[0].mxu0 %v1723
      %v1908 = vpop.f32.mrb[0].mxu0
      %v1909 = vadd.f32 0.0, %v1908
      %v1910 = vpop.f32.mrb[0].mxu0
      %1911 = vmatprep.mubr.f32.mxu0 0.0
      %1912 = vmatmul.mubr.f32.gmra.mrb[0].mxu0 %v1726
      %v1913 = vpop.f32.mrb[0].mxu0
      %v1914 = vadd.f32 0.0, %v1913
      %v1915 = vpop.f32.mrb[0].mxu0
      %1916 = vmatprep.mubr.f32.mxu0 0.0
      %1917 = vmatmul.mubr.f32.gmra.mrb[0].mxu0 %v1729
      %v1918 = vpop.f32.mrb[0].mxu0
      %v1919 = vadd.f32 0.0, %v1918
      %v1920 = vpop.f32.mrb[0].mxu0
      %1921 = vmatprep.mubr.f32.mxu0 0.0
      %1922 = vmatmul.mubr.f32.gmra.mrb[0].mxu0 %v1732
      %v1923 = vpop.f32.mrb[0].mxu0
      %v1924 = vadd.f32 0.0, %v1923
      %v1925 = vpop.f32.mrb[0].mxu0
      %1926 = vmatprep.mubr.f32.mxu0 0.0
      %1927 = vmatmul.mubr.f32.gmra.mrb[0].mxu0 %v1735
      %v1928 = vpop.f32.mrb[0].mxu0
      %v1929 = vadd.f32 0.0, %v1928
      %v1930 = vpop.f32.mrb[0].mxu0
      %1931 = vmatprep.mubr.f32.mxu0 0.0
      %1932 = vmatmul.mubr.f32.gmra.mrb[0].mxu0 %v1738
      %v1933 = vpop.f32.mrb[0].mxu0
      %v1934 = vadd.f32 0.0, %v1933
      %v1935 = vpop.f32.mrb[0].mxu0
      %1936 = vmatprep.mubr.f32.mxu0 0.0
      %1937 = vmatmul.mubr.f32.gmra.mrb[0].mxu0 %v1741
      %v1938 = vpop.f32.mrb[0].mxu0
      %v1939 = vadd.f32 0.0, %v1938
      %v1940 = vpop.f32.mrb[0].mxu0
      %1941 = vmatprep.mubr.f32.mxu0 0.0
      %1942 = vmatmul.mubr.f32.gmra.mrb[0].mxu0 %v1744
      %v1943 = vpop.f32.mrb[0].mxu0
      %v1944 = vadd.f32 0.0, %v1943
      %v1945 = vpop.f32.mrb[0].mxu0
      %1946 = vmatprep.mubr.f32.mxu0 0.0
      %1947 = vmatmul.mubr.f32.gmra.mrb[0].mxu0 %v1747
      %v1948 = vpop.f32.mrb[0].mxu0
      %v1949 = vadd.f32 0.0, %v1948
      %v1950 = vpop.f32.mrb[0].mxu0
      %1951 = vmatprep.mubr.f32.mxu0 0.0
      %1952 = vmatmul.mubr.f32.gmra.mrb[0].mxu0 %v1750
      %v1953 = vpop.f32.mrb[0].mxu0
      %v1954 = vadd.f32 0.0, %v1953
      %v1955 = vpop.f32.mrb[0].mxu0
      %1956 = vdwg.mxu0
      %v1958 = vsel %vm1062, %v1587, 0
      %v1961 = vsel %vm1062, %v1588, 0
      %v1964 = vsel %vm1062, %v1589, 0
      %v1967 = vsel %vm1062, %v1590, 0
      %v1970 = vsel %vm1062, %v1591, 0
      %v1973 = vsel %vm1062, %v1592, 0
      %v1976 = vsel %vm1062, %v1593, 0
      %v1979 = vsel %vm1062, %v1594, 0
      %v1982 = vsel %vm1062, %v1595, 0
      %v1985 = vsel %vm1062, %v1596, 0
      %v1988 = vsel %vm1062, %v1597, 0
      %v1991 = vsel %vm1062, %v1598, 0
      %v1994 = vsel %vm1062, %v1599, 0
      %v1997 = vsel %vm1062, %v1600, 0
      %v2000 = vsel %vm1062, %v1601, 0
      %v2003 = vsel %vm1062, %v1602, 0
      %v2006 = vsel %vm1062, %v1603, 0
      %v2009 = vsel %vm1062, %v1604, 0
      %v2012 = vsel %vm1062, %v1605, 0
      %v2015 = vsel %vm1062, %v1606, 0
      %v2018 = vsel %vm1062, %v1607, 0
      %v2021 = vsel %vm1062, %v1608, 0
      %v2024 = vsel %vm1062, %v1609, 0
      %v2027 = vsel %vm1062, %v1610, 0
      %v2030 = vsel %vm1062, %v1611, 0
      %v2033 = vsel %vm1062, %v1612, 0
      %v2036 = vsel %vm1062, %v1613, 0
      %v2039 = vsel %vm1062, %v1614, 0
      %2041 = vmatprep.subr.mxu0 0.0
      %2042 = vmatpush1.msra.mxu0 %v1615
      %2043 = vmatprep.subr.mxu0 0.0
      %2044 = vmatpush1.msra.mxu0 %v1616
      %2045 = vmatprep.subr.mxu0 0.0
      %2046 = vmatpush1.msra.mxu0 %v1617
      %2047 = vmatprep.subr.mxu0 0.0
      %2048 = vmatpush1.msra.mxu0 %v1618
      %2049 = vmatprep.subr.mxu0 0.0
      %2050 = vmatpush1.msra.mxu0 %v1619
      %2051 = vmatprep.subr.mxu0 0.0
      %2052 = vmatpush1.msra.mxu0 %v1620
      %2053 = vmatprep.subr.mxu0 0.0
      %2054 = vmatpush1.msra.mxu0 %v1621
      %2055 = vmatprep.subr.mxu0 0.0
      %2056 = vmatpush1.msra.mxu0 %v1622
      %2057 = vmatprep.subr.mxu0 0.0
      %2058 = vmatpush1.msra.mxu0 %v1623
      %2059 = vmatprep.subr.mxu0 0.0
      %2060 = vmatpush1.msra.mxu0 %v1624
      %2061 = vmatprep.subr.mxu0 0.0
      %2062 = vmatpush1.msra.mxu0 %v1625
      %2063 = vmatprep.subr.mxu0 0.0
      %2064 = vmatpush1.msra.mxu0 %v1626
      %2065 = vmatprep.subr.mxu0 0.0
      %2066 = vmatpush1.msra.mxu0 0.0
      %2067 = vmatprep.subr.mxu0 0.0
      %2068 = vmatpush1.msra.mxu0 0.0
      %2069 = vmatprep.subr.mxu0 0.0
      %2070 = vmatpush1.msra.mxu0 0.0
      %2071 = vmatprep.subr.mxu0 0.0
      %2072 = vmatpush1.msra.mxu0 0.0
      %2073 = vmatprep.subr.mxu0 0.0
      %2074 = vmatpush1.msra.mxu0 0.0
      %2075 = vmatprep.subr.mxu0 0.0
      %2076 = vmatpush1.msra.mxu0 0.0
      %2077 = vmatprep.subr.mxu0 0.0
      %2078 = vmatpush1.msra.mxu0 0.0
      %2079 = vmatprep.subr.mxu0 0.0
      %2080 = vmatpush1.msra.mxu0 0.0
      %2081 = vmatprep.subr.mxu0 0.0
      %2082 = vmatpush1.msra.mxu0 0.0
      %2083 = vmatprep.subr.mxu0 0.0
      %2084 = vmatpush1.msra.mxu0 0.0
      %2085 = vmatprep.subr.mxu0 0.0
      %2086 = vmatpush1.msra.mxu0 0.0
      %2087 = vmatprep.subr.mxu0 0.0
      %2088 = vmatpush1.msra.mxu0 0.0
      %2089 = vmatprep.subr.mxu0 0.0
      %2090 = vmatpush1.msra.mxu0 0.0
      %2091 = vmatprep.subr.mxu0 0.0
      %2092 = vmatpush1.msra.mxu0 0.0
      %2093 = vmatprep.subr.mxu0 0.0
      %2094 = vmatpush1.msra.mxu0 0.0
      %2095 = vmatprep.subr.mxu0 0.0
      %2096 = vmatpush1.msra.mxu0 0.0
      %2097 = vmatprep.subr.mxu0 0.0
      %2098 = vmatpush1.msra.mxu0 0.0
      %2099 = vmatprep.subr.mxu0 0.0
      %2100 = vmatpush1.msra.mxu0 0.0
      %2101 = vmatprep.subr.mxu0 0.0
      %2102 = vmatpush1.msra.mxu0 0.0
      %2103 = vmatprep.subr.mxu0 0.0
      %2104 = vmatpush1.msra.mxu0 0.0
      %2105 = vmatprep.mubr.f32.mxu0 0.0
      %2106 = vmatmul.mubr.f32.gmra.mrb[0].mxu0 %v1958
      %v2107 = vpop.f32.mrb[0].mxu0
      %v2108 = vadd.f32 %v1819, %v2107
      %v2109 = vpop.f32.mrb[0].mxu0
      %2110 = vmatprep.mubr.f32.mxu0 0.0
      %2111 = vmatmul.mubr.f32.gmra.mrb[0].mxu0 %v1961
      %v2112 = vpop.f32.mrb[0].mxu0
      %v2113 = vadd.f32 %v1824, %v2112
      %v2114 = vpop.f32.mrb[0].mxu0
      %2115 = vmatprep.mubr.f32.mxu0 0.0
      %2116 = vmatmul.mubr.f32.gmra.mrb[0].mxu0 %v1964
      %v2117 = vpop.f32.mrb[0].mxu0
      %v2118 = vadd.f32 %v1829, %v2117
      %v2119 = vpop.f32.mrb[0].mxu0
      %2120 = vmatprep.mubr.f32.mxu0 0.0
      %2121 = vmatmul.mubr.f32.gmra.mrb[0].mxu0 %v1967
      %v2122 = vpop.f32.mrb[0].mxu0
      %v2123 = vadd.f32 %v1834, %v2122
      %v2124 = vpop.f32.mrb[0].mxu0
      %2125 = vmatprep.mubr.f32.mxu0 0.0
      %2126 = vmatmul.mubr.f32.gmra.mrb[0].mxu0 %v1970
      %v2127 = vpop.f32.mrb[0].mxu0
      %v2128 = vadd.f32 %v1839, %v2127
      %v2129 = vpop.f32.mrb[0].mxu0
      %2130 = vmatprep.mubr.f32.mxu0 0.0
      %2131 = vmatmul.mubr.f32.gmra.mrb[0].mxu0 %v1973
      %v2132 = vpop.f32.mrb[0].mxu0
      %v2133 = vadd.f32 %v1844, %v2132
      %v2134 = vpop.f32.mrb[0].mxu0
      %2135 = vmatprep.mubr.f32.mxu0 0.0
      %2136 = vmatmul.mubr.f32.gmra.mrb[0].mxu0 %v1976
      %v2137 = vpop.f32.mrb[0].mxu0
      %v2138 = vadd.f32 %v1849, %v2137
      %v2139 = vpop.f32.mrb[0].mxu0
      %2140 = vmatprep.mubr.f32.mxu0 0.0
      %2141 = vmatmul.mubr.f32.gmra.mrb[0].mxu0 %v1979
      %v2142 = vpop.f32.mrb[0].mxu0
      %v2143 = vadd.f32 %v1854, %v2142
      %v2144 = vpop.f32.mrb[0].mxu0
      %2145 = vmatprep.mubr.f32.mxu0 0.0
      %2146 = vmatmul.mubr.f32.gmra.mrb[0].mxu0 %v1982
      %v2147 = vpop.f32.mrb[0].mxu0
      %v2148 = vadd.f32 %v1859, %v2147
      %v2149 = vpop.f32.mrb[0].mxu0
      %2150 = vmatprep.mubr.f32.mxu0 0.0
      %2151 = vmatmul.mubr.f32.gmra.mrb[0].mxu0 %v1985
      %v2152 = vpop.f32.mrb[0].mxu0
      %v2153 = vadd.f32 %v1864, %v2152
      %v2154 = vpop.f32.mrb[0].mxu0
      %2155 = vmatprep.mubr.f32.mxu0 0.0
      %2156 = vmatmul.mubr.f32.gmra.mrb[0].mxu0 %v1988
      %v2157 = vpop.f32.mrb[0].mxu0
      %v2158 = vadd.f32 %v1869, %v2157
      %v2159 = vpop.f32.mrb[0].mxu0
      %2160 = vmatprep.mubr.f32.mxu0 0.0
      %2161 = vmatmul.mubr.f32.gmra.mrb[0].mxu0 %v1991
      %v2162 = vpop.f32.mrb[0].mxu0
      %v2163 = vadd.f32 %v1874, %v2162
      %v2164 = vpop.f32.mrb[0].mxu0
      %2165 = vmatprep.mubr.f32.mxu0 0.0
      %2166 = vmatmul.mubr.f32.gmra.mrb[0].mxu0 %v1994
      %v2167 = vpop.f32.mrb[0].mxu0
      %v2168 = vadd.f32 %v1879, %v2167
      %v2169 = vpop.f32.mrb[0].mxu0
      %2170 = vmatprep.mubr.f32.mxu0 0.0
      %2171 = vmatmul.mubr.f32.gmra.mrb[0].mxu0 %v1997
      %v2172 = vpop.f32.mrb[0].mxu0
      %v2173 = vadd.f32 %v1884, %v2172
      %v2174 = vpop.f32.mrb[0].mxu0
      %2175 = vmatprep.mubr.f32.mxu0 0.0
      %2176 = vmatmul.mubr.f32.gmra.mrb[0].mxu0 %v2000
      %v2177 = vpop.f32.mrb[0].mxu0
      %v2178 = vadd.f32 %v1889, %v2177
      %v2179 = vpop.f32.mrb[0].mxu0
      %2180 = vmatprep.mubr.f32.mxu0 0.0
      %2181 = vmatmul.mubr.f32.gmra.mrb[0].mxu0 %v2003
      %v2182 = vpop.f32.mrb[0].mxu0
      %v2183 = vadd.f32 %v1894, %v2182
      %v2184 = vpop.f32.mrb[0].mxu0
      %2185 = vmatprep.mubr.f32.mxu0 0.0
      %2186 = vmatmul.mubr.f32.gmra.mrb[0].mxu0 %v2006
      %v2187 = vpop.f32.mrb[0].mxu0
      %v2188 = vadd.f32 %v1899, %v2187
      %v2189 = vpop.f32.mrb[0].mxu0
      %2190 = vmatprep.mubr.f32.mxu0 0.0
      %2191 = vmatmul.mubr.f32.gmra.mrb[0].mxu0 %v2009
      %v2192 = vpop.f32.mrb[0].mxu0
      %v2193 = vadd.f32 %v1904, %v2192
      %v2194 = vpop.f32.mrb[0].mxu0
      %2195 = vmatprep.mubr.f32.mxu0 0.0
      %2196 = vmatmul.mubr.f32.gmra.mrb[0].mxu0 %v2012
      %v2197 = vpop.f32.mrb[0].mxu0
      %v2198 = vadd.f32 %v1909, %v2197
      %v2199 = vpop.f32.mrb[0].mxu0
      %2200 = vmatprep.mubr.f32.mxu0 0.0
      %2201 = vmatmul.mubr.f32.gmra.mrb[0].mxu0 %v2015
      %v2202 = vpop.f32.mrb[0].mxu0
      %v2203 = vadd.f32 %v1914, %v2202
      %v2204 = vpop.f32.mrb[0].mxu0
      %2205 = vmatprep.mubr.f32.mxu0 0.0
      %2206 = vmatmul.mubr.f32.gmra.mrb[0].mxu0 %v2018
      %v2207 = vpop.f32.mrb[0].mxu0
      %v2208 = vadd.f32 %v1919, %v2207
      %v2209 = vpop.f32.mrb[0].mxu0
      %2210 = vmatprep.mubr.f32.mxu0 0.0
      %2211 = vmatmul.mubr.f32.gmra.mrb[0].mxu0 %v2021
      %v2212 = vpop.f32.mrb[0].mxu0
      %v2213 = vadd.f32 %v1924, %v2212
      %v2214 = vpop.f32.mrb[0].mxu0
      %2215 = vmatprep.mubr.f32.mxu0 0.0
      %2216 = vmatmul.mubr.f32.gmra.mrb[0].mxu0 %v2024
      %v2217 = vpop.f32.mrb[0].mxu0
      %v2218 = vadd.f32 %v1929, %v2217
      %v2219 = vpop.f32.mrb[0].mxu0
      %2220 = vmatprep.mubr.f32.mxu0 0.0
      %2221 = vmatmul.mubr.f32.gmra.mrb[0].mxu0 %v2027
      %v2222 = vpop.f32.mrb[0].mxu0
      %v2223 = vadd.f32 %v1934, %v2222
      %v2224 = vpop.f32.mrb[0].mxu0
      %2225 = vmatprep.mubr.f32.mxu0 0.0
      %2226 = vmatmul.mubr.f32.gmra.mrb[0].mxu0 %v2030
      %v2227 = vpop.f32.mrb[0].mxu0
      %v2228 = vadd.f32 %v1939, %v2227
      %v2229 = vpop.f32.mrb[0].mxu0
      %2230 = vmatprep.mubr.f32.mxu0 0.0
      %2231 = vmatmul.mubr.f32.gmra.mrb[0].mxu0 %v2033
      %v2232 = vpop.f32.mrb[0].mxu0
      %v2233 = vadd.f32 %v1944, %v2232
      %v2234 = vpop.f32.mrb[0].mxu0
      %2235 = vmatprep.mubr.f32.mxu0 0.0
      %2236 = vmatmul.mubr.f32.gmra.mrb[0].mxu0 %v2036
      %v2237 = vpop.f32.mrb[0].mxu0
      %v2238 = vadd.f32 %v1949, %v2237
      %v2239 = vpop.f32.mrb[0].mxu0
      %2240 = vmatprep.mubr.f32.mxu0 0.0
      %2241 = vmatmul.mubr.f32.gmra.mrb[0].mxu0 %v2039
      %v2242 = vpop.f32.mrb[0].mxu0
      %v2243 = vadd.f32 %v1954, %v2242
      %v2244 = vpop.f32.mrb[0].mxu0
      %2245 = vdwg.mxu0
      %v2246 = vld [vmem:[#allocation2 + $0x10] sm:$0xff]
      %v2247 = vld [vmem:[#allocation2 + $0x18] sm:$0xff]
      %v2248 = vld [vmem:[#allocation2 + $0x20] sm:$0xff]
      %v2249 = vld [vmem:[#allocation2 + $0x28] sm:$0xff]
      %v2250 = vld [vmem:[#allocation2 + $0x30] sm:$0xff]
      %v2251 = vld [vmem:[#allocation2 + $0x38] sm:$0xff]
      %v2252 = vld [vmem:[#allocation2 + $0x40] sm:$0xff]
      %v2253 = vld [vmem:[#allocation2 + $0x48] sm:$0xff]
      %v2254 = vld [vmem:[#allocation2 + $0x50] sm:$0xff]
      %v2255 = vld [vmem:[#allocation2 + $0x58] sm:$0xff]
      %v2256 = vld [vmem:[#allocation2 + $0x60] sm:$0xff]
      %v2257 = vld [vmem:[#allocation2 + $0x68] sm:$0xff]
      %v2258 = vld [vmem:[#allocation2 + $0x70] sm:$0xff]
      %v2259 = vld [vmem:[#allocation2 + $0x78] sm:$0xff]
      %v2260 = vld [vmem:[#allocation2 + $0x80] sm:$0xff]
      %v2261 = vld [vmem:[#allocation2 + $0x88] sm:$0xff]
      %v2262 = vld [vmem:[#allocation2 + $0x90] sm:$0xff]
      %v2263 = vld [vmem:[#allocation2 + $0x98] sm:$0xff]
      %v2264 = vld [vmem:[#allocation2 + $0xa0] sm:$0xff]
      %v2265 = vld [vmem:[#allocation2 + $0xa8] sm:$0xff]
      %v2266 = vld [vmem:[#allocation2 + $0xb0] sm:$0xff]
      %v2267 = vld [vmem:[#allocation2 + $0xb8] sm:$0xff]
      %v2268 = vld [vmem:[#allocation2 + $0xc0] sm:$0xff]
      %v2269 = vld [vmem:[#allocation2 + $0xc8] sm:$0xff]
      %v2270 = vld [vmem:[#allocation2 + $0xd0] sm:$0xff]
      %v2271 = vld [vmem:[#allocation2 + $0xd8] sm:$0xff]
      %v2272 = vld [vmem:[#allocation2 + $0xe0] sm:$0xff]
      %v2273 = vld [vmem:[#allocation2 + $0xe8] sm:$0xff]
      %s2274 = scalar_lea.vmem %s6, 192
      %v2275 = vld [vmem:[%s2274] sm:$0xff]
      %v2276 = vld [vmem:[%s2274 + $0x8] sm:$0xff]
      %v2277 = vld [vmem:[%s2274 + $0x10] sm:$0xff]
      %v2278 = vld [vmem:[%s2274 + $0x18] sm:$0xff]
      %v2279 = vld [vmem:[%s2274 + $0x20] sm:$0xff]
      %v2280 = vld [vmem:[%s2274 + $0x28] sm:$0xff]
      %v2281 = vld [vmem:[%s2274 + $0x30] sm:$0xff]
      %v2282 = vld [vmem:[%s2274 + $0x38] sm:$0xff]
      %v2283 = vld [vmem:[%s2274 + $0x40] sm:$0xff]
      %v2284 = vld [vmem:[%s2274 + $0x48] sm:$0xff]
      %v2285 = vld [vmem:[%s2274 + $0x50] sm:$0xff]
      %v2286 = vld [vmem:[%s2274 + $0x58] sm:$0xff]
      %v2288 = vsel %vm1062, %v2246, 0
      %v2291 = vsel %vm1062, %v2247, 0
      %v2294 = vsel %vm1062, %v2248, 0
      %v2297 = vsel %vm1062, %v2249, 0
      %v2300 = vsel %vm1062, %v2250, 0
      %v2303 = vsel %vm1062, %v2251, 0
      %v2306 = vsel %vm1062, %v2252, 0
      %v2309 = vsel %vm1062, %v2253, 0
      %v2312 = vsel %vm1062, %v2254, 0
      %v2315 = vsel %vm1062, %v2255, 0
      %v2318 = vsel %vm1062, %v2256, 0
      %v2321 = vsel %vm1062, %v2257, 0
      %v2324 = vsel %vm1062, %v2258, 0
      %v2327 = vsel %vm1062, %v2259, 0
      %v2330 = vsel %vm1062, %v2260, 0
      %v2333 = vsel %vm1062, %v2261, 0
      %v2336 = vsel %vm1062, %v2262, 0
      %v2339 = vsel %vm1062, %v2263, 0
      %v2342 = vsel %vm1062, %v2264, 0
      %v2345 = vsel %vm1062, %v2265, 0
      %v2348 = vsel %vm1062, %v2266, 0
      %v2351 = vsel %vm1062, %v2267, 0
      %v2354 = vsel %vm1062, %v2268, 0
      %v2357 = vsel %vm1062, %v2269, 0
      %v2360 = vsel %vm1062, %v2270, 0
      %v2363 = vsel %vm1062, %v2271, 0
      %v2366 = vsel %vm1062, %v2272, 0
      %v2369 = vsel %vm1062, %v2273, 0
      %2371 = vmatprep.subr.mxu0 0.0
      %2372 = vmatpush1.msra.mxu0 %v2275
      %2373 = vmatprep.subr.mxu0 0.0
      %2374 = vmatpush1.msra.mxu0 %v2276
      %2375 = vmatprep.subr.mxu0 0.0
      %2376 = vmatpush1.msra.mxu0 %v2277
      %2377 = vmatprep.subr.mxu0 0.0
      %2378 = vmatpush1.msra.mxu0 %v2278
      %2379 = vmatprep.subr.mxu0 0.0
      %2380 = vmatpush1.msra.mxu0 %v2279
      %2381 = vmatprep.subr.mxu0 0.0
      %2382 = vmatpush1.msra.mxu0 %v2280
      %2383 = vmatprep.subr.mxu0 0.0
      %2384 = vmatpush1.msra.mxu0 %v2281
      %2385 = vmatprep.subr.mxu0 0.0
      %2386 = vmatpush1.msra.mxu0 %v2282
      %2387 = vmatprep.subr.mxu0 0.0
      %2388 = vmatpush1.msra.mxu0 %v2283
      %2389 = vmatprep.subr.mxu0 0.0
      %2390 = vmatpush1.msra.mxu0 %v2284
      %2391 = vmatprep.subr.mxu0 0.0
      %2392 = vmatpush1.msra.mxu0 %v2285
      %2393 = vmatprep.subr.mxu0 0.0
      %2394 = vmatpush1.msra.mxu0 %v2286
      %2395 = vmatprep.subr.mxu0 0.0
      %2396 = vmatpush1.msra.mxu0 0.0
      %2397 = vmatprep.subr.mxu0 0.0
      %2398 = vmatpush1.msra.mxu0 0.0
      %2399 = vmatprep.subr.mxu0 0.0
      %2400 = vmatpush1.msra.mxu0 0.0
      %2401 = vmatprep.subr.mxu0 0.0
      %2402 = vmatpush1.msra.mxu0 0.0
      %2403 = vmatprep.subr.mxu0 0.0
      %2404 = vmatpush1.msra.mxu0 0.0
      %2405 = vmatprep.subr.mxu0 0.0
      %2406 = vmatpush1.msra.mxu0 0.0
      %2407 = vmatprep.subr.mxu0 0.0
      %2408 = vmatpush1.msra.mxu0 0.0
      %2409 = vmatprep.subr.mxu0 0.0
      %2410 = vmatpush1.msra.mxu0 0.0
      %2411 = vmatprep.subr.mxu0 0.0
      %2412 = vmatpush1.msra.mxu0 0.0
      %2413 = vmatprep.subr.mxu0 0.0
      %2414 = vmatpush1.msra.mxu0 0.0
      %2415 = vmatprep.subr.mxu0 0.0
      %2416 = vmatpush1.msra.mxu0 0.0
      %2417 = vmatprep.subr.mxu0 0.0
      %2418 = vmatpush1.msra.mxu0 0.0
      %2419 = vmatprep.subr.mxu0 0.0
      %2420 = vmatpush1.msra.mxu0 0.0
      %2421 = vmatprep.subr.mxu0 0.0
      %2422 = vmatpush1.msra.mxu0 0.0
      %2423 = vmatprep.subr.mxu0 0.0
      %2424 = vmatpush1.msra.mxu0 0.0
      %2425 = vmatprep.subr.mxu0 0.0
      %2426 = vmatpush1.msra.mxu0 0.0
      %2427 = vmatprep.subr.mxu0 0.0
      %2428 = vmatpush1.msra.mxu0 0.0
      %2429 = vmatprep.subr.mxu0 0.0
      %2430 = vmatpush1.msra.mxu0 0.0
      %2431 = vmatprep.subr.mxu0 0.0
      %2432 = vmatpush1.msra.mxu0 0.0
      %2433 = vmatprep.subr.mxu0 0.0
      %2434 = vmatpush1.msra.mxu0 0.0
      %2435 = vmatprep.mubr.f32.mxu0 0.0
      %2436 = vmatmul.mubr.f32.gmra.mrb[0].mxu0 %v2288
      %v2437 = vpop.f32.mrb[0].mxu0
      %v2438 = vadd.f32 0.0, %v2437
      %v2439 = vpop.f32.mrb[0].mxu0
      %2440 = vmatprep.mubr.f32.mxu0 0.0
      %2441 = vmatmul.mubr.f32.gmra.mrb[0].mxu0 %v2291
      %v2442 = vpop.f32.mrb[0].mxu0
      %v2443 = vadd.f32 0.0, %v2442
      %v2444 = vpop.f32.mrb[0].mxu0
      %2445 = vmatprep.mubr.f32.mxu0 0.0
      %2446 = vmatmul.mubr.f32.gmra.mrb[0].mxu0 %v2294
      %v2447 = vpop.f32.mrb[0].mxu0
      %v2448 = vadd.f32 0.0, %v2447
      %v2449 = vpop.f32.mrb[0].mxu0
      %2450 = vmatprep.mubr.f32.mxu0 0.0
      %2451 = vmatmul.mubr.f32.gmra.mrb[0].mxu0 %v2297
      %v2452 = vpop.f32.mrb[0].mxu0
      %v2453 = vadd.f32 0.0, %v2452
      %v2454 = vpop.f32.mrb[0].mxu0
      %2455 = vmatprep.mubr.f32.mxu0 0.0
      %2456 = vmatmul.mubr.f32.gmra.mrb[0].mxu0 %v2300
      %v2457 = vpop.f32.mrb[0].mxu0
      %v2458 = vadd.f32 0.0, %v2457
      %v2459 = vpop.f32.mrb[0].mxu0
      %2460 = vmatprep.mubr.f32.mxu0 0.0
      %2461 = vmatmul.mubr.f32.gmra.mrb[0].mxu0 %v2303
      %v2462 = vpop.f32.mrb[0].mxu0
      %v2463 = vadd.f32 0.0, %v2462
      %v2464 = vpop.f32.mrb[0].mxu0
      %2465 = vmatprep.mubr.f32.mxu0 0.0
      %2466 = vmatmul.mubr.f32.gmra.mrb[0].mxu0 %v2306
      %v2467 = vpop.f32.mrb[0].mxu0
      %v2468 = vadd.f32 0.0, %v2467
      %v2469 = vpop.f32.mrb[0].mxu0
      %2470 = vmatprep.mubr.f32.mxu0 0.0
      %2471 = vmatmul.mubr.f32.gmra.mrb[0].mxu0 %v2309
      %v2472 = vpop.f32.mrb[0].mxu0
      %v2473 = vadd.f32 0.0, %v2472
      %v2474 = vpop.f32.mrb[0].mxu0
      %2475 = vmatprep.mubr.f32.mxu0 0.0
      %2476 = vmatmul.mubr.f32.gmra.mrb[0].mxu0 %v2312
      %v2477 = vpop.f32.mrb[0].mxu0
      %v2478 = vadd.f32 0.0, %v2477
      %v2479 = vpop.f32.mrb[0].mxu0
      %2480 = vmatprep.mubr.f32.mxu0 0.0
      %2481 = vmatmul.mubr.f32.gmra.mrb[0].mxu0 %v2315
      %v2482 = vpop.f32.mrb[0].mxu0
      %v2483 = vadd.f32 0.0, %v2482
      %v2484 = vpop.f32.mrb[0].mxu0
      %2485 = vmatprep.mubr.f32.mxu0 0.0
      %2486 = vmatmul.mubr.f32.gmra.mrb[0].mxu0 %v2318
      %v2487 = vpop.f32.mrb[0].mxu0
      %v2488 = vadd.f32 0.0, %v2487
      %v2489 = vpop.f32.mrb[0].mxu0
      %2490 = vmatprep.mubr.f32.mxu0 0.0
      %2491 = vmatmul.mubr.f32.gmra.mrb[0].mxu0 %v2321
      %v2492 = vpop.f32.mrb[0].mxu0
      %v2493 = vadd.f32 0.0, %v2492
      %v2494 = vpop.f32.mrb[0].mxu0
      %2495 = vmatprep.mubr.f32.mxu0 0.0
      %2496 = vmatmul.mubr.f32.gmra.mrb[0].mxu0 %v2324
      %v2497 = vpop.f32.mrb[0].mxu0
      %v2498 = vadd.f32 0.0, %v2497
      %v2499 = vpop.f32.mrb[0].mxu0
      %2500 = vmatprep.mubr.f32.mxu0 0.0
      %2501 = vmatmul.mubr.f32.gmra.mrb[0].mxu0 %v2327
      %v2502 = vpop.f32.mrb[0].mxu0
      %v2503 = vadd.f32 0.0, %v2502
      %v2504 = vpop.f32.mrb[0].mxu0
      %2505 = vmatprep.mubr.f32.mxu0 0.0
      %2506 = vmatmul.mubr.f32.gmra.mrb[0].mxu0 %v2330
      %v2507 = vpop.f32.mrb[0].mxu0
      %v2508 = vadd.f32 0.0, %v2507
      %v2509 = vpop.f32.mrb[0].mxu0
      %2510 = vmatprep.mubr.f32.mxu0 0.0
      %2511 = vmatmul.mubr.f32.gmra.mrb[0].mxu0 %v2333
      %v2512 = vpop.f32.mrb[0].mxu0
      %v2513 = vadd.f32 0.0, %v2512
      %v2514 = vpop.f32.mrb[0].mxu0
      %2515 = vmatprep.mubr.f32.mxu0 0.0
      %2516 = vmatmul.mubr.f32.gmra.mrb[0].mxu0 %v2336
      %v2517 = vpop.f32.mrb[0].mxu0
      %v2518 = vadd.f32 0.0, %v2517
      %v2519 = vpop.f32.mrb[0].mxu0
      %2520 = vmatprep.mubr.f32.mxu0 0.0
      %2521 = vmatmul.mubr.f32.gmra.mrb[0].mxu0 %v2339
      %v2522 = vpop.f32.mrb[0].mxu0
      %v2523 = vadd.f32 0.0, %v2522
      %v2524 = vpop.f32.mrb[0].mxu0
      %2525 = vmatprep.mubr.f32.mxu0 0.0
      %2526 = vmatmul.mubr.f32.gmra.mrb[0].mxu0 %v2342
      %v2527 = vpop.f32.mrb[0].mxu0
      %v2528 = vadd.f32 0.0, %v2527
      %v2529 = vpop.f32.mrb[0].mxu0
      %2530 = vmatprep.mubr.f32.mxu0 0.0
      %2531 = vmatmul.mubr.f32.gmra.mrb[0].mxu0 %v2345
      %v2532 = vpop.f32.mrb[0].mxu0
      %v2533 = vadd.f32 0.0, %v2532
      %v2534 = vpop.f32.mrb[0].mxu0
      %2535 = vmatprep.mubr.f32.mxu0 0.0
      %2536 = vmatmul.mubr.f32.gmra.mrb[0].mxu0 %v2348
      %v2537 = vpop.f32.mrb[0].mxu0
      %v2538 = vadd.f32 0.0, %v2537
      %v2539 = vpop.f32.mrb[0].mxu0
      %2540 = vmatprep.mubr.f32.mxu0 0.0
      %2541 = vmatmul.mubr.f32.gmra.mrb[0].mxu0 %v2351
      %v2542 = vpop.f32.mrb[0].mxu0
      %v2543 = vadd.f32 0.0, %v2542
      %v2544 = vpop.f32.mrb[0].mxu0
      %2545 = vmatprep.mubr.f32.mxu0 0.0
      %2546 = vmatmul.mubr.f32.gmra.mrb[0].mxu0 %v2354
      %v2547 = vpop.f32.mrb[0].mxu0
      %v2548 = vadd.f32 0.0, %v2547
      %v2549 = vpop.f32.mrb[0].mxu0
      %2550 = vmatprep.mubr.f32.mxu0 0.0
      %2551 = vmatmul.mubr.f32.gmra.mrb[0].mxu0 %v2357
      %v2552 = vpop.f32.mrb[0].mxu0
      %v2553 = vadd.f32 0.0, %v2552
      %v2554 = vpop.f32.mrb[0].mxu0
      %2555 = vmatprep.mubr.f32.mxu0 0.0
      %2556 = vmatmul.mubr.f32.gmra.mrb[0].mxu0 %v2360
      %v2557 = vpop.f32.mrb[0].mxu0
      %v2558 = vadd.f32 0.0, %v2557
      %v2559 = vpop.f32.mrb[0].mxu0
      %2560 = vmatprep.mubr.f32.mxu0 0.0
      %2561 = vmatmul.mubr.f32.gmra.mrb[0].mxu0 %v2363
      %v2562 = vpop.f32.mrb[0].mxu0
      %v2563 = vadd.f32 0.0, %v2562
      %v2564 = vpop.f32.mrb[0].mxu0
      %2565 = vmatprep.mubr.f32.mxu0 0.0
      %2566 = vmatmul.mubr.f32.gmra.mrb[0].mxu0 %v2366
      %v2567 = vpop.f32.mrb[0].mxu0
      %v2568 = vadd.f32 0.0, %v2567
      %v2569 = vpop.f32.mrb[0].mxu0
      %2570 = vmatprep.mubr.f32.mxu0 0.0
      %2571 = vmatmul.mubr.f32.gmra.mrb[0].mxu0 %v2369
      %v2572 = vpop.f32.mrb[0].mxu0
      %v2573 = vadd.f32 0.0, %v2572
      %v2574 = vpop.f32.mrb[0].mxu0
      %2575 = vdwg.mxu0
      %v2576 = vadd.f32 %v2108, %v2438
      %v2577 = vadd.f32 %v2113, %v2443
      %v2578 = vadd.f32 %v2118, %v2448
      %v2579 = vadd.f32 %v2123, %v2453
      %v2580 = vadd.f32 %v2128, %v2458
      %v2581 = vadd.f32 %v2133, %v2463
      %v2582 = vadd.f32 %v2138, %v2468
      %v2583 = vadd.f32 %v2143, %v2473
      %v2584 = vadd.f32 %v2148, %v2478
      %v2585 = vadd.f32 %v2153, %v2483
      %v2586 = vadd.f32 %v2158, %v2488
      %v2587 = vadd.f32 %v2163, %v2493
      %v2588 = vadd.f32 %v2168, %v2498
      %v2589 = vadd.f32 %v2173, %v2503
      %v2590 = vadd.f32 %v2178, %v2508
      %v2591 = vadd.f32 %v2183, %v2513
      %v2592 = vadd.f32 %v2188, %v2518
      %v2593 = vadd.f32 %v2193, %v2523
      %v2594 = vadd.f32 %v2198, %v2528
      %v2595 = vadd.f32 %v2203, %v2533
      %v2596 = vadd.f32 %v2208, %v2538
      %v2597 = vadd.f32 %v2213, %v2543
      %v2598 = vadd.f32 %v2218, %v2548
      %v2599 = vadd.f32 %v2223, %v2553
      %v2600 = vadd.f32 %v2228, %v2558
      %v2601 = vadd.f32 %v2233, %v2563
      %v2602 = vadd.f32 %v2238, %v2568
      %v2603 = vadd.f32 %v2243, %v2573
      %v2604 = vld [vmem:[%s7] sm:$0x1]
      %v2606 = vlaneseq
      %v2607 = vshrl.u32 %v2606, 7
      %v2608 = vsub.s32 0, %v2607
      %v2609 = vrot.slane %v2604, %v2608
      %v2611 = vadd.f32 %v2576, %v2609
      %v2612 = vadd.f32 %v2577, %v2609
      %v2613 = vadd.f32 %v2578, %v2609
      %v2614 = vadd.f32 %v2579, %v2609
      %v2615 = vadd.f32 %v2580, %v2609
      %v2616 = vadd.f32 %v2581, %v2609
      %v2617 = vadd.f32 %v2582, %v2609
      %v2618 = vadd.f32 %v2583, %v2609
      %v2619 = vadd.f32 %v2584, %v2609
      %v2620 = vadd.f32 %v2585, %v2609
      %v2621 = vadd.f32 %v2586, %v2609
      %v2622 = vadd.f32 %v2587, %v2609
      %v2623 = vadd.f32 %v2588, %v2609
      %v2624 = vadd.f32 %v2589, %v2609
      %v2625 = vadd.f32 %v2590, %v2609
      %v2626 = vadd.f32 %v2591, %v2609
      %v2627 = vadd.f32 %v2592, %v2609
      %v2628 = vadd.f32 %v2593, %v2609
      %v2629 = vadd.f32 %v2594, %v2609
      %v2630 = vadd.f32 %v2595, %v2609
      %v2631 = vadd.f32 %v2596, %v2609
      %v2632 = vadd.f32 %v2597, %v2609
      %v2633 = vadd.f32 %v2598, %v2609
      %v2634 = vadd.f32 %v2599, %v2609
      %v2635 = vadd.f32 %v2600, %v2609
      %v2636 = vadd.f32 %v2601, %v2609
      %v2637 = vadd.f32 %v2602, %v2609
      %v2638 = vadd.f32 %v2603, %v2609
      %vm2639 = vcmp.ge.f32.partialorder %v2611, 0.0
      %vm2640 = vcmp.ge.f32.partialorder %v2612, 0.0
      %vm2641 = vcmp.ge.f32.partialorder %v2613, 0.0
      %vm2642 = vcmp.ge.f32.partialorder %v2614, 0.0
      %vm2643 = vcmp.ge.f32.partialorder %v2615, 0.0
      %vm2644 = vcmp.ge.f32.partialorder %v2616, 0.0
      %vm2645 = vcmp.ge.f32.partialorder %v2617, 0.0
      %vm2646 = vcmp.ge.f32.partialorder %v2618, 0.0
      %vm2647 = vcmp.ge.f32.partialorder %v2619, 0.0
      %vm2648 = vcmp.ge.f32.partialorder %v2620, 0.0
      %vm2649 = vcmp.ge.f32.partialorder %v2621, 0.0
      %vm2650 = vcmp.ge.f32.partialorder %v2622, 0.0
      %vm2651 = vcmp.ge.f32.partialorder %v2623, 0.0
      %vm2652 = vcmp.ge.f32.partialorder %v2624, 0.0
      %vm2653 = vcmp.ge.f32.partialorder %v2625, 0.0
      %vm2654 = vcmp.ge.f32.partialorder %v2626, 0.0
      %vm2655 = vcmp.ge.f32.partialorder %v2627, 0.0
      %vm2656 = vcmp.ge.f32.partialorder %v2628, 0.0
      %vm2657 = vcmp.ge.f32.partialorder %v2629, 0.0
      %vm2658 = vcmp.ge.f32.partialorder %v2630, 0.0
      %vm2659 = vcmp.ge.f32.partialorder %v2631, 0.0
      %vm2660 = vcmp.ge.f32.partialorder %v2632, 0.0
      %vm2661 = vcmp.ge.f32.partialorder %v2633, 0.0
      %vm2662 = vcmp.ge.f32.partialorder %v2634, 0.0
      %vm2663 = vcmp.ge.f32.partialorder %v2635, 0.0
      %vm2664 = vcmp.ge.f32.partialorder %v2636, 0.0
      %vm2665 = vcmp.ge.f32.partialorder %v2637, 0.0
      %vm2666 = vcmp.ge.f32.partialorder %v2638, 0.0
      %v2667 = vmul.f32 %v2611, 0.01
      %v2668 = vmul.f32 %v2612, 0.01
      %v2669 = vmul.f32 %v2613, 0.01
      %v2670 = vmul.f32 %v2614, 0.01
      %v2671 = vmul.f32 %v2615, 0.01
      %v2672 = vmul.f32 %v2616, 0.01
      %v2673 = vmul.f32 %v2617, 0.01
      %v2674 = vmul.f32 %v2618, 0.01
      %v2675 = vmul.f32 %v2619, 0.01
      %v2676 = vmul.f32 %v2620, 0.01
      %v2677 = vmul.f32 %v2621, 0.01
      %v2678 = vmul.f32 %v2622, 0.01
      %v2679 = vmul.f32 %v2623, 0.01
      %v2680 = vmul.f32 %v2624, 0.01
      %v2681 = vmul.f32 %v2625, 0.01
      %v2682 = vmul.f32 %v2626, 0.01
      %v2683 = vmul.f32 %v2627, 0.01
      %v2684 = vmul.f32 %v2628, 0.01
      %v2685 = vmul.f32 %v2629, 0.01
      %v2686 = vmul.f32 %v2630, 0.01
      %v2687 = vmul.f32 %v2631, 0.01
      %v2688 = vmul.f32 %v2632, 0.01
      %v2689 = vmul.f32 %v2633, 0.01
      %v2690 = vmul.f32 %v2634, 0.01
      %v2691 = vmul.f32 %v2635, 0.01
      %v2692 = vmul.f32 %v2636, 0.01
      %v2693 = vmul.f32 %v2637, 0.01
      %v2694 = vmul.f32 %v2638, 0.01
      %v2695 = vsel %vm2639, %v2611, %v2667
      %v2696 = vsel %vm2640, %v2612, %v2668
      %v2697 = vsel %vm2641, %v2613, %v2669
      %v2698 = vsel %vm2642, %v2614, %v2670
      %v2699 = vsel %vm2643, %v2615, %v2671
      %v2700 = vsel %vm2644, %v2616, %v2672
      %v2701 = vsel %vm2645, %v2617, %v2673
      %v2702 = vsel %vm2646, %v2618, %v2674
      %v2703 = vsel %vm2647, %v2619, %v2675
      %v2704 = vsel %vm2648, %v2620, %v2676
      %v2705 = vsel %vm2649, %v2621, %v2677
      %v2706 = vsel %vm2650, %v2622, %v2678
      %v2707 = vsel %vm2651, %v2623, %v2679
      %v2708 = vsel %vm2652, %v2624, %v2680
      %v2709 = vsel %vm2653, %v2625, %v2681
      %v2710 = vsel %vm2654, %v2626, %v2682
      %v2711 = vsel %vm2655, %v2627, %v2683
      %v2712 = vsel %vm2656, %v2628, %v2684
      %v2713 = vsel %vm2657, %v2629, %v2685
      %v2714 = vsel %vm2658, %v2630, %v2686
      %v2715 = vsel %vm2659, %v2631, %v2687
      %v2716 = vsel %vm2660, %v2632, %v2688
      %v2717 = vsel %vm2661, %v2633, %v2689
      %v2718 = vsel %vm2662, %v2634, %v2690
      %v2719 = vsel %vm2663, %v2635, %v2691
      %v2720 = vsel %vm2664, %v2636, %v2692
      %v2721 = vsel %vm2665, %v2637, %v2693
      %v2722 = vsel %vm2666, %v2638, %v2694
      %v2723 = vld [vmem:[%s8] sm:$0xff]
      %v2724 = vld [vmem:[%s8 + $0x8] sm:$0xff]
      %v2725 = vld [vmem:[%s8 + $0x10] sm:$0xff]
      %v2726 = vld [vmem:[%s8 + $0x18] sm:$0xff]
      %v2727 = vld [vmem:[%s8 + $0x20] sm:$0xff]
      %v2728 = vld [vmem:[%s8 + $0x28] sm:$0xff]
      %v2729 = vld [vmem:[%s8 + $0x30] sm:$0xff]
      %v2730 = vld [vmem:[%s8 + $0x38] sm:$0xff]
      %v2731 = vld [vmem:[%s8 + $0x40] sm:$0xff]
      %v2732 = vld [vmem:[%s8 + $0x48] sm:$0xff]
      %v2733 = vld [vmem:[%s8 + $0x50] sm:$0xff]
      %v2734 = vld [vmem:[%s8 + $0x58] sm:$0xff]
      %v2735 = vld [vmem:[%s8 + $0x60] sm:$0xff]
      %v2736 = vld [vmem:[%s8 + $0x68] sm:$0xff]
      %v2737 = vld [vmem:[%s8 + $0x70] sm:$0xff]
      %v2738 = vld [vmem:[%s8 + $0x78] sm:$0xff]
      %v2739 = vld [vmem:[%s8 + $0x80] sm:$0xff]
      %v2740 = vld [vmem:[%s8 + $0x88] sm:$0xff]
      %v2741 = vld [vmem:[%s8 + $0x90] sm:$0xff]
      %v2742 = vld [vmem:[%s8 + $0x98] sm:$0xff]
      %v2743 = vld [vmem:[%s8 + $0xa0] sm:$0xff]
      %v2744 = vld [vmem:[%s8 + $0xa8] sm:$0xff]
      %v2745 = vld [vmem:[%s8 + $0xb0] sm:$0xff]
      %v2746 = vld [vmem:[%s8 + $0xb8] sm:$0xff]
      %v2747 = vld [vmem:[%s8 + $0xc0] sm:$0xff]
      %v2748 = vld [vmem:[%s8 + $0xc8] sm:$0xff]
      %v2749 = vld [vmem:[%s8 + $0xd0] sm:$0xff]
      %v2750 = vld [vmem:[%s8 + $0xd8] sm:$0xff]
      %2752 = vset.pattern.permute.xlu0 0
      %2753 = vperm.xlu0 %2752, %v2723
      %v2754 = vpop.permute.xlu0 %2753
      %2757 = vset.pattern.permute.xlu0 0
      %2758 = vperm.xlu0 %2757, %v2724
      %v2759 = vpop.permute.xlu0 %2758
      %2762 = vset.pattern.permute.xlu0 0
      %2763 = vperm.xlu0 %2762, %v2725
      %v2764 = vpop.permute.xlu0 %2763
      %2767 = vset.pattern.permute.xlu0 0
      %2768 = vperm.xlu0 %2767, %v2726
      %v2769 = vpop.permute.xlu0 %2768
      %2772 = vset.pattern.permute.xlu0 0
      %2773 = vperm.xlu0 %2772, %v2727
      %v2774 = vpop.permute.xlu0 %2773
      %2777 = vset.pattern.permute.xlu0 0
      %2778 = vperm.xlu0 %2777, %v2728
      %v2779 = vpop.permute.xlu0 %2778
      %2782 = vset.pattern.permute.xlu0 0
      %2783 = vperm.xlu0 %2782, %v2729
      %v2784 = vpop.permute.xlu0 %2783
      %2787 = vset.pattern.permute.xlu0 0
      %2788 = vperm.xlu0 %2787, %v2730
      %v2789 = vpop.permute.xlu0 %2788
      %2792 = vset.pattern.permute.xlu0 0
      %2793 = vperm.xlu0 %2792, %v2731
      %v2794 = vpop.permute.xlu0 %2793
      %2797 = vset.pattern.permute.xlu0 0
      %2798 = vperm.xlu0 %2797, %v2732
      %v2799 = vpop.permute.xlu0 %2798
      %2802 = vset.pattern.permute.xlu0 0
      %2803 = vperm.xlu0 %2802, %v2733
      %v2804 = vpop.permute.xlu0 %2803
      %2807 = vset.pattern.permute.xlu0 0
      %2808 = vperm.xlu0 %2807, %v2734
      %v2809 = vpop.permute.xlu0 %2808
      %2812 = vset.pattern.permute.xlu0 0
      %2813 = vperm.xlu0 %2812, %v2735
      %v2814 = vpop.permute.xlu0 %2813
      %2817 = vset.pattern.permute.xlu0 0
      %2818 = vperm.xlu0 %2817, %v2736
      %v2819 = vpop.permute.xlu0 %2818
      %2822 = vset.pattern.permute.xlu0 0
      %2823 = vperm.xlu0 %2822, %v2737
      %v2824 = vpop.permute.xlu0 %2823
      %2827 = vset.pattern.permute.xlu0 0
      %2828 = vperm.xlu0 %2827, %v2738
      %v2829 = vpop.permute.xlu0 %2828
      %2832 = vset.pattern.permute.xlu0 0
      %2833 = vperm.xlu0 %2832, %v2739
      %v2834 = vpop.permute.xlu0 %2833
      %2837 = vset.pattern.permute.xlu0 0
      %2838 = vperm.xlu0 %2837, %v2740
      %v2839 = vpop.permute.xlu0 %2838
      %2842 = vset.pattern.permute.xlu0 0
      %2843 = vperm.xlu0 %2842, %v2741
      %v2844 = vpop.permute.xlu0 %2843
      %2847 = vset.pattern.permute.xlu0 0
      %2848 = vperm.xlu0 %2847, %v2742
      %v2849 = vpop.permute.xlu0 %2848
      %2852 = vset.pattern.permute.xlu0 0
      %2853 = vperm.xlu0 %2852, %v2743
      %v2854 = vpop.permute.xlu0 %2853
      %2857 = vset.pattern.permute.xlu0 0
      %2858 = vperm.xlu0 %2857, %v2744
      %v2859 = vpop.permute.xlu0 %2858
      %2862 = vset.pattern.permute.xlu0 0
      %2863 = vperm.xlu0 %2862, %v2745
      %v2864 = vpop.permute.xlu0 %2863
      %2867 = vset.pattern.permute.xlu0 0
      %2868 = vperm.xlu0 %2867, %v2746
      %v2869 = vpop.permute.xlu0 %2868
      %2872 = vset.pattern.permute.xlu0 0
      %2873 = vperm.xlu0 %2872, %v2747
      %v2874 = vpop.permute.xlu0 %2873
      %2877 = vset.pattern.permute.xlu0 0
      %2878 = vperm.xlu0 %2877, %v2748
      %v2879 = vpop.permute.xlu0 %2878
      %2882 = vset.pattern.permute.xlu0 0
      %2883 = vperm.xlu0 %2882, %v2749
      %v2884 = vpop.permute.xlu0 %2883
      %2887 = vset.pattern.permute.xlu0 0
      %2888 = vperm.xlu0 %2887, %v2750
      %v2889 = vpop.permute.xlu0 %2888
      %v2891 = vmul.f32 %v2695, %v2754
      %v2892 = vmul.f32 %v2696, %v2759
      %v2893 = vmul.f32 %v2697, %v2764
      %v2894 = vmul.f32 %v2698, %v2769
      %v2895 = vmul.f32 %v2699, %v2774
      %v2896 = vmul.f32 %v2700, %v2779
      %v2897 = vmul.f32 %v2701, %v2784
      %v2898 = vmul.f32 %v2702, %v2789
      %v2899 = vmul.f32 %v2703, %v2794
      %v2900 = vmul.f32 %v2704, %v2799
      %v2901 = vmul.f32 %v2705, %v2804
      %v2902 = vmul.f32 %v2706, %v2809
      %v2903 = vmul.f32 %v2707, %v2814
      %v2904 = vmul.f32 %v2708, %v2819
      %v2905 = vmul.f32 %v2709, %v2824
      %v2906 = vmul.f32 %v2710, %v2829
      %v2907 = vmul.f32 %v2711, %v2834
      %v2908 = vmul.f32 %v2712, %v2839
      %v2909 = vmul.f32 %v2713, %v2844
      %v2910 = vmul.f32 %v2714, %v2849
      %v2911 = vmul.f32 %v2715, %v2854
      %v2912 = vmul.f32 %v2716, %v2859
      %v2913 = vmul.f32 %v2717, %v2864
      %v2914 = vmul.f32 %v2718, %v2869
      %v2915 = vmul.f32 %v2719, %v2874
      %v2916 = vmul.f32 %v2720, %v2879
      %v2917 = vmul.f32 %v2721, %v2884
      %v2918 = vmul.f32 %v2722, %v2889
      %2919 = vst [vmem:[#allocation4] sm:$0xff] 0.0
      %vm2920 = vcmask 523264
      %2921 = vst.msk [vmem:[#allocation4 + $0x8] sm:$0xff] %vm2920, 0.0
      %2922 = vst [vmem:[#allocation4 + $0x10] sm:$0xff] 0.0
      %2923 = vst.msk [vmem:[#allocation4 + $0x18] sm:$0xff] %vm2920, 0.0
      %2924 = vst [vmem:[#allocation4 + $0x20] sm:$0x1] 0.0
      %vm2925 = vcmask 516096
      %2926 = vst.msk [vmem:[#allocation4 + $0x28] sm:$0x1] %vm2925, 0.0
      %2927 = vst [vmem:[#allocation4 + $0x1d0] sm:$0x80] 0.0
      %vm2928 = vcmask 523271
      %2929 = vst.msk [vmem:[#allocation4 + $0x1d8] sm:$0x80] %vm2928, 0.0
      %2930 = vst [vmem:[#allocation4 + $0x1e0] sm:$0xff] 0.0
      %2931 = vst.msk [vmem:[#allocation4 + $0x1e8] sm:$0xff] %vm2920, 0.0
      %2932 = vst [vmem:[#allocation4 + $0x1f0] sm:$0xff] 0.0
      %2933 = vst.msk [vmem:[#allocation4 + $0x1f8] sm:$0xff] %vm2920, 0.0
      %vm2962 = vcmask 1040384
      %v2963 = vrot.slane %v2891, 7
      %v2964 = vrot.slane %v2892, 7
      %v2965 = vsel %vm2962, %v2963, %v2964
      %v2966 = vrot.slane %v2893, 7
      %v2967 = vsel %vm2962, %v2964, %v2966
      %v2968 = vrot.slane %v2894, 7
      %v2969 = vsel %vm2962, %v2966, %v2968
      %v2970 = vrot.slane %v2895, 7
      %v2971 = vsel %vm2962, %v2968, %v2970
      %v2972 = vrot.slane %v2896, 7
      %v2973 = vsel %vm2962, %v2970, %v2972
      %v2974 = vrot.slane %v2897, 7
      %v2975 = vsel %vm2962, %v2972, %v2974
      %v2976 = vrot.slane %v2898, 7
      %v2977 = vsel %vm2962, %v2974, %v2976
      %v2978 = vrot.slane %v2899, 7
      %v2979 = vsel %vm2962, %v2976, %v2978
      %v2980 = vrot.slane %v2900, 7
      %v2981 = vsel %vm2962, %v2978, %v2980
      %v2982 = vrot.slane %v2901, 7
      %v2983 = vsel %vm2962, %v2980, %v2982
      %v2984 = vrot.slane %v2902, 7
      %v2985 = vsel %vm2962, %v2982, %v2984
      %v2986 = vrot.slane %v2903, 7
      %v2987 = vsel %vm2962, %v2984, %v2986
      %v2988 = vrot.slane %v2904, 7
      %v2989 = vsel %vm2962, %v2986, %v2988
      %v2990 = vrot.slane %v2905, 7
      %v2991 = vsel %vm2962, %v2988, %v2990
      %v2992 = vrot.slane %v2906, 7
      %v2993 = vsel %vm2962, %v2990, %v2992
      %v2994 = vrot.slane %v2907, 7
      %v2995 = vsel %vm2962, %v2992, %v2994
      %v2996 = vrot.slane %v2908, 7
      %v2997 = vsel %vm2962, %v2994, %v2996
      %v2998 = vrot.slane %v2909, 7
      %v2999 = vsel %vm2962, %v2996, %v2998
      %v3000 = vrot.slane %v2910, 7
      %v3001 = vsel %vm2962, %v2998, %v3000
      %v3002 = vrot.slane %v2911, 7
      %v3003 = vsel %vm2962, %v3000, %v3002
      %v3004 = vrot.slane %v2912, 7
      %v3005 = vsel %vm2962, %v3002, %v3004
      %v3006 = vrot.slane %v2913, 7
      %v3007 = vsel %vm2962, %v3004, %v3006
      %v3008 = vrot.slane %v2914, 7
      %v3009 = vsel %vm2962, %v3006, %v3008
      %v3010 = vrot.slane %v2915, 7
      %v3011 = vsel %vm2962, %v3008, %v3010
      %v3012 = vrot.slane %v2916, 7
      %v3013 = vsel %vm2962, %v3010, %v3012
      %v3014 = vrot.slane %v2917, 7
      %v3015 = vsel %vm2962, %v3012, %v3014
      %v3016 = vrot.slane %v2918, 7
      %v3017 = vsel %vm2962, %v3014, %v3016
      %vm3047 = vcmask 523265
      %3048 = vst.msk [vmem:[#allocation4 + $0x20] sm:$0xfe] %vm3047, %v2963
      %3049 = vst.msk [vmem:[#allocation4 + $0x30] sm:$0xff] %vm2920, %v2965
      %3050 = vst.msk [vmem:[#allocation4 + $0x40] sm:$0xff] %vm2920, %v2967
      %3051 = vst.msk [vmem:[#allocation4 + $0x50] sm:$0xff] %vm2920, %v2969
      %3052 = vst.msk [vmem:[#allocation4 + $0x60] sm:$0xff] %vm2920, %v2971
      %3053 = vst.msk [vmem:[#allocation4 + $0x70] sm:$0xff] %vm2920, %v2973
      %3054 = vst.msk [vmem:[#allocation4 + $0x80] sm:$0xff] %vm2920, %v2975
      %3055 = vst.msk [vmem:[#allocation4 + $0x90] sm:$0xff] %vm2920, %v2977
      %3056 = vst.msk [vmem:[#allocation4 + $0xa0] sm:$0xff] %vm2920, %v2979
      %3057 = vst.msk [vmem:[#allocation4 + $0xb0] sm:$0xff] %vm2920, %v2981
      %3058 = vst.msk [vmem:[#allocation4 + $0xc0] sm:$0xff] %vm2920, %v2983
      %3059 = vst.msk [vmem:[#allocation4 + $0xd0] sm:$0xff] %vm2920, %v2985
      %3060 = vst.msk [vmem:[#allocation4 + $0xe0] sm:$0xff] %vm2920, %v2987
      %3061 = vst.msk [vmem:[#allocation4 + $0xf0] sm:$0xff] %vm2920, %v2989
      %3062 = vst.msk [vmem:[#allocation4 + $0x100] sm:$0xff] %vm2920, %v2991
      %3063 = vst.msk [vmem:[#allocation4 + $0x110] sm:$0xff] %vm2920, %v2993
      %3064 = vst.msk [vmem:[#allocation4 + $0x120] sm:$0xff] %vm2920, %v2995
      %3065 = vst.msk [vmem:[#allocation4 + $0x130] sm:$0xff] %vm2920, %v2997
      %3066 = vst.msk [vmem:[#allocation4 + $0x140] sm:$0xff] %vm2920, %v2999
      %3067 = vst.msk [vmem:[#allocation4 + $0x150] sm:$0xff] %vm2920, %v3001
      %3068 = vst.msk [vmem:[#allocation4 + $0x160] sm:$0xff] %vm2920, %v3003
      %3069 = vst.msk [vmem:[#allocation4 + $0x170] sm:$0xff] %vm2920, %v3005
      %3070 = vst.msk [vmem:[#allocation4 + $0x180] sm:$0xff] %vm2920, %v3007
      %3071 = vst.msk [vmem:[#allocation4 + $0x190] sm:$0xff] %vm2920, %v3009
      %3072 = vst.msk [vmem:[#allocation4 + $0x1a0] sm:$0xff] %vm2920, %v3011
      %3073 = vst.msk [vmem:[#allocation4 + $0x1b0] sm:$0xff] %vm2920, %v3013
      %3074 = vst.msk [vmem:[#allocation4 + $0x1c0] sm:$0xff] %vm2920, %v3015
      %3075 = vst.msk [vmem:[#allocation4 + $0x1d0] sm:$0xff] %vm2920, %v3017
      %3076 = vst.msk [vmem:[#allocation4 + $0x1e0] sm:$0x1] %vm2925, %v3016
      %3077 = vrot.lane.b32.xlu0 %v2891, 64
      %v3078 = vpop.permute.xlu0 %3077
      %3079 = vrot.lane.b32.xlu0 %v2892, 64
      %v3080 = vpop.permute.xlu0 %3079
      %3081 = vrot.lane.b32.xlu0 %v2893, 64
      %v3082 = vpop.permute.xlu0 %3081
      %3083 = vrot.lane.b32.xlu0 %v2894, 64
      %v3084 = vpop.permute.xlu0 %3083
      %3085 = vrot.lane.b32.xlu0 %v2895, 64
      %v3086 = vpop.permute.xlu0 %3085
      %3087 = vrot.lane.b32.xlu0 %v2896, 64
      %v3088 = vpop.permute.xlu0 %3087
      %3089 = vrot.lane.b32.xlu0 %v2897, 64
      %v3090 = vpop.permute.xlu0 %3089
      %3091 = vrot.lane.b32.xlu0 %v2898, 64
      %v3092 = vpop.permute.xlu0 %3091
      %3093 = vrot.lane.b32.xlu0 %v2899, 64
      %v3094 = vpop.permute.xlu0 %3093
      %3095 = vrot.lane.b32.xlu0 %v2900, 64
      %v3096 = vpop.permute.xlu0 %3095
      %3097 = vrot.lane.b32.xlu0 %v2901, 64
      %v3098 = vpop.permute.xlu0 %3097
      %3099 = vrot.lane.b32.xlu0 %v2902, 64
      %v3100 = vpop.permute.xlu0 %3099
      %3101 = vrot.lane.b32.xlu0 %v2903, 64
      %v3102 = vpop.permute.xlu0 %3101
      %3103 = vrot.lane.b32.xlu0 %v2904, 64
      %v3104 = vpop.permute.xlu0 %3103
      %3105 = vrot.lane.b32.xlu0 %v2905, 64
      %v3106 = vpop.permute.xlu0 %3105
      %3107 = vrot.lane.b32.xlu0 %v2906, 64
      %v3108 = vpop.permute.xlu0 %3107
      %3109 = vrot.lane.b32.xlu0 %v2907, 64
      %v3110 = vpop.permute.xlu0 %3109
      %3111 = vrot.lane.b32.xlu0 %v2908, 64
      %v3112 = vpop.permute.xlu0 %3111
      %3113 = vrot.lane.b32.xlu0 %v2909, 64
      %v3114 = vpop.permute.xlu0 %3113
      %3115 = vrot.lane.b32.xlu0 %v2910, 64
      %v3116 = vpop.permute.xlu0 %3115
      %3117 = vrot.lane.b32.xlu0 %v2911, 64
      %v3118 = vpop.permute.xlu0 %3117
      %3119 = vrot.lane.b32.xlu0 %v2912, 64
      %v3120 = vpop.permute.xlu0 %3119
      %3121 = vrot.lane.b32.xlu0 %v2913, 64
      %v3122 = vpop.permute.xlu0 %3121
      %3123 = vrot.lane.b32.xlu0 %v2914, 64
      %v3124 = vpop.permute.xlu0 %3123
      %3125 = vrot.lane.b32.xlu0 %v2915, 64
      %v3126 = vpop.permute.xlu0 %3125
      %3127 = vrot.lane.b32.xlu0 %v2916, 64
      %v3128 = vpop.permute.xlu0 %3127
      %3129 = vrot.lane.b32.xlu0 %v2917, 64
      %v3130 = vpop.permute.xlu0 %3129
      %3131 = vrot.lane.b32.xlu0 %v2918, 64
      %v3132 = vpop.permute.xlu0 %3131
      %vm3161 = vcmask 1048064
      %3162 = vst.msk [vmem:[#allocation4 + $0x20] sm:$0xff] %vm3161, %v3078
      %3163 = vst.msk [vmem:[#allocation4 + $0x30] sm:$0xff] %vm3161, %v3080
      %3164 = vst.msk [vmem:[#allocation4 + $0x40] sm:$0xff] %vm3161, %v3082
      %3165 = vst.msk [vmem:[#allocation4 + $0x50] sm:$0xff] %vm3161, %v3084
      %3166 = vst.msk [vmem:[#allocation4 + $0x60] sm:$0xff] %vm3161, %v3086
      %3167 = vst.msk [vmem:[#allocation4 + $0x70] sm:$0xff] %vm3161, %v3088
      %3168 = vst.msk [vmem:[#allocation4 + $0x80] sm:$0xff] %vm3161, %v3090
      %3169 = vst.msk [vmem:[#allocation4 + $0x90] sm:$0xff] %vm3161, %v3092
      %3170 = vst.msk [vmem:[#allocation4 + $0xa0] sm:$0xff] %vm3161, %v3094
      %3171 = vst.msk [vmem:[#allocation4 + $0xb0] sm:$0xff] %vm3161, %v3096
      %3172 = vst.msk [vmem:[#allocation4 + $0xc0] sm:$0xff] %vm3161, %v3098
      %3173 = vst.msk [vmem:[#allocation4 + $0xd0] sm:$0xff] %vm3161, %v3100
      %3174 = vst.msk [vmem:[#allocation4 + $0xe0] sm:$0xff] %vm3161, %v3102
      %3175 = vst.msk [vmem:[#allocation4 + $0xf0] sm:$0xff] %vm3161, %v3104
      %3176 = vst.msk [vmem:[#allocation4 + $0x100] sm:$0xff] %vm3161, %v3106
      %3177 = vst.msk [vmem:[#allocation4 + $0x110] sm:$0xff] %vm3161, %v3108
      %3178 = vst.msk [vmem:[#allocation4 + $0x120] sm:$0xff] %vm3161, %v3110
      %3179 = vst.msk [vmem:[#allocation4 + $0x130] sm:$0xff] %vm3161, %v3112
      %3180 = vst.msk [vmem:[#allocation4 + $0x140] sm:$0xff] %vm3161, %v3114
      %3181 = vst.msk [vmem:[#allocation4 + $0x150] sm:$0xff] %vm3161, %v3116
      %3182 = vst.msk [vmem:[#allocation4 + $0x160] sm:$0xff] %vm3161, %v3118
      %3183 = vst.msk [vmem:[#allocation4 + $0x170] sm:$0xff] %vm3161, %v3120
      %3184 = vst.msk [vmem:[#allocation4 + $0x180] sm:$0xff] %vm3161, %v3122
      %3185 = vst.msk [vmem:[#allocation4 + $0x190] sm:$0xff] %vm3161, %v3124
      %3186 = vst.msk [vmem:[#allocation4 + $0x1a0] sm:$0xff] %vm3161, %v3126
      %3187 = vst.msk [vmem:[#allocation4 + $0x1b0] sm:$0xff] %vm3161, %v3128
      %3188 = vst.msk [vmem:[#allocation4 + $0x1c0] sm:$0xff] %vm3161, %v3130
      %3189 = vst.msk [vmem:[#allocation4 + $0x1d0] sm:$0xff] %vm3161, %v3132
      %vm3190 = vcmask 1046528
      %v3191 = vrot.slane %v2891, 1
      %v3192 = vrot.slane %v2892, 1
      %v3193 = vsel %vm3190, %v3191, %v3192
      %v3194 = vrot.slane %v2893, 1
      %v3195 = vsel %vm3190, %v3192, %v3194
      %v3196 = vrot.slane %v2894, 1
      %v3197 = vsel %vm3190, %v3194, %v3196
      %v3198 = vrot.slane %v2895, 1
      %v3199 = vsel %vm3190, %v3196, %v3198
      %v3200 = vrot.slane %v2896, 1
      %v3201 = vsel %vm3190, %v3198, %v3200
      %v3202 = vrot.slane %v2897, 1
      %v3203 = vsel %vm3190, %v3200, %v3202
      %v3204 = vrot.slane %v2898, 1
      %v3205 = vsel %vm3190, %v3202, %v3204
      %v3206 = vrot.slane %v2899, 1
      %v3207 = vsel %vm3190, %v3204, %v3206
      %v3208 = vrot.slane %v2900, 1
      %v3209 = vsel %vm3190, %v3206, %v3208
      %v3210 = vrot.slane %v2901, 1
      %v3211 = vsel %vm3190, %v3208, %v3210
      %v3212 = vrot.slane %v2902, 1
      %v3213 = vsel %vm3190, %v3210, %v3212
      %v3214 = vrot.slane %v2903, 1
      %v3215 = vsel %vm3190, %v3212, %v3214
      %v3216 = vrot.slane %v2904, 1
      %v3217 = vsel %vm3190, %v3214, %v3216
      %v3218 = vrot.slane %v2905, 1
      %v3219 = vsel %vm3190, %v3216, %v3218
      %v3220 = vrot.slane %v2906, 1
      %v3221 = vsel %vm3190, %v3218, %v3220
      %v3222 = vrot.slane %v2907, 1
      %v3223 = vsel %vm3190, %v3220, %v3222
      %v3224 = vrot.slane %v2908, 1
      %v3225 = vsel %vm3190, %v3222, %v3224
      %v3226 = vrot.slane %v2909, 1
      %v3227 = vsel %vm3190, %v3224, %v3226
      %v3228 = vrot.slane %v2910, 1
      %v3229 = vsel %vm3190, %v3226, %v3228
      %v3230 = vrot.slane %v2911, 1
      %v3231 = vsel %vm3190, %v3228, %v3230
      %v3232 = vrot.slane %v2912, 1
      %v3233 = vsel %vm3190, %v3230, %v3232
      %v3234 = vrot.slane %v2913, 1
      %v3235 = vsel %vm3190, %v3232, %v3234
      %v3236 = vrot.slane %v2914, 1
      %v3237 = vsel %vm3190, %v3234, %v3236
      %v3238 = vrot.slane %v2915, 1
      %v3239 = vsel %vm3190, %v3236, %v3238
      %v3240 = vrot.slane %v2916, 1
      %v3241 = vsel %vm3190, %v3238, %v3240
      %v3242 = vrot.slane %v2917, 1
      %v3243 = vsel %vm3190, %v3240, %v3242
      %v3244 = vrot.slane %v2918, 1
      %v3245 = vsel %vm3190, %v3242, %v3244
      %3275 = vst.msk [vmem:[#allocation4 + $0x18] sm:$0x80] %vm2928, %v3191
      %3276 = vst.msk [vmem:[#allocation4 + $0x28] sm:$0xff] %vm2920, %v3193
      %3277 = vst.msk [vmem:[#allocation4 + $0x38] sm:$0xff] %vm2920, %v3195
      %3278 = vst.msk [vmem:[#allocation4 + $0x48] sm:$0xff] %vm2920, %v3197
      %3279 = vst.msk [vmem:[#allocation4 + $0x58] sm:$0xff] %vm2920, %v3199
      %3280 = vst.msk [vmem:[#allocation4 + $0x68] sm:$0xff] %vm2920, %v3201
      %3281 = vst.msk [vmem:[#allocation4 + $0x78] sm:$0xff] %vm2920, %v3203
      %3282 = vst.msk [vmem:[#allocation4 + $0x88] sm:$0xff] %vm2920, %v3205
      %3283 = vst.msk [vmem:[#allocation4 + $0x98] sm:$0xff] %vm2920, %v3207
      %3284 = vst.msk [vmem:[#allocation4 + $0xa8] sm:$0xff] %vm2920, %v3209
      %3285 = vst.msk [vmem:[#allocation4 + $0xb8] sm:$0xff] %vm2920, %v3211
      %3286 = vst.msk [vmem:[#allocation4 + $0xc8] sm:$0xff] %vm2920, %v3213
      %3287 = vst.msk [vmem:[#allocation4 + $0xd8] sm:$0xff] %vm2920, %v3215
      %3288 = vst.msk [vmem:[#allocation4 + $0xe8] sm:$0xff] %vm2920, %v3217
      %3289 = vst.msk [vmem:[#allocation4 + $0xf8] sm:$0xff] %vm2920, %v3219
      %3290 = vst.msk [vmem:[#allocation4 + $0x108] sm:$0xff] %vm2920, %v3221
      %3291 = vst.msk [vmem:[#allocation4 + $0x118] sm:$0xff] %vm2920, %v3223
      %3292 = vst.msk [vmem:[#allocation4 + $0x128] sm:$0xff] %vm2920, %v3225
      %3293 = vst.msk [vmem:[#allocation4 + $0x138] sm:$0xff] %vm2920, %v3227
      %3294 = vst.msk [vmem:[#allocation4 + $0x148] sm:$0xff] %vm2920, %v3229
      %3295 = vst.msk [vmem:[#allocation4 + $0x158] sm:$0xff] %vm2920, %v3231
      %3296 = vst.msk [vmem:[#allocation4 + $0x168] sm:$0xff] %vm2920, %v3233
      %3297 = vst.msk [vmem:[#allocation4 + $0x178] sm:$0xff] %vm2920, %v3235
      %3298 = vst.msk [vmem:[#allocation4 + $0x188] sm:$0xff] %vm2920, %v3237
      %3299 = vst.msk [vmem:[#allocation4 + $0x198] sm:$0xff] %vm2920, %v3239
      %3300 = vst.msk [vmem:[#allocation4 + $0x1a8] sm:$0xff] %vm2920, %v3241
      %3301 = vst.msk [vmem:[#allocation4 + $0x1b8] sm:$0xff] %vm2920, %v3243
      %3302 = vst.msk [vmem:[#allocation4 + $0x1c8] sm:$0xff] %vm2920, %v3245
      %vm3303 = vcmask 522240
      %3304 = vst.msk [vmem:[#allocation4 + $0x1d8] sm:$0x7f] %vm3303, %v3244
      %v3305 = vld [vmem:[#allocation4] sm:$0xff]
      %v3306 = vld [vmem:[#allocation4 + $0x8] sm:$0xff]
      %v3307 = vld [vmem:[#allocation4 + $0x10] sm:$0xff]
      %v3308 = vld [vmem:[#allocation4 + $0x18] sm:$0xff]
      %v3309 = vld [vmem:[#allocation4 + $0x20] sm:$0xff]
      %v3310 = vld [vmem:[#allocation4 + $0x28] sm:$0xff]
      %v3311 = vld [vmem:[#allocation4 + $0x30] sm:$0xff]
      %v3312 = vld [vmem:[#allocation4 + $0x38] sm:$0xff]
      %v3313 = vld [vmem:[#allocation4 + $0x40] sm:$0xff]
      %v3314 = vld [vmem:[#allocation4 + $0x48] sm:$0xff]
      %v3315 = vld [vmem:[#allocation4 + $0x50] sm:$0xff]
      %v3316 = vld [vmem:[#allocation4 + $0x58] sm:$0xff]
      %v3317 = vld [vmem:[#allocation4 + $0x60] sm:$0xff]
      %v3318 = vld [vmem:[#allocation4 + $0x68] sm:$0xff]
      %v3319 = vld [vmem:[#allocation4 + $0x70] sm:$0xff]
      %v3320 = vld [vmem:[#allocation4 + $0x78] sm:$0xff]
      %v3321 = vld [vmem:[#allocation4 + $0x80] sm:$0xff]
      %v3322 = vld [vmem:[#allocation4 + $0x88] sm:$0xff]
      %v3323 = vld [vmem:[#allocation4 + $0x90] sm:$0xff]
      %v3324 = vld [vmem:[#allocation4 + $0x98] sm:$0xff]
      %v3325 = vld [vmem:[#allocation4 + $0xa0] sm:$0xff]
      %v3326 = vld [vmem:[#allocation4 + $0xa8] sm:$0xff]
      %v3327 = vld [vmem:[#allocation4 + $0xb0] sm:$0xff]
      %v3328 = vld [vmem:[#allocation4 + $0xb8] sm:$0xff]
      %v3329 = vld [vmem:[#allocation4 + $0xc0] sm:$0xff]
      %v3330 = vld [vmem:[#allocation4 + $0xc8] sm:$0xff]
      %v3331 = vld [vmem:[#allocation4 + $0xd0] sm:$0xff]
      %v3332 = vld [vmem:[#allocation4 + $0xd8] sm:$0xff]
      %v3333 = vld [vmem:[#allocation4 + $0xe0] sm:$0xff]
      %v3334 = vld [vmem:[#allocation4 + $0xe8] sm:$0xff]
      %v3335 = vld [vmem:[#allocation4 + $0xf0] sm:$0xff]
      %v3336 = vld [vmem:[#allocation4 + $0xf8] sm:$0xff]
      %v3337 = vld [vmem:[#allocation4 + $0x100] sm:$0xff]
      %v3338 = vld [vmem:[#allocation4 + $0x108] sm:$0xff]
      %v3339 = vld [vmem:[#allocation4 + $0x110] sm:$0xff]
      %v3340 = vld [vmem:[#allocation4 + $0x118] sm:$0xff]
      %v3341 = vld [vmem:[#allocation4 + $0x120] sm:$0xff]
      %v3342 = vld [vmem:[#allocation4 + $0x128] sm:$0xff]
      %v3343 = vld [vmem:[#allocation4 + $0x130] sm:$0xff]
      %v3344 = vld [vmem:[#allocation4 + $0x138] sm:$0xff]
      %v3345 = vld [vmem:[#allocation4 + $0x140] sm:$0xff]
      %v3346 = vld [vmem:[#allocation4 + $0x148] sm:$0xff]
      %v3347 = vld [vmem:[#allocation4 + $0x150] sm:$0xff]
      %v3348 = vld [vmem:[#allocation4 + $0x158] sm:$0xff]
      %v3349 = vld [vmem:[#allocation4 + $0x160] sm:$0xff]
      %v3350 = vld [vmem:[#allocation4 + $0x168] sm:$0xff]
      %v3351 = vld [vmem:[#allocation4 + $0x170] sm:$0xff]
      %v3352 = vld [vmem:[#allocation4 + $0x178] sm:$0xff]
      %v3353 = vld [vmem:[#allocation4 + $0x180] sm:$0xff]
      %v3354 = vld [vmem:[#allocation4 + $0x188] sm:$0xff]
      %v3355 = vld [vmem:[#allocation4 + $0x190] sm:$0xff]
      %v3356 = vld [vmem:[#allocation4 + $0x198] sm:$0xff]
      %v3357 = vld [vmem:[#allocation4 + $0x1a0] sm:$0xff]
      %v3358 = vld [vmem:[#allocation4 + $0x1a8] sm:$0xff]
      %v3359 = vld [vmem:[#allocation4 + $0x1b0] sm:$0xff]
      %v3360 = vld [vmem:[#allocation4 + $0x1b8] sm:$0xff]
      %v3361 = vld [vmem:[%s9] sm:$0xff]
      %v3362 = vld [vmem:[%s9 + $0x8] sm:$0xff]
      %v3363 = vld [vmem:[%s9 + $0x10] sm:$0xff]
      %v3364 = vld [vmem:[%s9 + $0x18] sm:$0xff]
      %v3365 = vld [vmem:[%s9 + $0x20] sm:$0xff]
      %v3366 = vld [vmem:[%s9 + $0x28] sm:$0xff]
      %v3367 = vld [vmem:[%s9 + $0x30] sm:$0xff]
      %v3368 = vld [vmem:[%s9 + $0x38] sm:$0xff]
      %v3369 = vld [vmem:[%s9 + $0x40] sm:$0xff]
      %v3370 = vld [vmem:[%s9 + $0x48] sm:$0xff]
      %v3371 = vld [vmem:[%s9 + $0x50] sm:$0xff]
      %v3372 = vld [vmem:[%s9 + $0x58] sm:$0xff]
      %v3373 = vld [vmem:[%s9 + $0x60] sm:$0xff]
      %v3374 = vld [vmem:[%s9 + $0x68] sm:$0xff]
      %v3375 = vld [vmem:[%s9 + $0x70] sm:$0xff]
      %v3376 = vld [vmem:[%s9 + $0x78] sm:$0xff]
      %v3377 = vld [vmem:[%s9 + $0x80] sm:$0xff]
      %v3378 = vld [vmem:[%s9 + $0x88] sm:$0xff]
      %v3379 = vld [vmem:[%s9 + $0x90] sm:$0xff]
      %v3380 = vld [vmem:[%s9 + $0x98] sm:$0xff]
      %v3381 = vld [vmem:[%s9 + $0xa0] sm:$0xff]
      %v3382 = vld [vmem:[%s9 + $0xa8] sm:$0xff]
      %v3383 = vld [vmem:[%s9 + $0xb0] sm:$0xff]
      %v3384 = vld [vmem:[%s9 + $0xb8] sm:$0xff]
      %v3385 = vld [vmem:[#allocation4 + $0x1c0] sm:$0xff]
      %v3386 = vld [vmem:[#allocation4 + $0x1c8] sm:$0xff]
      %v3387 = vld [vmem:[#allocation4 + $0x1d0] sm:$0xff]
      %v3388 = vld [vmem:[#allocation4 + $0x1d8] sm:$0xff]
      %s3389 = scalar_lea.vmem %s9, 192
      %v3390 = vld [vmem:[%s3389] sm:$0xff]
      %v3391 = vld [vmem:[%s3389 + $0x8] sm:$0xff]
      %v3392 = vld [vmem:[%s3389 + $0x10] sm:$0xff]
      %v3393 = vld [vmem:[%s3389 + $0x18] sm:$0xff]
      %v3394 = vld [vmem:[%s3389 + $0x20] sm:$0xff]
      %v3395 = vld [vmem:[%s3389 + $0x28] sm:$0xff]
      %v3396 = vld [vmem:[%s3389 + $0x30] sm:$0xff]
      %v3397 = vld [vmem:[%s3389 + $0x38] sm:$0xff]
      %v3398 = vld [vmem:[%s3389 + $0x40] sm:$0xff]
      %v3399 = vld [vmem:[%s3389 + $0x48] sm:$0xff]
      %v3400 = vld [vmem:[%s3389 + $0x50] sm:$0xff]
      %v3401 = vld [vmem:[%s3389 + $0x58] sm:$0xff]
      %v3402 = vld [vmem:[%s3389 + $0x60] sm:$0xff]
      %v3403 = vld [vmem:[%s3389 + $0x68] sm:$0xff]
      %v3404 = vld [vmem:[%s3389 + $0x70] sm:$0xff]
      %v3405 = vld [vmem:[%s3389 + $0x78] sm:$0xff]
      %v3406 = vld [vmem:[%s3389 + $0x80] sm:$0xff]
      %v3407 = vld [vmem:[%s3389 + $0x88] sm:$0xff]
      %v3408 = vld [vmem:[%s3389 + $0x90] sm:$0xff]
      %v3409 = vld [vmem:[%s3389 + $0x98] sm:$0xff]
      %v3410 = vld [vmem:[%s3389 + $0xa0] sm:$0xff]
      %v3411 = vld [vmem:[%s3389 + $0xa8] sm:$0xff]
      %v3412 = vld [vmem:[%s3389 + $0xb0] sm:$0xff]
      %v3413 = vld [vmem:[%s3389 + $0xb8] sm:$0xff]
      %v3415 = vsel %vm2920, %v3310, 0
      %v3418 = vsel %vm2920, %v3312, 0
      %v3421 = vsel %vm2920, %v3314, 0
      %v3424 = vsel %vm2920, %v3316, 0
      %v3427 = vsel %vm2920, %v3318, 0
      %v3430 = vsel %vm2920, %v3320, 0
      %v3433 = vsel %vm2920, %v3322, 0
      %v3436 = vsel %vm2920, %v3324, 0
      %v3439 = vsel %vm2920, %v3326, 0
      %v3442 = vsel %vm2920, %v3328, 0
      %v3445 = vsel %vm2920, %v3330, 0
      %v3448 = vsel %vm2920, %v3332, 0
      %v3451 = vsel %vm2920, %v3334, 0
      %v3454 = vsel %vm2920, %v3336, 0
      %v3457 = vsel %vm2920, %v3338, 0
      %v3460 = vsel %vm2920, %v3340, 0
      %v3463 = vsel %vm2920, %v3342, 0
      %v3466 = vsel %vm2920, %v3344, 0
      %v3469 = vsel %vm2920, %v3346, 0
      %v3472 = vsel %vm2920, %v3348, 0
      %v3475 = vsel %vm2920, %v3350, 0
      %v3478 = vsel %vm2920, %v3352, 0
      %v3481 = vsel %vm2920, %v3354, 0
      %v3484 = vsel %vm2920, %v3356, 0
      %v3487 = vsel %vm2920, %v3358, 0
      %v3490 = vsel %vm2920, %v3360, 0
      %v3493 = vsel %vm2920, %v3386, 0
      %v3496 = vsel %vm2920, %v3388, 0
      %3498 = vmatprep.subr.mxu0 0.0
      %3499 = vmatpush1.msra.mxu0 %v3390
      %3500 = vmatprep.subr.mxu0 0.0
      %3501 = vmatpush1.msra.mxu0 %v3391
      %3502 = vmatprep.subr.mxu0 0.0
      %3503 = vmatpush1.msra.mxu0 %v3392
      %3504 = vmatprep.subr.mxu0 0.0
      %3505 = vmatpush1.msra.mxu0 %v3393
      %3506 = vmatprep.subr.mxu0 0.0
      %3507 = vmatpush1.msra.mxu0 %v3394
      %3508 = vmatprep.subr.mxu0 0.0
      %3509 = vmatpush1.msra.mxu0 %v3395
      %3510 = vmatprep.subr.mxu0 0.0
      %3511 = vmatpush1.msra.mxu0 %v3396
      %3512 = vmatprep.subr.mxu0 0.0
      %3513 = vmatpush1.msra.mxu0 %v3397
      %3514 = vmatprep.subr.mxu0 0.0
      %3515 = vmatpush1.msra.mxu0 %v3398
      %3516 = vmatprep.subr.mxu0 0.0
      %3517 = vmatpush1.msra.mxu0 %v3399
      %3518 = vmatprep.subr.mxu0 0.0
      %3519 = vmatpush1.msra.mxu0 %v3400
      %3520 = vmatprep.subr.mxu0 0.0
      %3521 = vmatpush1.msra.mxu0 %v3401
      %3522 = vmatprep.subr.mxu0 0.0
      %3523 = vmatpush1.msra.mxu0 %v3402
      %3524 = vmatprep.subr.mxu0 0.0
      %3525 = vmatpush1.msra.mxu0 %v3403
      %3526 = vmatprep.subr.mxu0 0.0
      %3527 = vmatpush1.msra.mxu0 %v3404
      %3528 = vmatprep.subr.mxu0 0.0
      %3529 = vmatpush1.msra.mxu0 %v3405
      %3530 = vmatprep.subr.mxu0 0.0
      %3531 = vmatpush1.msra.mxu0 %v3406
      %3532 = vmatprep.subr.mxu0 0.0
      %3533 = vmatpush1.msra.mxu0 %v3407
      %3534 = vmatprep.subr.mxu0 0.0
      %3535 = vmatpush1.msra.mxu0 %v3408
      %3536 = vmatprep.subr.mxu0 0.0
      %3537 = vmatpush1.msra.mxu0 %v3409
      %3538 = vmatprep.subr.mxu0 0.0
      %3539 = vmatpush1.msra.mxu0 %v3410
      %3540 = vmatprep.subr.mxu0 0.0
      %3541 = vmatpush1.msra.mxu0 %v3411
      %3542 = vmatprep.subr.mxu0 0.0
      %3543 = vmatpush1.msra.mxu0 %v3412
      %3544 = vmatprep.subr.mxu0 0.0
      %3545 = vmatpush1.msra.mxu0 %v3413
      %3546 = vmatprep.subr.mxu0 0.0
      %3547 = vmatpush1.msra.mxu0 0.0
      %3548 = vmatprep.subr.mxu0 0.0
      %3549 = vmatpush1.msra.mxu0 0.0
      %3550 = vmatprep.subr.mxu0 0.0
      %3551 = vmatpush1.msra.mxu0 0.0
      %3552 = vmatprep.subr.mxu0 0.0
      %3553 = vmatpush1.msra.mxu0 0.0
      %3554 = vmatprep.subr.mxu0 0.0
      %3555 = vmatpush1.msra.mxu0 0.0
      %3556 = vmatprep.subr.mxu0 0.0
      %3557 = vmatpush1.msra.mxu0 0.0
      %3558 = vmatprep.subr.mxu0 0.0
      %3559 = vmatpush1.msra.mxu0 0.0
      %3560 = vmatprep.subr.mxu0 0.0
      %3561 = vmatpush1.msra.mxu0 0.0
      %3562 = vmatprep.mubr.f32.mxu0 %v3415
      %3563 = vmatmul.mubr.f32.gmra.mrb[0].mxu0 %v3309
      %v3564 = vpop.f32.mrb[0].mxu0
      %v3565 = vadd.f32 0.0, %v3564
      %v3566 = vpop.f32.mrb[0].mxu0
      %3567 = vmatprep.mubr.f32.mxu0 %v3418
      %3568 = vmatmul.mubr.f32.gmra.mrb[0].mxu0 %v3311
      %v3569 = vpop.f32.mrb[0].mxu0
      %v3570 = vadd.f32 0.0, %v3569
      %v3571 = vpop.f32.mrb[0].mxu0
      %3572 = vmatprep.mubr.f32.mxu0 %v3421
      %3573 = vmatmul.mubr.f32.gmra.mrb[0].mxu0 %v3313
      %v3574 = vpop.f32.mrb[0].mxu0
      %v3575 = vadd.f32 0.0, %v3574
      %v3576 = vpop.f32.mrb[0].mxu0
      %3577 = vmatprep.mubr.f32.mxu0 %v3424
      %3578 = vmatmul.mubr.f32.gmra.mrb[0].mxu0 %v3315
      %v3579 = vpop.f32.mrb[0].mxu0
      %v3580 = vadd.f32 0.0, %v3579
      %v3581 = vpop.f32.mrb[0].mxu0
      %3582 = vmatprep.mubr.f32.mxu0 %v3427
      %3583 = vmatmul.mubr.f32.gmra.mrb[0].mxu0 %v3317
      %v3584 = vpop.f32.mrb[0].mxu0
      %v3585 = vadd.f32 0.0, %v3584
      %v3586 = vpop.f32.mrb[0].mxu0
      %3587 = vmatprep.mubr.f32.mxu0 %v3430
      %3588 = vmatmul.mubr.f32.gmra.mrb[0].mxu0 %v3319
      %v3589 = vpop.f32.mrb[0].mxu0
      %v3590 = vadd.f32 0.0, %v3589
      %v3591 = vpop.f32.mrb[0].mxu0
      %3592 = vmatprep.mubr.f32.mxu0 %v3433
      %3593 = vmatmul.mubr.f32.gmra.mrb[0].mxu0 %v3321
      %v3594 = vpop.f32.mrb[0].mxu0
      %v3595 = vadd.f32 0.0, %v3594
      %v3596 = vpop.f32.mrb[0].mxu0
      %3597 = vmatprep.mubr.f32.mxu0 %v3436
      %3598 = vmatmul.mubr.f32.gmra.mrb[0].mxu0 %v3323
      %v3599 = vpop.f32.mrb[0].mxu0
      %v3600 = vadd.f32 0.0, %v3599
      %v3601 = vpop.f32.mrb[0].mxu0
      %3602 = vmatprep.mubr.f32.mxu0 %v3439
      %3603 = vmatmul.mubr.f32.gmra.mrb[0].mxu0 %v3325
      %v3604 = vpop.f32.mrb[0].mxu0
      %v3605 = vadd.f32 0.0, %v3604
      %v3606 = vpop.f32.mrb[0].mxu0
      %3607 = vmatprep.mubr.f32.mxu0 %v3442
      %3608 = vmatmul.mubr.f32.gmra.mrb[0].mxu0 %v3327
      %v3609 = vpop.f32.mrb[0].mxu0
      %v3610 = vadd.f32 0.0, %v3609
      %v3611 = vpop.f32.mrb[0].mxu0
      %3612 = vmatprep.mubr.f32.mxu0 %v3445
      %3613 = vmatmul.mubr.f32.gmra.mrb[0].mxu0 %v3329
      %v3614 = vpop.f32.mrb[0].mxu0
      %v3615 = vadd.f32 0.0, %v3614
      %v3616 = vpop.f32.mrb[0].mxu0
      %3617 = vmatprep.mubr.f32.mxu0 %v3448
      %3618 = vmatmul.mubr.f32.gmra.mrb[0].mxu0 %v3331
      %v3619 = vpop.f32.mrb[0].mxu0
      %v3620 = vadd.f32 0.0, %v3619
      %v3621 = vpop.f32.mrb[0].mxu0
      %3622 = vmatprep.mubr.f32.mxu0 %v3451
      %3623 = vmatmul.mubr.f32.gmra.mrb[0].mxu0 %v3333
      %v3624 = vpop.f32.mrb[0].mxu0
      %v3625 = vadd.f32 0.0, %v3624
      %v3626 = vpop.f32.mrb[0].mxu0
      %3627 = vmatprep.mubr.f32.mxu0 %v3454
      %3628 = vmatmul.mubr.f32.gmra.mrb[0].mxu0 %v3335
      %v3629 = vpop.f32.mrb[0].mxu0
      %v3630 = vadd.f32 0.0, %v3629
      %v3631 = vpop.f32.mrb[0].mxu0
      %3632 = vmatprep.mubr.f32.mxu0 %v3457
      %3633 = vmatmul.mubr.f32.gmra.mrb[0].mxu0 %v3337
      %v3634 = vpop.f32.mrb[0].mxu0
      %v3635 = vadd.f32 0.0, %v3634
      %v3636 = vpop.f32.mrb[0].mxu0
      %3637 = vmatprep.mubr.f32.mxu0 %v3460
      %3638 = vmatmul.mubr.f32.gmra.mrb[0].mxu0 %v3339
      %v3639 = vpop.f32.mrb[0].mxu0
      %v3640 = vadd.f32 0.0, %v3639
      %v3641 = vpop.f32.mrb[0].mxu0
      %3642 = vmatprep.mubr.f32.mxu0 %v3463
      %3643 = vmatmul.mubr.f32.gmra.mrb[0].mxu0 %v3341
      %v3644 = vpop.f32.mrb[0].mxu0
      %v3645 = vadd.f32 0.0, %v3644
      %v3646 = vpop.f32.mrb[0].mxu0
      %3647 = vmatprep.mubr.f32.mxu0 %v3466
      %3648 = vmatmul.mubr.f32.gmra.mrb[0].mxu0 %v3343
      %v3649 = vpop.f32.mrb[0].mxu0
      %v3650 = vadd.f32 0.0, %v3649
      %v3651 = vpop.f32.mrb[0].mxu0
      %3652 = vmatprep.mubr.f32.mxu0 %v3469
      %3653 = vmatmul.mubr.f32.gmra.mrb[0].mxu0 %v3345
      %v3654 = vpop.f32.mrb[0].mxu0
      %v3655 = vadd.f32 0.0, %v3654
      %v3656 = vpop.f32.mrb[0].mxu0
      %3657 = vmatprep.mubr.f32.mxu0 %v3472
      %3658 = vmatmul.mubr.f32.gmra.mrb[0].mxu0 %v3347
      %v3659 = vpop.f32.mrb[0].mxu0
      %v3660 = vadd.f32 0.0, %v3659
      %v3661 = vpop.f32.mrb[0].mxu0
      %3662 = vmatprep.mubr.f32.mxu0 %v3475
      %3663 = vmatmul.mubr.f32.gmra.mrb[0].mxu0 %v3349
      %v3664 = vpop.f32.mrb[0].mxu0
      %v3665 = vadd.f32 0.0, %v3664
      %v3666 = vpop.f32.mrb[0].mxu0
      %3667 = vmatprep.mubr.f32.mxu0 %v3478
      %3668 = vmatmul.mubr.f32.gmra.mrb[0].mxu0 %v3351
      %v3669 = vpop.f32.mrb[0].mxu0
      %v3670 = vadd.f32 0.0, %v3669
      %v3671 = vpop.f32.mrb[0].mxu0
      %3672 = vmatprep.mubr.f32.mxu0 %v3481
      %3673 = vmatmul.mubr.f32.gmra.mrb[0].mxu0 %v3353
      %v3674 = vpop.f32.mrb[0].mxu0
      %v3675 = vadd.f32 0.0, %v3674
      %v3676 = vpop.f32.mrb[0].mxu0
      %3677 = vmatprep.mubr.f32.mxu0 %v3484
      %3678 = vmatmul.mubr.f32.gmra.mrb[0].mxu0 %v3355
      %v3679 = vpop.f32.mrb[0].mxu0
      %v3680 = vadd.f32 0.0, %v3679
      %v3681 = vpop.f32.mrb[0].mxu0
      %3682 = vmatprep.mubr.f32.mxu0 %v3487
      %3683 = vmatmul.mubr.f32.gmra.mrb[0].mxu0 %v3357
      %v3684 = vpop.f32.mrb[0].mxu0
      %v3685 = vadd.f32 0.0, %v3684
      %v3686 = vpop.f32.mrb[0].mxu0
      %3687 = vmatprep.mubr.f32.mxu0 %v3490
      %3688 = vmatmul.mubr.f32.gmra.mrb[0].mxu0 %v3359
      %v3689 = vpop.f32.mrb[0].mxu0
      %v3690 = vadd.f32 0.0, %v3689
      %v3691 = vpop.f32.mrb[0].mxu0
      %3692 = vmatprep.mubr.f32.mxu0 %v3493
      %3693 = vmatmul.mubr.f32.gmra.mrb[0].mxu0 %v3385
      %v3694 = vpop.f32.mrb[0].mxu0
      %v3695 = vadd.f32 0.0, %v3694
      %v3696 = vpop.f32.mrb[0].mxu0
      %3697 = vmatprep.mubr.f32.mxu0 %v3496
      %3698 = vmatmul.mubr.f32.gmra.mrb[0].mxu0 %v3387
      %v3699 = vpop.f32.mrb[0].mxu0
      %v3700 = vadd.f32 0.0, %v3699
      %v3701 = vpop.f32.mrb[0].mxu0
      %3702 = vdwg.mxu0
      %v3704 = vsel %vm2920, %v3306, 0
      %v3707 = vsel %vm2920, %v3308, 0
      %3709 = vmatprep.subr.mxu0 0.0
      %3710 = vmatpush1.msra.mxu0 %v3361
      %3711 = vmatprep.subr.mxu0 0.0
      %3712 = vmatpush1.msra.mxu0 %v3362
      %3713 = vmatprep.subr.mxu0 0.0
      %3714 = vmatpush1.msra.mxu0 %v3363
      %3715 = vmatprep.subr.mxu0 0.0
      %3716 = vmatpush1.msra.mxu0 %v3364
      %3717 = vmatprep.subr.mxu0 0.0
      %3718 = vmatpush1.msra.mxu0 %v3365
      %3719 = vmatprep.subr.mxu0 0.0
      %3720 = vmatpush1.msra.mxu0 %v3366
      %3721 = vmatprep.subr.mxu0 0.0
      %3722 = vmatpush1.msra.mxu0 %v3367
      %3723 = vmatprep.subr.mxu0 0.0
      %3724 = vmatpush1.msra.mxu0 %v3368
      %3725 = vmatprep.subr.mxu0 0.0
      %3726 = vmatpush1.msra.mxu0 %v3369
      %3727 = vmatprep.subr.mxu0 0.0
      %3728 = vmatpush1.msra.mxu0 %v3370
      %3729 = vmatprep.subr.mxu0 0.0
      %3730 = vmatpush1.msra.mxu0 %v3371
      %3731 = vmatprep.subr.mxu0 0.0
      %3732 = vmatpush1.msra.mxu0 %v3372
      %3733 = vmatprep.subr.mxu0 0.0
      %3734 = vmatpush1.msra.mxu0 %v3373
      %3735 = vmatprep.subr.mxu0 0.0
      %3736 = vmatpush1.msra.mxu0 %v3374
      %3737 = vmatprep.subr.mxu0 0.0
      %3738 = vmatpush1.msra.mxu0 %v3375
      %3739 = vmatprep.subr.mxu0 0.0
      %3740 = vmatpush1.msra.mxu0 %v3376
      %3741 = vmatprep.subr.mxu0 0.0
      %3742 = vmatpush1.msra.mxu0 %v3377
      %3743 = vmatprep.subr.mxu0 0.0
      %3744 = vmatpush1.msra.mxu0 %v3378
      %3745 = vmatprep.subr.mxu0 0.0
      %3746 = vmatpush1.msra.mxu0 %v3379
      %3747 = vmatprep.subr.mxu0 0.0
      %3748 = vmatpush1.msra.mxu0 %v3380
      %3749 = vmatprep.subr.mxu0 0.0
      %3750 = vmatpush1.msra.mxu0 %v3381
      %3751 = vmatprep.subr.mxu0 0.0
      %3752 = vmatpush1.msra.mxu0 %v3382
      %3753 = vmatprep.subr.mxu0 0.0
      %3754 = vmatpush1.msra.mxu0 %v3383
      %3755 = vmatprep.subr.mxu0 0.0
      %3756 = vmatpush1.msra.mxu0 %v3384
      %3757 = vmatprep.subr.mxu0 0.0
      %3758 = vmatpush1.msra.mxu0 0.0
      %3759 = vmatprep.subr.mxu0 0.0
      %3760 = vmatpush1.msra.mxu0 0.0
      %3761 = vmatprep.subr.mxu0 0.0
      %3762 = vmatpush1.msra.mxu0 0.0
      %3763 = vmatprep.subr.mxu0 0.0
      %3764 = vmatpush1.msra.mxu0 0.0
      %3765 = vmatprep.subr.mxu0 0.0
      %3766 = vmatpush1.msra.mxu0 0.0
      %3767 = vmatprep.subr.mxu0 0.0
      %3768 = vmatpush1.msra.mxu0 0.0
      %3769 = vmatprep.subr.mxu0 0.0
      %3770 = vmatpush1.msra.mxu0 0.0
      %3771 = vmatprep.subr.mxu0 0.0
      %3772 = vmatpush1.msra.mxu0 0.0
      %3773 = vmatprep.mubr.f32.mxu0 %v3704
      %3774 = vmatmul.mubr.f32.gmra.mrb[0].mxu0 %v3305
      %v3775 = vpop.f32.mrb[0].mxu0
      %v3776 = vadd.f32 %v3565, %v3775
      %v3777 = vpop.f32.mrb[0].mxu0
      %3778 = vmatprep.mubr.f32.mxu0 %v3707
      %3779 = vmatmul.mubr.f32.gmra.mrb[0].mxu0 %v3307
      %v3780 = vpop.f32.mrb[0].mxu0
      %v3781 = vadd.f32 %v3570, %v3780
      %v3782 = vpop.f32.mrb[0].mxu0
      %3783 = vmatprep.mubr.f32.mxu0 %v3415
      %3784 = vmatmul.mubr.f32.gmra.mrb[0].mxu0 %v3309
      %v3785 = vpop.f32.mrb[0].mxu0
      %v3786 = vadd.f32 %v3575, %v3785
      %v3787 = vpop.f32.mrb[0].mxu0
      %3788 = vmatprep.mubr.f32.mxu0 %v3418
      %3789 = vmatmul.mubr.f32.gmra.mrb[0].mxu0 %v3311
      %v3790 = vpop.f32.mrb[0].mxu0
      %v3791 = vadd.f32 %v3580, %v3790
      %v3792 = vpop.f32.mrb[0].mxu0
      %3793 = vmatprep.mubr.f32.mxu0 %v3421
      %3794 = vmatmul.mubr.f32.gmra.mrb[0].mxu0 %v3313
      %v3795 = vpop.f32.mrb[0].mxu0
      %v3796 = vadd.f32 %v3585, %v3795
      %v3797 = vpop.f32.mrb[0].mxu0
      %3798 = vmatprep.mubr.f32.mxu0 %v3424
      %3799 = vmatmul.mubr.f32.gmra.mrb[0].mxu0 %v3315
      %v3800 = vpop.f32.mrb[0].mxu0
      %v3801 = vadd.f32 %v3590, %v3800
      %v3802 = vpop.f32.mrb[0].mxu0
      %3803 = vmatprep.mubr.f32.mxu0 %v3427
      %3804 = vmatmul.mubr.f32.gmra.mrb[0].mxu0 %v3317
      %v3805 = vpop.f32.mrb[0].mxu0
      %v3806 = vadd.f32 %v3595, %v3805
      %v3807 = vpop.f32.mrb[0].mxu0
      %3808 = vmatprep.mubr.f32.mxu0 %v3430
      %3809 = vmatmul.mubr.f32.gmra.mrb[0].mxu0 %v3319
      %v3810 = vpop.f32.mrb[0].mxu0
      %v3811 = vadd.f32 %v3600, %v3810
      %v3812 = vpop.f32.mrb[0].mxu0
      %3813 = vmatprep.mubr.f32.mxu0 %v3433
      %3814 = vmatmul.mubr.f32.gmra.mrb[0].mxu0 %v3321
      %v3815 = vpop.f32.mrb[0].mxu0
      %v3816 = vadd.f32 %v3605, %v3815
      %v3817 = vpop.f32.mrb[0].mxu0
      %3818 = vmatprep.mubr.f32.mxu0 %v3436
      %3819 = vmatmul.mubr.f32.gmra.mrb[0].mxu0 %v3323
      %v3820 = vpop.f32.mrb[0].mxu0
      %v3821 = vadd.f32 %v3610, %v3820
      %v3822 = vpop.f32.mrb[0].mxu0
      %3823 = vmatprep.mubr.f32.mxu0 %v3439
      %3824 = vmatmul.mubr.f32.gmra.mrb[0].mxu0 %v3325
      %v3825 = vpop.f32.mrb[0].mxu0
      %v3826 = vadd.f32 %v3615, %v3825
      %v3827 = vpop.f32.mrb[0].mxu0
      %3828 = vmatprep.mubr.f32.mxu0 %v3442
      %3829 = vmatmul.mubr.f32.gmra.mrb[0].mxu0 %v3327
      %v3830 = vpop.f32.mrb[0].mxu0
      %v3831 = vadd.f32 %v3620, %v3830
      %v3832 = vpop.f32.mrb[0].mxu0
      %3833 = vmatprep.mubr.f32.mxu0 %v3445
      %3834 = vmatmul.mubr.f32.gmra.mrb[0].mxu0 %v3329
      %v3835 = vpop.f32.mrb[0].mxu0
      %v3836 = vadd.f32 %v3625, %v3835
      %v3837 = vpop.f32.mrb[0].mxu0
      %3838 = vmatprep.mubr.f32.mxu0 %v3448
      %3839 = vmatmul.mubr.f32.gmra.mrb[0].mxu0 %v3331
      %v3840 = vpop.f32.mrb[0].mxu0
      %v3841 = vadd.f32 %v3630, %v3840
      %v3842 = vpop.f32.mrb[0].mxu0
      %3843 = vmatprep.mubr.f32.mxu0 %v3451
      %3844 = vmatmul.mubr.f32.gmra.mrb[0].mxu0 %v3333
      %v3845 = vpop.f32.mrb[0].mxu0
      %v3846 = vadd.f32 %v3635, %v3845
      %v3847 = vpop.f32.mrb[0].mxu0
      %3848 = vmatprep.mubr.f32.mxu0 %v3454
      %3849 = vmatmul.mubr.f32.gmra.mrb[0].mxu0 %v3335
      %v3850 = vpop.f32.mrb[0].mxu0
      %v3851 = vadd.f32 %v3640, %v3850
      %v3852 = vpop.f32.mrb[0].mxu0
      %3853 = vmatprep.mubr.f32.mxu0 %v3457
      %3854 = vmatmul.mubr.f32.gmra.mrb[0].mxu0 %v3337
      %v3855 = vpop.f32.mrb[0].mxu0
      %v3856 = vadd.f32 %v3645, %v3855
      %v3857 = vpop.f32.mrb[0].mxu0
      %3858 = vmatprep.mubr.f32.mxu0 %v3460
      %3859 = vmatmul.mubr.f32.gmra.mrb[0].mxu0 %v3339
      %v3860 = vpop.f32.mrb[0].mxu0
      %v3861 = vadd.f32 %v3650, %v3860
      %v3862 = vpop.f32.mrb[0].mxu0
      %3863 = vmatprep.mubr.f32.mxu0 %v3463
      %3864 = vmatmul.mubr.f32.gmra.mrb[0].mxu0 %v3341
      %v3865 = vpop.f32.mrb[0].mxu0
      %v3866 = vadd.f32 %v3655, %v3865
      %v3867 = vpop.f32.mrb[0].mxu0
      %3868 = vmatprep.mubr.f32.mxu0 %v3466
      %3869 = vmatmul.mubr.f32.gmra.mrb[0].mxu0 %v3343
      %v3870 = vpop.f32.mrb[0].mxu0
      %v3871 = vadd.f32 %v3660, %v3870
      %v3872 = vpop.f32.mrb[0].mxu0
      %3873 = vmatprep.mubr.f32.mxu0 %v3469
      %3874 = vmatmul.mubr.f32.gmra.mrb[0].mxu0 %v3345
      %v3875 = vpop.f32.mrb[0].mxu0
      %v3876 = vadd.f32 %v3665, %v3875
      %v3877 = vpop.f32.mrb[0].mxu0
      %3878 = vmatprep.mubr.f32.mxu0 %v3472
      %3879 = vmatmul.mubr.f32.gmra.mrb[0].mxu0 %v3347
      %v3880 = vpop.f32.mrb[0].mxu0
      %v3881 = vadd.f32 %v3670, %v3880
      %v3882 = vpop.f32.mrb[0].mxu0
      %3883 = vmatprep.mubr.f32.mxu0 %v3475
      %3884 = vmatmul.mubr.f32.gmra.mrb[0].mxu0 %v3349
      %v3885 = vpop.f32.mrb[0].mxu0
      %v3886 = vadd.f32 %v3675, %v3885
      %v3887 = vpop.f32.mrb[0].mxu0
      %3888 = vmatprep.mubr.f32.mxu0 %v3478
      %3889 = vmatmul.mubr.f32.gmra.mrb[0].mxu0 %v3351
      %v3890 = vpop.f32.mrb[0].mxu0
      %v3891 = vadd.f32 %v3680, %v3890
      %v3892 = vpop.f32.mrb[0].mxu0
      %3893 = vmatprep.mubr.f32.mxu0 %v3481
      %3894 = vmatmul.mubr.f32.gmra.mrb[0].mxu0 %v3353
      %v3895 = vpop.f32.mrb[0].mxu0
      %v3896 = vadd.f32 %v3685, %v3895
      %v3897 = vpop.f32.mrb[0].mxu0
      %3898 = vmatprep.mubr.f32.mxu0 %v3484
      %3899 = vmatmul.mubr.f32.gmra.mrb[0].mxu0 %v3355
      %v3900 = vpop.f32.mrb[0].mxu0
      %v3901 = vadd.f32 %v3690, %v3900
      %v3902 = vpop.f32.mrb[0].mxu0
      %3903 = vmatprep.mubr.f32.mxu0 %v3487
      %3904 = vmatmul.mubr.f32.gmra.mrb[0].mxu0 %v3357
      %v3905 = vpop.f32.mrb[0].mxu0
      %v3906 = vadd.f32 %v3695, %v3905
      %v3907 = vpop.f32.mrb[0].mxu0
      %3908 = vmatprep.mubr.f32.mxu0 %v3490
      %3909 = vmatmul.mubr.f32.gmra.mrb[0].mxu0 %v3359
      %v3910 = vpop.f32.mrb[0].mxu0
      %v3911 = vadd.f32 %v3700, %v3910
      %v3912 = vpop.f32.mrb[0].mxu0
      %3913 = vdwg.mxu0
      %v3914 = vld [vmem:[#allocation4 + $0x40] sm:$0xff]
      %v3915 = vld [vmem:[#allocation4 + $0x48] sm:$0xff]
      %v3916 = vld [vmem:[#allocation4 + $0x50] sm:$0xff]
      %v3917 = vld [vmem:[#allocation4 + $0x58] sm:$0xff]
      %v3918 = vld [vmem:[#allocation4 + $0x60] sm:$0xff]
      %v3919 = vld [vmem:[#allocation4 + $0x68] sm:$0xff]
      %v3920 = vld [vmem:[#allocation4 + $0x70] sm:$0xff]
      %v3921 = vld [vmem:[#allocation4 + $0x78] sm:$0xff]
      %v3922 = vld [vmem:[#allocation4 + $0x80] sm:$0xff]
      %v3923 = vld [vmem:[#allocation4 + $0x88] sm:$0xff]
      %v3924 = vld [vmem:[#allocation4 + $0x90] sm:$0xff]
      %v3925 = vld [vmem:[#allocation4 + $0x98] sm:$0xff]
      %v3926 = vld [vmem:[#allocation4 + $0xa0] sm:$0xff]
      %v3927 = vld [vmem:[#allocation4 + $0xa8] sm:$0xff]
      %v3928 = vld [vmem:[#allocation4 + $0xb0] sm:$0xff]
      %v3929 = vld [vmem:[#allocation4 + $0xb8] sm:$0xff]
      %v3930 = vld [vmem:[#allocation4 + $0xc0] sm:$0xff]
      %v3931 = vld [vmem:[#allocation4 + $0xc8] sm:$0xff]
      %v3932 = vld [vmem:[#allocation4 + $0xd0] sm:$0xff]
      %v3933 = vld [vmem:[#allocation4 + $0xd8] sm:$0xff]
      %v3934 = vld [vmem:[#allocation4 + $0xe0] sm:$0xff]
      %v3935 = vld [vmem:[#allocation4 + $0xe8] sm:$0xff]
      %v3936 = vld [vmem:[#allocation4 + $0xf0] sm:$0xff]
      %v3937 = vld [vmem:[#allocation4 + $0xf8] sm:$0xff]
      %v3938 = vld [vmem:[#allocation4 + $0x100] sm:$0xff]
      %v3939 = vld [vmem:[#allocation4 + $0x108] sm:$0xff]
      %v3940 = vld [vmem:[#allocation4 + $0x110] sm:$0xff]
      %v3941 = vld [vmem:[#allocation4 + $0x118] sm:$0xff]
      %v3942 = vld [vmem:[#allocation4 + $0x120] sm:$0xff]
      %v3943 = vld [vmem:[#allocation4 + $0x128] sm:$0xff]
      %v3944 = vld [vmem:[#allocation4 + $0x130] sm:$0xff]
      %v3945 = vld [vmem:[#allocation4 + $0x138] sm:$0xff]
      %v3946 = vld [vmem:[#allocation4 + $0x140] sm:$0xff]
      %v3947 = vld [vmem:[#allocation4 + $0x148] sm:$0xff]
      %v3948 = vld [vmem:[#allocation4 + $0x150] sm:$0xff]
      %v3949 = vld [vmem:[#allocation4 + $0x158] sm:$0xff]
      %v3950 = vld [vmem:[#allocation4 + $0x160] sm:$0xff]
      %v3951 = vld [vmem:[#allocation4 + $0x168] sm:$0xff]
      %v3952 = vld [vmem:[#allocation4 + $0x170] sm:$0xff]
      %v3953 = vld [vmem:[#allocation4 + $0x178] sm:$0xff]
      %v3954 = vld [vmem:[#allocation4 + $0x180] sm:$0xff]
      %v3955 = vld [vmem:[#allocation4 + $0x188] sm:$0xff]
      %v3956 = vld [vmem:[#allocation4 + $0x190] sm:$0xff]
      %v3957 = vld [vmem:[#allocation4 + $0x198] sm:$0xff]
      %v3958 = vld [vmem:[#allocation4 + $0x1a0] sm:$0xff]
      %v3959 = vld [vmem:[#allocation4 + $0x1a8] sm:$0xff]
      %v3960 = vld [vmem:[#allocation4 + $0x1b0] sm:$0xff]
      %v3961 = vld [vmem:[#allocation4 + $0x1b8] sm:$0xff]
      %v3962 = vld [vmem:[#allocation4 + $0x1c0] sm:$0xff]
      %v3963 = vld [vmem:[#allocation4 + $0x1c8] sm:$0xff]
      %v3964 = vld [vmem:[#allocation4 + $0x1d0] sm:$0xff]
      %v3965 = vld [vmem:[#allocation4 + $0x1d8] sm:$0xff]
      %v3966 = vld [vmem:[#allocation4 + $0x1e0] sm:$0xff]
      %v3967 = vld [vmem:[#allocation4 + $0x1e8] sm:$0xff]
      %v3968 = vld [vmem:[#allocation4 + $0x1f0] sm:$0xff]
      %v3969 = vld [vmem:[#allocation4 + $0x1f8] sm:$0xff]
      %s3970 = scalar_lea.vmem %s9, 384
      %v3971 = vld [vmem:[%s3970] sm:$0xff]
      %v3972 = vld [vmem:[%s3970 + $0x8] sm:$0xff]
      %v3973 = vld [vmem:[%s3970 + $0x10] sm:$0xff]
      %v3974 = vld [vmem:[%s3970 + $0x18] sm:$0xff]
      %v3975 = vld [vmem:[%s3970 + $0x20] sm:$0xff]
      %v3976 = vld [vmem:[%s3970 + $0x28] sm:$0xff]
      %v3977 = vld [vmem:[%s3970 + $0x30] sm:$0xff]
      %v3978 = vld [vmem:[%s3970 + $0x38] sm:$0xff]
      %v3979 = vld [vmem:[%s3970 + $0x40] sm:$0xff]
      %v3980 = vld [vmem:[%s3970 + $0x48] sm:$0xff]
      %v3981 = vld [vmem:[%s3970 + $0x50] sm:$0xff]
      %v3982 = vld [vmem:[%s3970 + $0x58] sm:$0xff]
      %v3983 = vld [vmem:[%s3970 + $0x60] sm:$0xff]
      %v3984 = vld [vmem:[%s3970 + $0x68] sm:$0xff]
      %v3985 = vld [vmem:[%s3970 + $0x70] sm:$0xff]
      %v3986 = vld [vmem:[%s3970 + $0x78] sm:$0xff]
      %v3987 = vld [vmem:[%s3970 + $0x80] sm:$0xff]
      %v3988 = vld [vmem:[%s3970 + $0x88] sm:$0xff]
      %v3989 = vld [vmem:[%s3970 + $0x90] sm:$0xff]
      %v3990 = vld [vmem:[%s3970 + $0x98] sm:$0xff]
      %v3991 = vld [vmem:[%s3970 + $0xa0] sm:$0xff]
      %v3992 = vld [vmem:[%s3970 + $0xa8] sm:$0xff]
      %v3993 = vld [vmem:[%s3970 + $0xb0] sm:$0xff]
      %v3994 = vld [vmem:[%s3970 + $0xb8] sm:$0xff]
      %v3996 = vsel %vm2920, %v3915, 0
      %v3999 = vsel %vm2920, %v3917, 0
      %v4002 = vsel %vm2920, %v3919, 0
      %v4005 = vsel %vm2920, %v3921, 0
      %v4008 = vsel %vm2920, %v3923, 0
      %v4011 = vsel %vm2920, %v3925, 0
      %v4014 = vsel %vm2920, %v3927, 0
      %v4017 = vsel %vm2920, %v3929, 0
      %v4020 = vsel %vm2920, %v3931, 0
      %v4023 = vsel %vm2920, %v3933, 0
      %v4026 = vsel %vm2920, %v3935, 0
      %v4029 = vsel %vm2920, %v3937, 0
      %v4032 = vsel %vm2920, %v3939, 0
      %v4035 = vsel %vm2920, %v3941, 0
      %v4038 = vsel %vm2920, %v3943, 0
      %v4041 = vsel %vm2920, %v3945, 0
      %v4044 = vsel %vm2920, %v3947, 0
      %v4047 = vsel %vm2920, %v3949, 0
      %v4050 = vsel %vm2920, %v3951, 0
      %v4053 = vsel %vm2920, %v3953, 0
      %v4056 = vsel %vm2920, %v3955, 0
      %v4059 = vsel %vm2920, %v3957, 0
      %v4062 = vsel %vm2920, %v3959, 0
      %v4065 = vsel %vm2920, %v3961, 0
      %v4068 = vsel %vm2920, %v3963, 0
      %v4071 = vsel %vm2920, %v3965, 0
      %v4074 = vsel %vm2920, %v3967, 0
      %v4077 = vsel %vm2920, %v3969, 0
      %4079 = vmatprep.subr.mxu0 0.0
      %4080 = vmatpush1.msra.mxu0 %v3971
      %4081 = vmatprep.subr.mxu0 0.0
      %4082 = vmatpush1.msra.mxu0 %v3972
      %4083 = vmatprep.subr.mxu0 0.0
      %4084 = vmatpush1.msra.mxu0 %v3973
      %4085 = vmatprep.subr.mxu0 0.0
      %4086 = vmatpush1.msra.mxu0 %v3974
      %4087 = vmatprep.subr.mxu0 0.0
      %4088 = vmatpush1.msra.mxu0 %v3975
      %4089 = vmatprep.subr.mxu0 0.0
      %4090 = vmatpush1.msra.mxu0 %v3976
      %4091 = vmatprep.subr.mxu0 0.0
      %4092 = vmatpush1.msra.mxu0 %v3977
      %4093 = vmatprep.subr.mxu0 0.0
      %4094 = vmatpush1.msra.mxu0 %v3978
      %4095 = vmatprep.subr.mxu0 0.0
      %4096 = vmatpush1.msra.mxu0 %v3979
      %4097 = vmatprep.subr.mxu0 0.0
      %4098 = vmatpush1.msra.mxu0 %v3980
      %4099 = vmatprep.subr.mxu0 0.0
      %4100 = vmatpush1.msra.mxu0 %v3981
      %4101 = vmatprep.subr.mxu0 0.0
      %4102 = vmatpush1.msra.mxu0 %v3982
      %4103 = vmatprep.subr.mxu0 0.0
      %4104 = vmatpush1.msra.mxu0 %v3983
      %4105 = vmatprep.subr.mxu0 0.0
      %4106 = vmatpush1.msra.mxu0 %v3984
      %4107 = vmatprep.subr.mxu0 0.0
      %4108 = vmatpush1.msra.mxu0 %v3985
      %4109 = vmatprep.subr.mxu0 0.0
      %4110 = vmatpush1.msra.mxu0 %v3986
      %4111 = vmatprep.subr.mxu0 0.0
      %4112 = vmatpush1.msra.mxu0 %v3987
      %4113 = vmatprep.subr.mxu0 0.0
      %4114 = vmatpush1.msra.mxu0 %v3988
      %4115 = vmatprep.subr.mxu0 0.0
      %4116 = vmatpush1.msra.mxu0 %v3989
      %4117 = vmatprep.subr.mxu0 0.0
      %4118 = vmatpush1.msra.mxu0 %v3990
      %4119 = vmatprep.subr.mxu0 0.0
      %4120 = vmatpush1.msra.mxu0 %v3991
      %4121 = vmatprep.subr.mxu0 0.0
      %4122 = vmatpush1.msra.mxu0 %v3992
      %4123 = vmatprep.subr.mxu0 0.0
      %4124 = vmatpush1.msra.mxu0 %v3993
      %4125 = vmatprep.subr.mxu0 0.0
      %4126 = vmatpush1.msra.mxu0 %v3994
      %4127 = vmatprep.subr.mxu0 0.0
      %4128 = vmatpush1.msra.mxu0 0.0
      %4129 = vmatprep.subr.mxu0 0.0
      %4130 = vmatpush1.msra.mxu0 0.0
      %4131 = vmatprep.subr.mxu0 0.0
      %4132 = vmatpush1.msra.mxu0 0.0
      %4133 = vmatprep.subr.mxu0 0.0
      %4134 = vmatpush1.msra.mxu0 0.0
      %4135 = vmatprep.subr.mxu0 0.0
      %4136 = vmatpush1.msra.mxu0 0.0
      %4137 = vmatprep.subr.mxu0 0.0
      %4138 = vmatpush1.msra.mxu0 0.0
      %4139 = vmatprep.subr.mxu0 0.0
      %4140 = vmatpush1.msra.mxu0 0.0
      %4141 = vmatprep.subr.mxu0 0.0
      %4142 = vmatpush1.msra.mxu0 0.0
      %4143 = vmatprep.mubr.f32.mxu0 %v3996
      %4144 = vmatmul.mubr.f32.gmra.mrb[0].mxu0 %v3914
      %v4145 = vpop.f32.mrb[0].mxu0
      %v4146 = vadd.f32 0.0, %v4145
      %v4147 = vpop.f32.mrb[0].mxu0
      %4148 = vmatprep.mubr.f32.mxu0 %v3999
      %4149 = vmatmul.mubr.f32.gmra.mrb[0].mxu0 %v3916
      %v4150 = vpop.f32.mrb[0].mxu0
      %v4151 = vadd.f32 0.0, %v4150
      %v4152 = vpop.f32.mrb[0].mxu0
      %4153 = vmatprep.mubr.f32.mxu0 %v4002
      %4154 = vmatmul.mubr.f32.gmra.mrb[0].mxu0 %v3918
      %v4155 = vpop.f32.mrb[0].mxu0
      %v4156 = vadd.f32 0.0, %v4155
      %v4157 = vpop.f32.mrb[0].mxu0
      %4158 = vmatprep.mubr.f32.mxu0 %v4005
      %4159 = vmatmul.mubr.f32.gmra.mrb[0].mxu0 %v3920
      %v4160 = vpop.f32.mrb[0].mxu0
      %v4161 = vadd.f32 0.0, %v4160
      %v4162 = vpop.f32.mrb[0].mxu0
      %4163 = vmatprep.mubr.f32.mxu0 %v4008
      %4164 = vmatmul.mubr.f32.gmra.mrb[0].mxu0 %v3922
      %v4165 = vpop.f32.mrb[0].mxu0
      %v4166 = vadd.f32 0.0, %v4165
      %v4167 = vpop.f32.mrb[0].mxu0
      %4168 = vmatprep.mubr.f32.mxu0 %v4011
      %4169 = vmatmul.mubr.f32.gmra.mrb[0].mxu0 %v3924
      %v4170 = vpop.f32.mrb[0].mxu0
      %v4171 = vadd.f32 0.0, %v4170
      %v4172 = vpop.f32.mrb[0].mxu0
      %4173 = vmatprep.mubr.f32.mxu0 %v4014
      %4174 = vmatmul.mubr.f32.gmra.mrb[0].mxu0 %v3926
      %v4175 = vpop.f32.mrb[0].mxu0
      %v4176 = vadd.f32 0.0, %v4175
      %v4177 = vpop.f32.mrb[0].mxu0
      %4178 = vmatprep.mubr.f32.mxu0 %v4017
      %4179 = vmatmul.mubr.f32.gmra.mrb[0].mxu0 %v3928
      %v4180 = vpop.f32.mrb[0].mxu0
      %v4181 = vadd.f32 0.0, %v4180
      %v4182 = vpop.f32.mrb[0].mxu0
      %4183 = vmatprep.mubr.f32.mxu0 %v4020
      %4184 = vmatmul.mubr.f32.gmra.mrb[0].mxu0 %v3930
      %v4185 = vpop.f32.mrb[0].mxu0
      %v4186 = vadd.f32 0.0, %v4185
      %v4187 = vpop.f32.mrb[0].mxu0
      %4188 = vmatprep.mubr.f32.mxu0 %v4023
      %4189 = vmatmul.mubr.f32.gmra.mrb[0].mxu0 %v3932
      %v4190 = vpop.f32.mrb[0].mxu0
      %v4191 = vadd.f32 0.0, %v4190
      %v4192 = vpop.f32.mrb[0].mxu0
      %4193 = vmatprep.mubr.f32.mxu0 %v4026
      %4194 = vmatmul.mubr.f32.gmra.mrb[0].mxu0 %v3934
      %v4195 = vpop.f32.mrb[0].mxu0
      %v4196 = vadd.f32 0.0, %v4195
      %v4197 = vpop.f32.mrb[0].mxu0
      %4198 = vmatprep.mubr.f32.mxu0 %v4029
      %4199 = vmatmul.mubr.f32.gmra.mrb[0].mxu0 %v3936
      %v4200 = vpop.f32.mrb[0].mxu0
      %v4201 = vadd.f32 0.0, %v4200
      %v4202 = vpop.f32.mrb[0].mxu0
      %4203 = vmatprep.mubr.f32.mxu0 %v4032
      %4204 = vmatmul.mubr.f32.gmra.mrb[0].mxu0 %v3938
      %v4205 = vpop.f32.mrb[0].mxu0
      %v4206 = vadd.f32 0.0, %v4205
      %v4207 = vpop.f32.mrb[0].mxu0
      %4208 = vmatprep.mubr.f32.mxu0 %v4035
      %4209 = vmatmul.mubr.f32.gmra.mrb[0].mxu0 %v3940
      %v4210 = vpop.f32.mrb[0].mxu0
      %v4211 = vadd.f32 0.0, %v4210
      %v4212 = vpop.f32.mrb[0].mxu0
      %4213 = vmatprep.mubr.f32.mxu0 %v4038
      %4214 = vmatmul.mubr.f32.gmra.mrb[0].mxu0 %v3942
      %v4215 = vpop.f32.mrb[0].mxu0
      %v4216 = vadd.f32 0.0, %v4215
      %v4217 = vpop.f32.mrb[0].mxu0
      %4218 = vmatprep.mubr.f32.mxu0 %v4041
      %4219 = vmatmul.mubr.f32.gmra.mrb[0].mxu0 %v3944
      %v4220 = vpop.f32.mrb[0].mxu0
      %v4221 = vadd.f32 0.0, %v4220
      %v4222 = vpop.f32.mrb[0].mxu0
      %4223 = vmatprep.mubr.f32.mxu0 %v4044
      %4224 = vmatmul.mubr.f32.gmra.mrb[0].mxu0 %v3946
      %v4225 = vpop.f32.mrb[0].mxu0
      %v4226 = vadd.f32 0.0, %v4225
      %v4227 = vpop.f32.mrb[0].mxu0
      %4228 = vmatprep.mubr.f32.mxu0 %v4047
      %4229 = vmatmul.mubr.f32.gmra.mrb[0].mxu0 %v3948
      %v4230 = vpop.f32.mrb[0].mxu0
      %v4231 = vadd.f32 0.0, %v4230
      %v4232 = vpop.f32.mrb[0].mxu0
      %4233 = vmatprep.mubr.f32.mxu0 %v4050
      %4234 = vmatmul.mubr.f32.gmra.mrb[0].mxu0 %v3950
      %v4235 = vpop.f32.mrb[0].mxu0
      %v4236 = vadd.f32 0.0, %v4235
      %v4237 = vpop.f32.mrb[0].mxu0
      %4238 = vmatprep.mubr.f32.mxu0 %v4053
      %4239 = vmatmul.mubr.f32.gmra.mrb[0].mxu0 %v3952
      %v4240 = vpop.f32.mrb[0].mxu0
      %v4241 = vadd.f32 0.0, %v4240
      %v4242 = vpop.f32.mrb[0].mxu0
      %4243 = vmatprep.mubr.f32.mxu0 %v4056
      %4244 = vmatmul.mubr.f32.gmra.mrb[0].mxu0 %v3954
      %v4245 = vpop.f32.mrb[0].mxu0
      %v4246 = vadd.f32 0.0, %v4245
      %v4247 = vpop.f32.mrb[0].mxu0
      %4248 = vmatprep.mubr.f32.mxu0 %v4059
      %4249 = vmatmul.mubr.f32.gmra.mrb[0].mxu0 %v3956
      %v4250 = vpop.f32.mrb[0].mxu0
      %v4251 = vadd.f32 0.0, %v4250
      %v4252 = vpop.f32.mrb[0].mxu0
      %4253 = vmatprep.mubr.f32.mxu0 %v4062
      %4254 = vmatmul.mubr.f32.gmra.mrb[0].mxu0 %v3958
      %v4255 = vpop.f32.mrb[0].mxu0
      %v4256 = vadd.f32 0.0, %v4255
      %v4257 = vpop.f32.mrb[0].mxu0
      %4258 = vmatprep.mubr.f32.mxu0 %v4065
      %4259 = vmatmul.mubr.f32.gmra.mrb[0].mxu0 %v3960
      %v4260 = vpop.f32.mrb[0].mxu0
      %v4261 = vadd.f32 0.0, %v4260
      %v4262 = vpop.f32.mrb[0].mxu0
      %4263 = vmatprep.mubr.f32.mxu0 %v4068
      %4264 = vmatmul.mubr.f32.gmra.mrb[0].mxu0 %v3962
      %v4265 = vpop.f32.mrb[0].mxu0
      %v4266 = vadd.f32 0.0, %v4265
      %v4267 = vpop.f32.mrb[0].mxu0
      %4268 = vmatprep.mubr.f32.mxu0 %v4071
      %4269 = vmatmul.mubr.f32.gmra.mrb[0].mxu0 %v3964
      %v4270 = vpop.f32.mrb[0].mxu0
      %v4271 = vadd.f32 0.0, %v4270
      %v4272 = vpop.f32.mrb[0].mxu0
      %4273 = vmatprep.mubr.f32.mxu0 %v4074
      %4274 = vmatmul.mubr.f32.gmra.mrb[0].mxu0 %v3966
      %v4275 = vpop.f32.mrb[0].mxu0
      %v4276 = vadd.f32 0.0, %v4275
      %v4277 = vpop.f32.mrb[0].mxu0
      %4278 = vmatprep.mubr.f32.mxu0 %v4077
      %4279 = vmatmul.mubr.f32.gmra.mrb[0].mxu0 %v3968
      %v4280 = vpop.f32.mrb[0].mxu0
      %v4281 = vadd.f32 0.0, %v4280
      %v4282 = vpop.f32.mrb[0].mxu0
      %4283 = vdwg.mxu0
      %v4284 = vadd.f32 %v3776, %v4146
      %v4285 = vadd.f32 %v3781, %v4151
      %v4286 = vadd.f32 %v3786, %v4156
      %v4287 = vadd.f32 %v3791, %v4161
      %v4288 = vadd.f32 %v3796, %v4166
      %v4289 = vadd.f32 %v3801, %v4171
      %v4290 = vadd.f32 %v3806, %v4176
      %v4291 = vadd.f32 %v3811, %v4181
      %v4292 = vadd.f32 %v3816, %v4186
      %v4293 = vadd.f32 %v3821, %v4191
      %v4294 = vadd.f32 %v3826, %v4196
      %v4295 = vadd.f32 %v3831, %v4201
      %v4296 = vadd.f32 %v3836, %v4206
      %v4297 = vadd.f32 %v3841, %v4211
      %v4298 = vadd.f32 %v3846, %v4216
      %v4299 = vadd.f32 %v3851, %v4221
      %v4300 = vadd.f32 %v3856, %v4226
      %v4301 = vadd.f32 %v3861, %v4231
      %v4302 = vadd.f32 %v3866, %v4236
      %v4303 = vadd.f32 %v3871, %v4241
      %v4304 = vadd.f32 %v3876, %v4246
      %v4305 = vadd.f32 %v3881, %v4251
      %v4306 = vadd.f32 %v3886, %v4256
      %v4307 = vadd.f32 %v3891, %v4261
      %v4308 = vadd.f32 %v3896, %v4266
      %v4309 = vadd.f32 %v3901, %v4271
      %v4310 = vadd.f32 %v3906, %v4276
      %v4311 = vadd.f32 %v3911, %v4281
      %v4312 = vld [vmem:[%s10] sm:$0x1]
      %v4314 = vlaneseq
      %v4315 = vshrl.u32 %v4314, 7
      %v4316 = vsub.s32 0, %v4315
      %v4317 = vrot.slane %v4312, %v4316
      %v4319 = vadd.f32 %v4284, %v4317
      %v4320 = vadd.f32 %v4285, %v4317
      %v4321 = vadd.f32 %v4286, %v4317
      %v4322 = vadd.f32 %v4287, %v4317
      %v4323 = vadd.f32 %v4288, %v4317
      %v4324 = vadd.f32 %v4289, %v4317
      %v4325 = vadd.f32 %v4290, %v4317
      %v4326 = vadd.f32 %v4291, %v4317
      %v4327 = vadd.f32 %v4292, %v4317
      %v4328 = vadd.f32 %v4293, %v4317
      %v4329 = vadd.f32 %v4294, %v4317
      %v4330 = vadd.f32 %v4295, %v4317
      %v4331 = vadd.f32 %v4296, %v4317
      %v4332 = vadd.f32 %v4297, %v4317
      %v4333 = vadd.f32 %v4298, %v4317
      %v4334 = vadd.f32 %v4299, %v4317
      %v4335 = vadd.f32 %v4300, %v4317
      %v4336 = vadd.f32 %v4301, %v4317
      %v4337 = vadd.f32 %v4302, %v4317
      %v4338 = vadd.f32 %v4303, %v4317
      %v4339 = vadd.f32 %v4304, %v4317
      %v4340 = vadd.f32 %v4305, %v4317
      %v4341 = vadd.f32 %v4306, %v4317
      %v4342 = vadd.f32 %v4307, %v4317
      %v4343 = vadd.f32 %v4308, %v4317
      %v4344 = vadd.f32 %v4309, %v4317
      %v4345 = vadd.f32 %v4310, %v4317
      %v4346 = vadd.f32 %v4311, %v4317
      %vm4347 = vcmp.ge.f32.partialorder %v4319, 0.0
      %vm4348 = vcmp.ge.f32.partialorder %v4320, 0.0
      %vm4349 = vcmp.ge.f32.partialorder %v4321, 0.0
      %vm4350 = vcmp.ge.f32.partialorder %v4322, 0.0
      %vm4351 = vcmp.ge.f32.partialorder %v4323, 0.0
      %vm4352 = vcmp.ge.f32.partialorder %v4324, 0.0
      %vm4353 = vcmp.ge.f32.partialorder %v4325, 0.0
      %vm4354 = vcmp.ge.f32.partialorder %v4326, 0.0
      %vm4355 = vcmp.ge.f32.partialorder %v4327, 0.0
      %vm4356 = vcmp.ge.f32.partialorder %v4328, 0.0
      %vm4357 = vcmp.ge.f32.partialorder %v4329, 0.0
      %vm4358 = vcmp.ge.f32.partialorder %v4330, 0.0
      %vm4359 = vcmp.ge.f32.partialorder %v4331, 0.0
      %vm4360 = vcmp.ge.f32.partialorder %v4332, 0.0
      %vm4361 = vcmp.ge.f32.partialorder %v4333, 0.0
      %vm4362 = vcmp.ge.f32.partialorder %v4334, 0.0
      %vm4363 = vcmp.ge.f32.partialorder %v4335, 0.0
      %vm4364 = vcmp.ge.f32.partialorder %v4336, 0.0
      %vm4365 = vcmp.ge.f32.partialorder %v4337, 0.0
      %vm4366 = vcmp.ge.f32.partialorder %v4338, 0.0
      %vm4367 = vcmp.ge.f32.partialorder %v4339, 0.0
      %vm4368 = vcmp.ge.f32.partialorder %v4340, 0.0
      %vm4369 = vcmp.ge.f32.partialorder %v4341, 0.0
      %vm4370 = vcmp.ge.f32.partialorder %v4342, 0.0
      %vm4371 = vcmp.ge.f32.partialorder %v4343, 0.0
      %vm4372 = vcmp.ge.f32.partialorder %v4344, 0.0
      %vm4373 = vcmp.ge.f32.partialorder %v4345, 0.0
      %vm4374 = vcmp.ge.f32.partialorder %v4346, 0.0
      %v4375 = vmul.f32 %v4319, 0.01
      %v4376 = vmul.f32 %v4320, 0.01
      %v4377 = vmul.f32 %v4321, 0.01
      %v4378 = vmul.f32 %v4322, 0.01
      %v4379 = vmul.f32 %v4323, 0.01
      %v4380 = vmul.f32 %v4324, 0.01
      %v4381 = vmul.f32 %v4325, 0.01
      %v4382 = vmul.f32 %v4326, 0.01
      %v4383 = vmul.f32 %v4327, 0.01
      %v4384 = vmul.f32 %v4328, 0.01
      %v4385 = vmul.f32 %v4329, 0.01
      %v4386 = vmul.f32 %v4330, 0.01
      %v4387 = vmul.f32 %v4331, 0.01
      %v4388 = vmul.f32 %v4332, 0.01
      %v4389 = vmul.f32 %v4333, 0.01
      %v4390 = vmul.f32 %v4334, 0.01
      %v4391 = vmul.f32 %v4335, 0.01
      %v4392 = vmul.f32 %v4336, 0.01
      %v4393 = vmul.f32 %v4337, 0.01
      %v4394 = vmul.f32 %v4338, 0.01
      %v4395 = vmul.f32 %v4339, 0.01
      %v4396 = vmul.f32 %v4340, 0.01
      %v4397 = vmul.f32 %v4341, 0.01
      %v4398 = vmul.f32 %v4342, 0.01
      %v4399 = vmul.f32 %v4343, 0.01
      %v4400 = vmul.f32 %v4344, 0.01
      %v4401 = vmul.f32 %v4345, 0.01
      %v4402 = vmul.f32 %v4346, 0.01
      %v4403 = vsel %vm4347, %v4319, %v4375
      %v4404 = vsel %vm4348, %v4320, %v4376
      %v4405 = vsel %vm4349, %v4321, %v4377
      %v4406 = vsel %vm4350, %v4322, %v4378
      %v4407 = vsel %vm4351, %v4323, %v4379
      %v4408 = vsel %vm4352, %v4324, %v4380
      %v4409 = vsel %vm4353, %v4325, %v4381
      %v4410 = vsel %vm4354, %v4326, %v4382
      %v4411 = vsel %vm4355, %v4327, %v4383
      %v4412 = vsel %vm4356, %v4328, %v4384
      %v4413 = vsel %vm4357, %v4329, %v4385
      %v4414 = vsel %vm4358, %v4330, %v4386
      %v4415 = vsel %vm4359, %v4331, %v4387
      %v4416 = vsel %vm4360, %v4332, %v4388
      %v4417 = vsel %vm4361, %v4333, %v4389
      %v4418 = vsel %vm4362, %v4334, %v4390
      %v4419 = vsel %vm4363, %v4335, %v4391
      %v4420 = vsel %vm4364, %v4336, %v4392
      %v4421 = vsel %vm4365, %v4337, %v4393
      %v4422 = vsel %vm4366, %v4338, %v4394
      %v4423 = vsel %vm4367, %v4339, %v4395
      %v4424 = vsel %vm4368, %v4340, %v4396
      %v4425 = vsel %vm4369, %v4341, %v4397
      %v4426 = vsel %vm4370, %v4342, %v4398
      %v4427 = vsel %vm4371, %v4343, %v4399
      %v4428 = vsel %vm4372, %v4344, %v4400
      %v4429 = vsel %vm4373, %v4345, %v4401
      %v4430 = vsel %vm4374, %v4346, %v4402
      %v4431 = vld [vmem:[%s11] sm:$0xff]
      %v4432 = vld [vmem:[%s11 + $0x8] sm:$0xff]
      %v4433 = vld [vmem:[%s11 + $0x10] sm:$0xff]
      %v4434 = vld [vmem:[%s11 + $0x18] sm:$0xff]
      %v4435 = vld [vmem:[%s11 + $0x20] sm:$0xff]
      %v4436 = vld [vmem:[%s11 + $0x28] sm:$0xff]
      %v4437 = vld [vmem:[%s11 + $0x30] sm:$0xff]
      %v4438 = vld [vmem:[%s11 + $0x38] sm:$0xff]
      %v4439 = vld [vmem:[%s11 + $0x40] sm:$0xff]
      %v4440 = vld [vmem:[%s11 + $0x48] sm:$0xff]
      %v4441 = vld [vmem:[%s11 + $0x50] sm:$0xff]
      %v4442 = vld [vmem:[%s11 + $0x58] sm:$0xff]
      %v4443 = vld [vmem:[%s11 + $0x60] sm:$0xff]
      %v4444 = vld [vmem:[%s11 + $0x68] sm:$0xff]
      %v4445 = vld [vmem:[%s11 + $0x70] sm:$0xff]
      %v4446 = vld [vmem:[%s11 + $0x78] sm:$0xff]
      %v4448 = vsel %vm1062, %v4432, 0
      %v4451 = vsel %vm1062, %v4434, 0
      %v4454 = vsel %vm1062, %v4436, 0
      %v4457 = vsel %vm1062, %v4438, 0
      %v4460 = vsel %vm1062, %v4440, 0
      %v4463 = vsel %vm1062, %v4442, 0
      %v4466 = vsel %vm1062, %v4444, 0
      %v4469 = vsel %vm1062, %v4446, 0
      %4471 = vmatprep.subr.mxu0 0.0
      %4472 = vmatpush1.msra.mxu0 %v4403
      %4473 = vmatprep.subr.mxu0 0.0
      %4474 = vmatpush1.msra.mxu0 %v4404
      %4475 = vmatprep.subr.mxu0 0.0
      %4476 = vmatpush1.msra.mxu0 %v4405
      %4477 = vmatprep.subr.mxu0 0.0
      %4478 = vmatpush1.msra.mxu0 %v4406
      %4479 = vmatprep.subr.mxu0 0.0
      %4480 = vmatpush1.msra.mxu0 %v4407
      %4481 = vmatprep.subr.mxu0 0.0
      %4482 = vmatpush1.msra.mxu0 %v4408
      %4483 = vmatprep.subr.mxu0 0.0
      %4484 = vmatpush1.msra.mxu0 %v4409
      %4485 = vmatprep.subr.mxu0 0.0
      %4486 = vmatpush1.msra.mxu0 %v4410
      %4487 = vmatprep.subr.mxu0 0.0
      %4488 = vmatpush1.msra.mxu0 %v4411
      %4489 = vmatprep.subr.mxu0 0.0
      %4490 = vmatpush1.msra.mxu0 %v4412
      %4491 = vmatprep.subr.mxu0 0.0
      %4492 = vmatpush1.msra.mxu0 %v4413
      %4493 = vmatprep.subr.mxu0 0.0
      %4494 = vmatpush1.msra.mxu0 %v4414
      %4495 = vmatprep.subr.mxu0 0.0
      %4496 = vmatpush1.msra.mxu0 %v4415
      %4497 = vmatprep.subr.mxu0 0.0
      %4498 = vmatpush1.msra.mxu0 %v4416
      %4499 = vmatprep.subr.mxu0 0.0
      %4500 = vmatpush1.msra.mxu0 %v4417
      %4501 = vmatprep.subr.mxu0 0.0
      %4502 = vmatpush1.msra.mxu0 %v4418
      %4503 = vmatprep.subr.mxu0 0.0
      %4504 = vmatpush1.msra.mxu0 %v4419
      %4505 = vmatprep.subr.mxu0 0.0
      %4506 = vmatpush1.msra.mxu0 %v4420
      %4507 = vmatprep.subr.mxu0 0.0
      %4508 = vmatpush1.msra.mxu0 %v4421
      %4509 = vmatprep.subr.mxu0 0.0
      %4510 = vmatpush1.msra.mxu0 %v4422
      %4511 = vmatprep.subr.mxu0 0.0
      %4512 = vmatpush1.msra.mxu0 %v4423
      %4513 = vmatprep.subr.mxu0 0.0
      %4514 = vmatpush1.msra.mxu0 %v4424
      %4515 = vmatprep.subr.mxu0 0.0
      %4516 = vmatpush1.msra.mxu0 %v4425
      %4517 = vmatprep.subr.mxu0 0.0
      %4518 = vmatpush1.msra.mxu0 %v4426
      %4519 = vmatprep.subr.mxu0 0.0
      %4520 = vmatpush1.msra.mxu0 %v4427
      %4521 = vmatprep.subr.mxu0 0.0
      %4522 = vmatpush1.msra.mxu0 %v4428
      %4523 = vmatprep.subr.mxu0 0.0
      %4524 = vmatpush1.msra.mxu0 %v4429
      %4525 = vmatprep.subr.mxu0 0.0
      %4526 = vmatpush1.msra.mxu0 %v4430
      %4527 = vmatprep.subr.mxu0 0.0
      %4528 = vmatpush1.msra.mxu0 0.0
      %4529 = vmatprep.subr.mxu0 0.0
      %4530 = vmatpush1.msra.mxu0 0.0
      %4531 = vmatprep.subr.mxu0 0.0
      %4532 = vmatpush1.msra.mxu0 0.0
      %4533 = vmatprep.subr.mxu0 0.0
      %4534 = vmatpush1.msra.mxu0 0.0
      %4535 = vmatprep.mubr.f32.mxu0 %v4448
      %4536 = vmatmul.mubr.f32.gmra.mrb[0].mxu0 %v4431
      %v4537 = vpop.f32.mrb[0].mxu0
      %v4538 = vadd.f32 0.0, %v4537
      %v4539 = vpop.f32.mrb[0].mxu0
      %4540 = vmatprep.mubr.f32.mxu0 %v4451
      %4541 = vmatmul.mubr.f32.gmra.mrb[0].mxu0 %v4433
      %v4542 = vpop.f32.mrb[0].mxu0
      %v4543 = vadd.f32 0.0, %v4542
      %v4544 = vpop.f32.mrb[0].mxu0
      %4545 = vmatprep.mubr.f32.mxu0 %v4454
      %4546 = vmatmul.mubr.f32.gmra.mrb[0].mxu0 %v4435
      %v4547 = vpop.f32.mrb[0].mxu0
      %v4548 = vadd.f32 0.0, %v4547
      %v4549 = vpop.f32.mrb[0].mxu0
      %4550 = vmatprep.mubr.f32.mxu0 %v4457
      %4551 = vmatmul.mubr.f32.gmra.mrb[0].mxu0 %v4437
      %v4552 = vpop.f32.mrb[0].mxu0
      %v4553 = vadd.f32 0.0, %v4552
      %v4554 = vpop.f32.mrb[0].mxu0
      %4555 = vmatprep.mubr.f32.mxu0 %v4460
      %4556 = vmatmul.mubr.f32.gmra.mrb[0].mxu0 %v4439
      %v4557 = vpop.f32.mrb[0].mxu0
      %v4558 = vadd.f32 0.0, %v4557
      %v4559 = vpop.f32.mrb[0].mxu0
      %4560 = vmatprep.mubr.f32.mxu0 %v4463
      %4561 = vmatmul.mubr.f32.gmra.mrb[0].mxu0 %v4441
      %v4562 = vpop.f32.mrb[0].mxu0
      %v4563 = vadd.f32 0.0, %v4562
      %v4564 = vpop.f32.mrb[0].mxu0
      %4565 = vmatprep.mubr.f32.mxu0 %v4466
      %4566 = vmatmul.mubr.f32.gmra.mrb[0].mxu0 %v4443
      %v4567 = vpop.f32.mrb[0].mxu0
      %v4568 = vadd.f32 0.0, %v4567
      %v4569 = vpop.f32.mrb[0].mxu0
      %4570 = vmatprep.mubr.f32.mxu0 %v4469
      %4571 = vmatmul.mubr.f32.gmra.mrb[0].mxu0 %v4445
      %v4572 = vpop.f32.mrb[0].mxu0
      %v4573 = vadd.f32 0.0, %v4572
      %v4574 = vpop.f32.mrb[0].mxu0
      %4575 = vdwg.mxu0
      %4576 = vst [vmem:[#allocation5] sm:$0xff] 0.0
      %4577 = vst.msk [vmem:[#allocation5 + $0x8] sm:$0xff] %vm2920, 0.0
      %4578 = vst [vmem:[#allocation5 + $0x10] sm:$0x3] 0.0
      %vm4579 = vcmask 517120
      %4580 = vst.msk [vmem:[#allocation5 + $0x18] sm:$0x3] %vm4579, 0.0
      %4581 = vst [vmem:[#allocation5 + $0x90] sm:$0xff] 0.0
      %4582 = vst.msk [vmem:[#allocation5 + $0x98] sm:$0xff] %vm2920, 0.0
      %4583 = vst [vmem:[#allocation5 + $0xa0] sm:$0x3] 0.0
      %4584 = vst.msk [vmem:[#allocation5 + $0xa8] sm:$0x3] %vm4579, 0.0
      %vm4593 = vcmask 1041408
      %v4594 = vrot.slane %v4538, 6
      %v4595 = vrot.slane %v4543, 6
      %v4596 = vsel %vm4593, %v4594, %v4595
      %v4597 = vrot.slane %v4548, 6
      %v4598 = vsel %vm4593, %v4595, %v4597
      %v4599 = vrot.slane %v4553, 6
      %v4600 = vsel %vm4593, %v4597, %v4599
      %v4601 = vrot.slane %v4558, 6
      %v4602 = vsel %vm4593, %v4599, %v4601
      %v4603 = vrot.slane %v4563, 6
      %v4604 = vsel %vm4593, %v4601, %v4603
      %v4605 = vrot.slane %v4568, 6
      %v4606 = vsel %vm4593, %v4603, %v4605
      %v4607 = vrot.slane %v4573, 6
      %v4608 = vsel %vm4593, %v4605, %v4607
      %vm4618 = vcmask 523266
      %4619 = vst.msk [vmem:[#allocation5 + $0x10] sm:$0xfc] %vm4618, %v4594
      %4620 = vst.msk [vmem:[#allocation5 + $0x20] sm:$0xff] %vm2920, %v4596
      %4621 = vst.msk [vmem:[#allocation5 + $0x30] sm:$0xff] %vm2920, %v4598
      %4622 = vst.msk [vmem:[#allocation5 + $0x40] sm:$0xff] %vm2920, %v4600
      %4623 = vst.msk [vmem:[#allocation5 + $0x50] sm:$0xff] %vm2920, %v4602
      %4624 = vst.msk [vmem:[#allocation5 + $0x60] sm:$0xff] %vm2920, %v4604
      %4625 = vst.msk [vmem:[#allocation5 + $0x70] sm:$0xff] %vm2920, %v4606
      %4626 = vst.msk [vmem:[#allocation5 + $0x80] sm:$0xff] %vm2920, %v4608
      %4627 = vst.msk [vmem:[#allocation5 + $0x90] sm:$0x3] %vm4579, %v4607
      %v4628 = vrot.slane %v4538, 7
      %v4629 = vrot.slane %v4543, 7
      %v4630 = vsel %vm2962, %v4628, %v4629
      %v4631 = vrot.slane %v4548, 7
      %v4632 = vsel %vm2962, %v4629, %v4631
      %v4633 = vrot.slane %v4553, 7
      %v4634 = vsel %vm2962, %v4631, %v4633
      %v4635 = vrot.slane %v4558, 7
      %v4636 = vsel %vm2962, %v4633, %v4635
      %v4637 = vrot.slane %v4563, 7
      %v4638 = vsel %vm2962, %v4635, %v4637
      %v4639 = vrot.slane %v4568, 7
      %v4640 = vsel %vm2962, %v4637, %v4639
      %v4641 = vrot.slane %v4573, 7
      %v4642 = vsel %vm2962, %v4639, %v4641
      %4643 = vrot.lane.b32.xlu0 %v4628, 64
      %v4644 = vpop.permute.xlu0 %4643
      %4645 = vrot.lane.b32.xlu0 %v4630, 64
      %v4646 = vpop.permute.xlu0 %4645
      %4647 = vrot.lane.b32.xlu0 %v4632, 64
      %v4648 = vpop.permute.xlu0 %4647
      %4649 = vrot.lane.b32.xlu0 %v4634, 64
      %v4650 = vpop.permute.xlu0 %4649
      %4651 = vrot.lane.b32.xlu0 %v4636, 64
      %v4652 = vpop.permute.xlu0 %4651
      %4653 = vrot.lane.b32.xlu0 %v4638, 64
      %v4654 = vpop.permute.xlu0 %4653
      %4655 = vrot.lane.b32.xlu0 %v4640, 64
      %v4656 = vpop.permute.xlu0 %4655
      %4657 = vrot.lane.b32.xlu0 %v4642, 64
      %v4658 = vpop.permute.xlu0 %4657
      %4659 = vrot.lane.b32.xlu0 %v4641, 64
      %v4660 = vpop.permute.xlu0 %4659
      %vm4670 = vcmask 1048065
      %4671 = vst.msk [vmem:[#allocation5 + $0x10] sm:$0xfe] %vm4670, %v4644
      %4672 = vst.msk [vmem:[#allocation5 + $0x20] sm:$0xff] %vm3161, %v4646
      %4673 = vst.msk [vmem:[#allocation5 + $0x30] sm:$0xff] %vm3161, %v4648
      %4674 = vst.msk [vmem:[#allocation5 + $0x40] sm:$0xff] %vm3161, %v4650
      %4675 = vst.msk [vmem:[#allocation5 + $0x50] sm:$0xff] %vm3161, %v4652
      %4676 = vst.msk [vmem:[#allocation5 + $0x60] sm:$0xff] %vm3161, %v4654
      %4677 = vst.msk [vmem:[#allocation5 + $0x70] sm:$0xff] %vm3161, %v4656
      %4678 = vst.msk [vmem:[#allocation5 + $0x80] sm:$0xff] %vm3161, %v4658
      %vm4679 = vcmask 1040896
      %4680 = vst.msk [vmem:[#allocation5 + $0x90] sm:$0x1] %vm4679, %v4660
      %4681 = vst.msk [vmem:[#allocation5 + $0x18] sm:$0xff] %vm2920, %v4538
      %4682 = vst.msk [vmem:[#allocation5 + $0x28] sm:$0xff] %vm2920, %v4543
      %4683 = vst.msk [vmem:[#allocation5 + $0x38] sm:$0xff] %vm2920, %v4548
      %4684 = vst.msk [vmem:[#allocation5 + $0x48] sm:$0xff] %vm2920, %v4553
      %4685 = vst.msk [vmem:[#allocation5 + $0x58] sm:$0xff] %vm2920, %v4558
      %4686 = vst.msk [vmem:[#allocation5 + $0x68] sm:$0xff] %vm2920, %v4563
      %4687 = vst.msk [vmem:[#allocation5 + $0x78] sm:$0xff] %vm2920, %v4568
      %4688 = vst.msk [vmem:[#allocation5 + $0x88] sm:$0xff] %vm2920, %v4573
      %v4689 = vld [vmem:[#allocation5] sm:$0xff]
      %v4690 = vld [vmem:[#allocation5 + $0x8] sm:$0xff]
      %v4691 = vld [vmem:[#allocation5 + $0x10] sm:$0xff]
      %v4692 = vld [vmem:[#allocation5 + $0x18] sm:$0xff]
      %v4693 = vld [vmem:[#allocation5 + $0x20] sm:$0xff]
      %v4694 = vld [vmem:[#allocation5 + $0x28] sm:$0xff]
      %v4695 = vld [vmem:[#allocation5 + $0x30] sm:$0xff]
      %v4696 = vld [vmem:[#allocation5 + $0x38] sm:$0xff]
      %v4697 = vld [vmem:[#allocation5 + $0x40] sm:$0xff]
      %v4698 = vld [vmem:[#allocation5 + $0x48] sm:$0xff]
      %v4699 = vld [vmem:[#allocation5 + $0x50] sm:$0xff]
      %v4700 = vld [vmem:[#allocation5 + $0x58] sm:$0xff]
      %v4701 = vld [vmem:[#allocation5 + $0x60] sm:$0xff]
      %v4702 = vld [vmem:[#allocation5 + $0x68] sm:$0xff]
      %v4703 = vld [vmem:[#allocation5 + $0x70] sm:$0xff]
      %v4704 = vld [vmem:[#allocation5 + $0x78] sm:$0xff]
      %v4705 = vld [vmem:[%s12] sm:$0xff]
      %v4706 = vld [vmem:[%s12 + $0x8] sm:$0xff]
      %v4707 = vld [vmem:[%s12 + $0x10] sm:$0xff]
      %v4708 = vld [vmem:[%s12 + $0x18] sm:$0xff]
      %v4709 = vld [vmem:[%s12 + $0x20] sm:$0xff]
      %v4710 = vld [vmem:[%s12 + $0x28] sm:$0xff]
      %v4711 = vld [vmem:[%s12 + $0x30] sm:$0xff]
      %v4712 = vld [vmem:[%s12 + $0x38] sm:$0xff]
      %v4713 = vld [vmem:[%s12 + $0x40] sm:$0xff]
      %v4714 = vld [vmem:[%s12 + $0x48] sm:$0xff]
      %v4715 = vld [vmem:[%s12 + $0x50] sm:$0xff]
      %v4716 = vld [vmem:[%s12 + $0x58] sm:$0xff]
      %v4717 = vld [vmem:[%s12 + $0x60] sm:$0xff]
      %v4718 = vld [vmem:[%s12 + $0x68] sm:$0xff]
      %v4719 = vld [vmem:[%s12 + $0x70] sm:$0xff]
      %v4720 = vld [vmem:[%s12 + $0x78] sm:$0xff]
      %v4721 = vld [vmem:[%s12 + $0x80] sm:$0xff]
      %v4722 = vld [vmem:[%s12 + $0x88] sm:$0xff]
      %v4723 = vld [vmem:[%s12 + $0x90] sm:$0xff]
      %v4724 = vld [vmem:[%s12 + $0x98] sm:$0xff]
      %v4725 = vld [vmem:[%s12 + $0xa0] sm:$0xff]
      %v4726 = vld [vmem:[%s12 + $0xa8] sm:$0xff]
      %v4727 = vld [vmem:[%s12 + $0xb0] sm:$0xff]
      %v4728 = vld [vmem:[%s12 + $0xb8] sm:$0xff]
      %v4729 = vld [vmem:[#allocation5 + $0x10] sm:$0xfe]
      %v4730 = vld [vmem:[#allocation5 + $0x18] sm:$0xfe]
      %v4731 = vld [vmem:[#allocation5 + $0x80] sm:$0xff]
      %v4732 = vld [vmem:[#allocation5 + $0x88] sm:$0xff]
      %v4733 = vld [vmem:[#allocation5 + $0x90] sm:$0x1]
      %v4734 = vld [vmem:[#allocation5 + $0x98] sm:$0x1]
      %s4735 = scalar_lea.vmem %s12, 192
      %v4736 = vld [vmem:[%s4735] sm:$0xff]
      %v4737 = vld [vmem:[%s4735 + $0x8] sm:$0xff]
      %v4738 = vld [vmem:[%s4735 + $0x10] sm:$0xff]
      %v4739 = vld [vmem:[%s4735 + $0x18] sm:$0xff]
      %v4740 = vld [vmem:[%s4735 + $0x20] sm:$0xff]
      %v4741 = vld [vmem:[%s4735 + $0x28] sm:$0xff]
      %v4742 = vld [vmem:[%s4735 + $0x30] sm:$0xff]
      %v4743 = vld [vmem:[%s4735 + $0x38] sm:$0xff]
      %v4744 = vld [vmem:[%s4735 + $0x40] sm:$0xff]
      %v4745 = vld [vmem:[%s4735 + $0x48] sm:$0xff]
      %v4746 = vld [vmem:[%s4735 + $0x50] sm:$0xff]
      %v4747 = vld [vmem:[%s4735 + $0x58] sm:$0xff]
      %v4748 = vld [vmem:[%s4735 + $0x60] sm:$0xff]
      %v4749 = vld [vmem:[%s4735 + $0x68] sm:$0xff]
      %v4750 = vld [vmem:[%s4735 + $0x70] sm:$0xff]
      %v4751 = vld [vmem:[%s4735 + $0x78] sm:$0xff]
      %v4752 = vld [vmem:[%s4735 + $0x80] sm:$0xff]
      %v4753 = vld [vmem:[%s4735 + $0x88] sm:$0xff]
      %v4754 = vld [vmem:[%s4735 + $0x90] sm:$0xff]
      %v4755 = vld [vmem:[%s4735 + $0x98] sm:$0xff]
      %v4756 = vld [vmem:[%s4735 + $0xa0] sm:$0xff]
      %v4757 = vld [vmem:[%s4735 + $0xa8] sm:$0xff]
      %v4758 = vld [vmem:[%s4735 + $0xb0] sm:$0xff]
      %v4759 = vld [vmem:[%s4735 + $0xb8] sm:$0xff]
      %v4778 = vrot.slane %v4729, 1
      %v4779 = vrot.slane %v4693, 1
      %v4780 = vsel %vm3190, %v4778, %v4779
      %v4781 = vrot.slane %v4730, 1
      %v4782 = vrot.slane %v4694, 1
      %v4783 = vsel %vm3190, %v4781, %v4782
      %v4784 = vrot.slane %v4695, 1
      %v4785 = vsel %vm3190, %v4779, %v4784
      %v4786 = vrot.slane %v4696, 1
      %v4787 = vsel %vm3190, %v4782, %v4786
      %v4788 = vrot.slane %v4697, 1
      %v4789 = vsel %vm3190, %v4784, %v4788
      %v4790 = vrot.slane %v4698, 1
      %v4791 = vsel %vm3190, %v4786, %v4790
      %v4792 = vrot.slane %v4699, 1
      %v4793 = vsel %vm3190, %v4788, %v4792
      %v4794 = vrot.slane %v4700, 1
      %v4795 = vsel %vm3190, %v4790, %v4794
      %v4796 = vrot.slane %v4701, 1
      %v4797 = vsel %vm3190, %v4792, %v4796
      %v4798 = vrot.slane %v4702, 1
      %v4799 = vsel %vm3190, %v4794, %v4798
      %v4800 = vrot.slane %v4703, 1
      %v4801 = vsel %vm3190, %v4796, %v4800
      %v4802 = vrot.slane %v4704, 1
      %v4803 = vsel %vm3190, %v4798, %v4802
      %v4804 = vrot.slane %v4731, 1
      %v4805 = vsel %vm3190, %v4800, %v4804
      %v4806 = vrot.slane %v4732, 1
      %v4807 = vsel %vm3190, %v4802, %v4806
      %v4808 = vrot.slane %v4733, 1
      %v4809 = vsel %vm3190, %v4804, %v4808
      %v4810 = vrot.slane %v4734, 1
      %v4811 = vsel %vm3190, %v4806, %v4810
      %v4820 = vsel %vm2920, %v4783, 0
      %v4822 = vsel %vm2920, %v4787, 0
      %v4824 = vsel %vm2920, %v4791, 0
      %v4826 = vsel %vm2920, %v4795, 0
      %v4828 = vsel %vm2920, %v4799, 0
      %v4830 = vsel %vm2920, %v4803, 0
      %v4832 = vsel %vm2920, %v4807, 0
      %v4834 = vsel %vm2920, %v4811, 0
      %4836 = vmatprep.subr.mxu0 0.0
      %4837 = vmatpush1.msra.mxu0 %v4736
      %4838 = vmatprep.subr.mxu0 0.0
      %4839 = vmatpush1.msra.mxu0 %v4737
      %4840 = vmatprep.subr.mxu0 0.0
      %4841 = vmatpush1.msra.mxu0 %v4738
      %4842 = vmatprep.subr.mxu0 0.0
      %4843 = vmatpush1.msra.mxu0 %v4739
      %4844 = vmatprep.subr.mxu0 0.0
      %4845 = vmatpush1.msra.mxu0 %v4740
      %4846 = vmatprep.subr.mxu0 0.0
      %4847 = vmatpush1.msra.mxu0 %v4741
      %4848 = vmatprep.subr.mxu0 0.0
      %4849 = vmatpush1.msra.mxu0 %v4742
      %4850 = vmatprep.subr.mxu0 0.0
      %4851 = vmatpush1.msra.mxu0 %v4743
      %4852 = vmatprep.subr.mxu0 0.0
      %4853 = vmatpush1.msra.mxu0 %v4744
      %4854 = vmatprep.subr.mxu0 0.0
      %4855 = vmatpush1.msra.mxu0 %v4745
      %4856 = vmatprep.subr.mxu0 0.0
      %4857 = vmatpush1.msra.mxu0 %v4746
      %4858 = vmatprep.subr.mxu0 0.0
      %4859 = vmatpush1.msra.mxu0 %v4747
      %4860 = vmatprep.subr.mxu0 0.0
      %4861 = vmatpush1.msra.mxu0 %v4748
      %4862 = vmatprep.subr.mxu0 0.0
      %4863 = vmatpush1.msra.mxu0 %v4749
      %4864 = vmatprep.subr.mxu0 0.0
      %4865 = vmatpush1.msra.mxu0 %v4750
      %4866 = vmatprep.subr.mxu0 0.0
      %4867 = vmatpush1.msra.mxu0 %v4751
      %4868 = vmatprep.subr.mxu0 0.0
      %4869 = vmatpush1.msra.mxu0 %v4752
      %4870 = vmatprep.subr.mxu0 0.0
      %4871 = vmatpush1.msra.mxu0 %v4753
      %4872 = vmatprep.subr.mxu0 0.0
      %4873 = vmatpush1.msra.mxu0 %v4754
      %4874 = vmatprep.subr.mxu0 0.0
      %4875 = vmatpush1.msra.mxu0 %v4755
      %4876 = vmatprep.subr.mxu0 0.0
      %4877 = vmatpush1.msra.mxu0 %v4756
      %4878 = vmatprep.subr.mxu0 0.0
      %4879 = vmatpush1.msra.mxu0 %v4757
      %4880 = vmatprep.subr.mxu0 0.0
      %4881 = vmatpush1.msra.mxu0 %v4758
      %4882 = vmatprep.subr.mxu0 0.0
      %4883 = vmatpush1.msra.mxu0 %v4759
      %4884 = vmatprep.subr.mxu0 0.0
      %4885 = vmatpush1.msra.mxu0 0.0
      %4886 = vmatprep.subr.mxu0 0.0
      %4887 = vmatpush1.msra.mxu0 0.0
      %4888 = vmatprep.subr.mxu0 0.0
      %4889 = vmatpush1.msra.mxu0 0.0
      %4890 = vmatprep.subr.mxu0 0.0
      %4891 = vmatpush1.msra.mxu0 0.0
      %4892 = vmatprep.subr.mxu0 0.0
      %4893 = vmatpush1.msra.mxu0 0.0
      %4894 = vmatprep.subr.mxu0 0.0
      %4895 = vmatpush1.msra.mxu0 0.0
      %4896 = vmatprep.subr.mxu0 0.0
      %4897 = vmatpush1.msra.mxu0 0.0
      %4898 = vmatprep.subr.mxu0 0.0
      %4899 = vmatpush1.msra.mxu0 0.0
      %4900 = vmatprep.mubr.f32.mxu0 %v4820
      %4901 = vmatmul.mubr.f32.gmra.mrb[0].mxu0 %v4780
      %v4902 = vpop.f32.mrb[0].mxu0
      %v4903 = vadd.f32 0.0, %v4902
      %v4904 = vpop.f32.mrb[0].mxu0
      %4905 = vmatprep.mubr.f32.mxu0 %v4822
      %4906 = vmatmul.mubr.f32.gmra.mrb[0].mxu0 %v4785
      %v4907 = vpop.f32.mrb[0].mxu0
      %v4908 = vadd.f32 0.0, %v4907
      %v4909 = vpop.f32.mrb[0].mxu0
      %4910 = vmatprep.mubr.f32.mxu0 %v4824
      %4911 = vmatmul.mubr.f32.gmra.mrb[0].mxu0 %v4789
      %v4912 = vpop.f32.mrb[0].mxu0
      %v4913 = vadd.f32 0.0, %v4912
      %v4914 = vpop.f32.mrb[0].mxu0
      %4915 = vmatprep.mubr.f32.mxu0 %v4826
      %4916 = vmatmul.mubr.f32.gmra.mrb[0].mxu0 %v4793
      %v4917 = vpop.f32.mrb[0].mxu0
      %v4918 = vadd.f32 0.0, %v4917
      %v4919 = vpop.f32.mrb[0].mxu0
      %4920 = vmatprep.mubr.f32.mxu0 %v4828
      %4921 = vmatmul.mubr.f32.gmra.mrb[0].mxu0 %v4797
      %v4922 = vpop.f32.mrb[0].mxu0
      %v4923 = vadd.f32 0.0, %v4922
      %v4924 = vpop.f32.mrb[0].mxu0
      %4925 = vmatprep.mubr.f32.mxu0 %v4830
      %4926 = vmatmul.mubr.f32.gmra.mrb[0].mxu0 %v4801
      %v4927 = vpop.f32.mrb[0].mxu0
      %v4928 = vadd.f32 0.0, %v4927
      %v4929 = vpop.f32.mrb[0].mxu0
      %4930 = vmatprep.mubr.f32.mxu0 %v4832
      %4931 = vmatmul.mubr.f32.gmra.mrb[0].mxu0 %v4805
      %v4932 = vpop.f32.mrb[0].mxu0
      %v4933 = vadd.f32 0.0, %v4932
      %v4934 = vpop.f32.mrb[0].mxu0
      %4935 = vmatprep.mubr.f32.mxu0 %v4834
      %4936 = vmatmul.mubr.f32.gmra.mrb[0].mxu0 %v4809
      %v4937 = vpop.f32.mrb[0].mxu0
      %v4938 = vadd.f32 0.0, %v4937
      %v4939 = vpop.f32.mrb[0].mxu0
      %4940 = vdwg.mxu0
      %v4942 = vsel %vm2920, %v4690, 0
      %v4945 = vsel %vm2920, %v4692, 0
      %v4947 = vsel %vm2920, %v4694, 0
      %v4949 = vsel %vm2920, %v4696, 0
      %v4951 = vsel %vm2920, %v4698, 0
      %v4953 = vsel %vm2920, %v4700, 0
      %v4955 = vsel %vm2920, %v4702, 0
      %v4957 = vsel %vm2920, %v4704, 0
      %4959 = vmatprep.subr.mxu0 0.0
      %4960 = vmatpush1.msra.mxu0 %v4705
      %4961 = vmatprep.subr.mxu0 0.0
      %4962 = vmatpush1.msra.mxu0 %v4706
      %4963 = vmatprep.subr.mxu0 0.0
      %4964 = vmatpush1.msra.mxu0 %v4707
      %4965 = vmatprep.subr.mxu0 0.0
      %4966 = vmatpush1.msra.mxu0 %v4708
      %4967 = vmatprep.subr.mxu0 0.0
      %4968 = vmatpush1.msra.mxu0 %v4709
      %4969 = vmatprep.subr.mxu0 0.0
      %4970 = vmatpush1.msra.mxu0 %v4710
      %4971 = vmatprep.subr.mxu0 0.0
      %4972 = vmatpush1.msra.mxu0 %v4711
      %4973 = vmatprep.subr.mxu0 0.0
      %4974 = vmatpush1.msra.mxu0 %v4712
      %4975 = vmatprep.subr.mxu0 0.0
      %4976 = vmatpush1.msra.mxu0 %v4713
      %4977 = vmatprep.subr.mxu0 0.0
      %4978 = vmatpush1.msra.mxu0 %v4714
      %4979 = vmatprep.subr.mxu0 0.0
      %4980 = vmatpush1.msra.mxu0 %v4715
      %4981 = vmatprep.subr.mxu0 0.0
      %4982 = vmatpush1.msra.mxu0 %v4716
      %4983 = vmatprep.subr.mxu0 0.0
      %4984 = vmatpush1.msra.mxu0 %v4717
      %4985 = vmatprep.subr.mxu0 0.0
      %4986 = vmatpush1.msra.mxu0 %v4718
      %4987 = vmatprep.subr.mxu0 0.0
      %4988 = vmatpush1.msra.mxu0 %v4719
      %4989 = vmatprep.subr.mxu0 0.0
      %4990 = vmatpush1.msra.mxu0 %v4720
      %4991 = vmatprep.subr.mxu0 0.0
      %4992 = vmatpush1.msra.mxu0 %v4721
      %4993 = vmatprep.subr.mxu0 0.0
      %4994 = vmatpush1.msra.mxu0 %v4722
      %4995 = vmatprep.subr.mxu0 0.0
      %4996 = vmatpush1.msra.mxu0 %v4723
      %4997 = vmatprep.subr.mxu0 0.0
      %4998 = vmatpush1.msra.mxu0 %v4724
      %4999 = vmatprep.subr.mxu0 0.0
      %5000 = vmatpush1.msra.mxu0 %v4725
      %5001 = vmatprep.subr.mxu0 0.0
      %5002 = vmatpush1.msra.mxu0 %v4726
      %5003 = vmatprep.subr.mxu0 0.0
      %5004 = vmatpush1.msra.mxu0 %v4727
      %5005 = vmatprep.subr.mxu0 0.0
      %5006 = vmatpush1.msra.mxu0 %v4728
      %5007 = vmatprep.subr.mxu0 0.0
      %5008 = vmatpush1.msra.mxu0 0.0
      %5009 = vmatprep.subr.mxu0 0.0
      %5010 = vmatpush1.msra.mxu0 0.0
      %5011 = vmatprep.subr.mxu0 0.0
      %5012 = vmatpush1.msra.mxu0 0.0
      %5013 = vmatprep.subr.mxu0 0.0
      %5014 = vmatpush1.msra.mxu0 0.0
      %5015 = vmatprep.subr.mxu0 0.0
      %5016 = vmatpush1.msra.mxu0 0.0
      %5017 = vmatprep.subr.mxu0 0.0
      %5018 = vmatpush1.msra.mxu0 0.0
      %5019 = vmatprep.subr.mxu0 0.0
      %5020 = vmatpush1.msra.mxu0 0.0
      %5021 = vmatprep.subr.mxu0 0.0
      %5022 = vmatpush1.msra.mxu0 0.0
      %5023 = vmatprep.mubr.f32.mxu0 %v4942
      %5024 = vmatmul.mubr.f32.gmra.mrb[0].mxu0 %v4689
      %v5025 = vpop.f32.mrb[0].mxu0
      %v5026 = vadd.f32 %v4903, %v5025
      %v5027 = vpop.f32.mrb[0].mxu0
      %5028 = vmatprep.mubr.f32.mxu0 %v4945
      %5029 = vmatmul.mubr.f32.gmra.mrb[0].mxu0 %v4691
      %v5030 = vpop.f32.mrb[0].mxu0
      %v5031 = vadd.f32 %v4908, %v5030
      %v5032 = vpop.f32.mrb[0].mxu0
      %5033 = vmatprep.mubr.f32.mxu0 %v4947
      %5034 = vmatmul.mubr.f32.gmra.mrb[0].mxu0 %v4693
      %v5035 = vpop.f32.mrb[0].mxu0
      %v5036 = vadd.f32 %v4913, %v5035
      %v5037 = vpop.f32.mrb[0].mxu0
      %5038 = vmatprep.mubr.f32.mxu0 %v4949
      %5039 = vmatmul.mubr.f32.gmra.mrb[0].mxu0 %v4695
      %v5040 = vpop.f32.mrb[0].mxu0
      %v5041 = vadd.f32 %v4918, %v5040
      %v5042 = vpop.f32.mrb[0].mxu0
      %5043 = vmatprep.mubr.f32.mxu0 %v4951
      %5044 = vmatmul.mubr.f32.gmra.mrb[0].mxu0 %v4697
      %v5045 = vpop.f32.mrb[0].mxu0
      %v5046 = vadd.f32 %v4923, %v5045
      %v5047 = vpop.f32.mrb[0].mxu0
      %5048 = vmatprep.mubr.f32.mxu0 %v4953
      %5049 = vmatmul.mubr.f32.gmra.mrb[0].mxu0 %v4699
      %v5050 = vpop.f32.mrb[0].mxu0
      %v5051 = vadd.f32 %v4928, %v5050
      %v5052 = vpop.f32.mrb[0].mxu0
      %5053 = vmatprep.mubr.f32.mxu0 %v4955
      %5054 = vmatmul.mubr.f32.gmra.mrb[0].mxu0 %v4701
      %v5055 = vpop.f32.mrb[0].mxu0
      %v5056 = vadd.f32 %v4933, %v5055
      %v5057 = vpop.f32.mrb[0].mxu0
      %5058 = vmatprep.mubr.f32.mxu0 %v4957
      %5059 = vmatmul.mubr.f32.gmra.mrb[0].mxu0 %v4703
      %v5060 = vpop.f32.mrb[0].mxu0
      %v5061 = vadd.f32 %v4938, %v5060
      %v5062 = vpop.f32.mrb[0].mxu0
      %5063 = vdwg.mxu0
      %v5064 = vld [vmem:[#allocation5 + $0x20] sm:$0xfc]
      %v5065 = vld [vmem:[#allocation5 + $0x28] sm:$0xfc]
      %v5066 = vld [vmem:[#allocation5 + $0x30] sm:$0xff]
      %v5067 = vld [vmem:[#allocation5 + $0x38] sm:$0xff]
      %v5068 = vld [vmem:[#allocation5 + $0x40] sm:$0xff]
      %v5069 = vld [vmem:[#allocation5 + $0x48] sm:$0xff]
      %v5070 = vld [vmem:[#allocation5 + $0x50] sm:$0xff]
      %v5071 = vld [vmem:[#allocation5 + $0x58] sm:$0xff]
      %v5072 = vld [vmem:[#allocation5 + $0x60] sm:$0xff]
      %v5073 = vld [vmem:[#allocation5 + $0x68] sm:$0xff]
      %v5074 = vld [vmem:[#allocation5 + $0x70] sm:$0xff]
      %v5075 = vld [vmem:[#allocation5 + $0x78] sm:$0xff]
      %v5076 = vld [vmem:[#allocation5 + $0x80] sm:$0xff]
      %v5077 = vld [vmem:[#allocation5 + $0x88] sm:$0xff]
      %v5078 = vld [vmem:[#allocation5 + $0x90] sm:$0xff]
      %v5079 = vld [vmem:[#allocation5 + $0x98] sm:$0xff]
      %v5080 = vld [vmem:[#allocation5 + $0xa0] sm:$0x3]
      %v5081 = vld [vmem:[#allocation5 + $0xa8] sm:$0x3]
      %s5082 = scalar_lea.vmem %s12, 384
      %v5083 = vld [vmem:[%s5082] sm:$0xff]
      %v5084 = vld [vmem:[%s5082 + $0x8] sm:$0xff]
      %v5085 = vld [vmem:[%s5082 + $0x10] sm:$0xff]
      %v5086 = vld [vmem:[%s5082 + $0x18] sm:$0xff]
      %v5087 = vld [vmem:[%s5082 + $0x20] sm:$0xff]
      %v5088 = vld [vmem:[%s5082 + $0x28] sm:$0xff]
      %v5089 = vld [vmem:[%s5082 + $0x30] sm:$0xff]
      %v5090 = vld [vmem:[%s5082 + $0x38] sm:$0xff]
      %v5091 = vld [vmem:[%s5082 + $0x40] sm:$0xff]
      %v5092 = vld [vmem:[%s5082 + $0x48] sm:$0xff]
      %v5093 = vld [vmem:[%s5082 + $0x50] sm:$0xff]
      %v5094 = vld [vmem:[%s5082 + $0x58] sm:$0xff]
      %v5095 = vld [vmem:[%s5082 + $0x60] sm:$0xff]
      %v5096 = vld [vmem:[%s5082 + $0x68] sm:$0xff]
      %v5097 = vld [vmem:[%s5082 + $0x70] sm:$0xff]
      %v5098 = vld [vmem:[%s5082 + $0x78] sm:$0xff]
      %v5099 = vld [vmem:[%s5082 + $0x80] sm:$0xff]
      %v5100 = vld [vmem:[%s5082 + $0x88] sm:$0xff]
      %v5101 = vld [vmem:[%s5082 + $0x90] sm:$0xff]
      %v5102 = vld [vmem:[%s5082 + $0x98] sm:$0xff]
      %v5103 = vld [vmem:[%s5082 + $0xa0] sm:$0xff]
      %v5104 = vld [vmem:[%s5082 + $0xa8] sm:$0xff]
      %v5105 = vld [vmem:[%s5082 + $0xb0] sm:$0xff]
      %v5106 = vld [vmem:[%s5082 + $0xb8] sm:$0xff]
      %vm5125 = vcmask 1045504
      %v5126 = vrot.slane %v5064, 2
      %v5127 = vrot.slane %v5066, 2
      %v5128 = vsel %vm5125, %v5126, %v5127
      %v5129 = vrot.slane %v5065, 2
      %v5130 = vrot.slane %v5067, 2
      %v5131 = vsel %vm5125, %v5129, %v5130
      %v5132 = vrot.slane %v5068, 2
      %v5133 = vsel %vm5125, %v5127, %v5132
      %v5134 = vrot.slane %v5069, 2
      %v5135 = vsel %vm5125, %v5130, %v5134
      %v5136 = vrot.slane %v5070, 2
      %v5137 = vsel %vm5125, %v5132, %v5136
      %v5138 = vrot.slane %v5071, 2
      %v5139 = vsel %vm5125, %v5134, %v5138
      %v5140 = vrot.slane %v5072, 2
      %v5141 = vsel %vm5125, %v5136, %v5140
      %v5142 = vrot.slane %v5073, 2
      %v5143 = vsel %vm5125, %v5138, %v5142
      %v5144 = vrot.slane %v5074, 2
      %v5145 = vsel %vm5125, %v5140, %v5144
      %v5146 = vrot.slane %v5075, 2
      %v5147 = vsel %vm5125, %v5142, %v5146
      %v5148 = vrot.slane %v5076, 2
      %v5149 = vsel %vm5125, %v5144, %v5148
      %v5150 = vrot.slane %v5077, 2
      %v5151 = vsel %vm5125, %v5146, %v5150
      %v5152 = vrot.slane %v5078, 2
      %v5153 = vsel %vm5125, %v5148, %v5152
      %v5154 = vrot.slane %v5079, 2
      %v5155 = vsel %vm5125, %v5150, %v5154
      %v5156 = vrot.slane %v5080, 2
      %v5157 = vsel %vm5125, %v5152, %v5156
      %v5158 = vrot.slane %v5081, 2
      %v5159 = vsel %vm5125, %v5154, %v5158
      %v5168 = vsel %vm2920, %v5131, 0
      %v5170 = vsel %vm2920, %v5135, 0
      %v5172 = vsel %vm2920, %v5139, 0
      %v5174 = vsel %vm2920, %v5143, 0
      %v5176 = vsel %vm2920, %v5147, 0
      %v5178 = vsel %vm2920, %v5151, 0
      %v5180 = vsel %vm2920, %v5155, 0
      %v5182 = vsel %vm2920, %v5159, 0
      %5184 = vmatprep.subr.mxu0 0.0
      %5185 = vmatpush1.msra.mxu0 %v5083
      %5186 = vmatprep.subr.mxu0 0.0
      %5187 = vmatpush1.msra.mxu0 %v5084
      %5188 = vmatprep.subr.mxu0 0.0
      %5189 = vmatpush1.msra.mxu0 %v5085
      %5190 = vmatprep.subr.mxu0 0.0
      %5191 = vmatpush1.msra.mxu0 %v5086
      %5192 = vmatprep.subr.mxu0 0.0
      %5193 = vmatpush1.msra.mxu0 %v5087
      %5194 = vmatprep.subr.mxu0 0.0
      %5195 = vmatpush1.msra.mxu0 %v5088
      %5196 = vmatprep.subr.mxu0 0.0
      %5197 = vmatpush1.msra.mxu0 %v5089
      %5198 = vmatprep.subr.mxu0 0.0
      %5199 = vmatpush1.msra.mxu0 %v5090
      %5200 = vmatprep.subr.mxu0 0.0
      %5201 = vmatpush1.msra.mxu0 %v5091
      %5202 = vmatprep.subr.mxu0 0.0
      %5203 = vmatpush1.msra.mxu0 %v5092
      %5204 = vmatprep.subr.mxu0 0.0
      %5205 = vmatpush1.msra.mxu0 %v5093
      %5206 = vmatprep.subr.mxu0 0.0
      %5207 = vmatpush1.msra.mxu0 %v5094
      %5208 = vmatprep.subr.mxu0 0.0
      %5209 = vmatpush1.msra.mxu0 %v5095
      %5210 = vmatprep.subr.mxu0 0.0
      %5211 = vmatpush1.msra.mxu0 %v5096
      %5212 = vmatprep.subr.mxu0 0.0
      %5213 = vmatpush1.msra.mxu0 %v5097
      %5214 = vmatprep.subr.mxu0 0.0
      %5215 = vmatpush1.msra.mxu0 %v5098
      %5216 = vmatprep.subr.mxu0 0.0
      %5217 = vmatpush1.msra.mxu0 %v5099
      %5218 = vmatprep.subr.mxu0 0.0
      %5219 = vmatpush1.msra.mxu0 %v5100
      %5220 = vmatprep.subr.mxu0 0.0
      %5221 = vmatpush1.msra.mxu0 %v5101
      %5222 = vmatprep.subr.mxu0 0.0
      %5223 = vmatpush1.msra.mxu0 %v5102
      %5224 = vmatprep.subr.mxu0 0.0
      %5225 = vmatpush1.msra.mxu0 %v5103
      %5226 = vmatprep.subr.mxu0 0.0
      %5227 = vmatpush1.msra.mxu0 %v5104
      %5228 = vmatprep.subr.mxu0 0.0
      %5229 = vmatpush1.msra.mxu0 %v5105
      %5230 = vmatprep.subr.mxu0 0.0
      %5231 = vmatpush1.msra.mxu0 %v5106
      %5232 = vmatprep.subr.mxu0 0.0
      %5233 = vmatpush1.msra.mxu0 0.0
      %5234 = vmatprep.subr.mxu0 0.0
      %5235 = vmatpush1.msra.mxu0 0.0
      %5236 = vmatprep.subr.mxu0 0.0
      %5237 = vmatpush1.msra.mxu0 0.0
      %5238 = vmatprep.subr.mxu0 0.0
      %5239 = vmatpush1.msra.mxu0 0.0
      %5240 = vmatprep.subr.mxu0 0.0
      %5241 = vmatpush1.msra.mxu0 0.0
      %5242 = vmatprep.subr.mxu0 0.0
      %5243 = vmatpush1.msra.mxu0 0.0
      %5244 = vmatprep.subr.mxu0 0.0
      %5245 = vmatpush1.msra.mxu0 0.0
      %5246 = vmatprep.subr.mxu0 0.0
      %5247 = vmatpush1.msra.mxu0 0.0
      %5248 = vmatprep.mubr.f32.mxu0 %v5168
      %5249 = vmatmul.mubr.f32.gmra.mrb[0].mxu0 %v5128
      %v5250 = vpop.f32.mrb[0].mxu0
      %v5251 = vadd.f32 0.0, %v5250
      %v5252 = vpop.f32.mrb[0].mxu0
      %5253 = vmatprep.mubr.f32.mxu0 %v5170
      %5254 = vmatmul.mubr.f32.gmra.mrb[0].mxu0 %v5133
      %v5255 = vpop.f32.mrb[0].mxu0
      %v5256 = vadd.f32 0.0, %v5255
      %v5257 = vpop.f32.mrb[0].mxu0
      %5258 = vmatprep.mubr.f32.mxu0 %v5172
      %5259 = vmatmul.mubr.f32.gmra.mrb[0].mxu0 %v5137
      %v5260 = vpop.f32.mrb[0].mxu0
      %v5261 = vadd.f32 0.0, %v5260
      %v5262 = vpop.f32.mrb[0].mxu0
      %5263 = vmatprep.mubr.f32.mxu0 %v5174
      %5264 = vmatmul.mubr.f32.gmra.mrb[0].mxu0 %v5141
      %v5265 = vpop.f32.mrb[0].mxu0
      %v5266 = vadd.f32 0.0, %v5265
      %v5267 = vpop.f32.mrb[0].mxu0
      %5268 = vmatprep.mubr.f32.mxu0 %v5176
      %5269 = vmatmul.mubr.f32.gmra.mrb[0].mxu0 %v5145
      %v5270 = vpop.f32.mrb[0].mxu0
      %v5271 = vadd.f32 0.0, %v5270
      %v5272 = vpop.f32.mrb[0].mxu0
      %5273 = vmatprep.mubr.f32.mxu0 %v5178
      %5274 = vmatmul.mubr.f32.gmra.mrb[0].mxu0 %v5149
      %v5275 = vpop.f32.mrb[0].mxu0
      %v5276 = vadd.f32 0.0, %v5275
      %v5277 = vpop.f32.mrb[0].mxu0
      %5278 = vmatprep.mubr.f32.mxu0 %v5180
      %5279 = vmatmul.mubr.f32.gmra.mrb[0].mxu0 %v5153
      %v5280 = vpop.f32.mrb[0].mxu0
      %v5281 = vadd.f32 0.0, %v5280
      %v5282 = vpop.f32.mrb[0].mxu0
      %5283 = vmatprep.mubr.f32.mxu0 %v5182
      %5284 = vmatmul.mubr.f32.gmra.mrb[0].mxu0 %v5157
      %v5285 = vpop.f32.mrb[0].mxu0
      %v5286 = vadd.f32 0.0, %v5285
      %v5287 = vpop.f32.mrb[0].mxu0
      %5288 = vdwg.mxu0
      %v5289 = vadd.f32 %v5026, %v5251
      %v5290 = vadd.f32 %v5031, %v5256
      %v5291 = vadd.f32 %v5036, %v5261
      %v5292 = vadd.f32 %v5041, %v5266
      %v5293 = vadd.f32 %v5046, %v5271
      %v5294 = vadd.f32 %v5051, %v5276
      %v5295 = vadd.f32 %v5056, %v5281
      %v5296 = vadd.f32 %v5061, %v5286
      %v5297 = vld [vmem:[%s13] sm:$0x1]
      %v5299 = vlaneseq
      %v5300 = vshrl.u32 %v5299, 7
      %v5301 = vsub.s32 0, %v5300
      %v5302 = vrot.slane %v5297, %v5301
      %v5304 = vadd.f32 %v5289, %v5302
      %v5305 = vadd.f32 %v5290, %v5302
      %v5306 = vadd.f32 %v5291, %v5302
      %v5307 = vadd.f32 %v5292, %v5302
      %v5308 = vadd.f32 %v5293, %v5302
      %v5309 = vadd.f32 %v5294, %v5302
      %v5310 = vadd.f32 %v5295, %v5302
      %v5311 = vadd.f32 %v5296, %v5302
      %vm5312 = vcmp.ge.f32.partialorder %v5304, 0.0
      %vm5313 = vcmp.ge.f32.partialorder %v5305, 0.0
      %vm5314 = vcmp.ge.f32.partialorder %v5306, 0.0
      %vm5315 = vcmp.ge.f32.partialorder %v5307, 0.0
      %vm5316 = vcmp.ge.f32.partialorder %v5308, 0.0
      %vm5317 = vcmp.ge.f32.partialorder %v5309, 0.0
      %vm5318 = vcmp.ge.f32.partialorder %v5310, 0.0
      %vm5319 = vcmp.ge.f32.partialorder %v5311, 0.0
      %v5320 = vmul.f32 %v5304, 0.01
      %v5321 = vmul.f32 %v5305, 0.01
      %v5322 = vmul.f32 %v5306, 0.01
      %v5323 = vmul.f32 %v5307, 0.01
      %v5324 = vmul.f32 %v5308, 0.01
      %v5325 = vmul.f32 %v5309, 0.01
      %v5326 = vmul.f32 %v5310, 0.01
      %v5327 = vmul.f32 %v5311, 0.01
      %v5328 = vsel %vm5312, %v5304, %v5320
      %v5329 = vsel %vm5313, %v5305, %v5321
      %v5330 = vsel %vm5314, %v5306, %v5322
      %v5331 = vsel %vm5315, %v5307, %v5323
      %v5332 = vsel %vm5316, %v5308, %v5324
      %v5333 = vsel %vm5317, %v5309, %v5325
      %v5334 = vsel %vm5318, %v5310, %v5326
      %v5335 = vsel %vm5319, %v5311, %v5327
      %v5336 = vld [vmem:[%s15] sm:$0x1]
      %v5337 = vld [vmem:[%s14] sm:$0xff]
      %v5338 = vld [vmem:[%s14 + $0x8] sm:$0xff]
      %v5339 = vld [vmem:[%s14 + $0x10] sm:$0xff]
      %v5340 = vld [vmem:[%s14 + $0x18] sm:$0xff]
      %v5341 = vld [vmem:[%s14 + $0x20] sm:$0xff]
      %v5342 = vld [vmem:[%s14 + $0x28] sm:$0xff]
      %v5343 = vld [vmem:[%s14 + $0x30] sm:$0xff]
      %v5344 = vld [vmem:[%s14 + $0x38] sm:$0xff]
      %v5345 = vmul.f32 %v5328, %v5337
      %v5346 = vmul.f32 %v5329, %v5338
      %v5347 = vmul.f32 %v5330, %v5339
      %v5348 = vmul.f32 %v5331, %v5340
      %v5349 = vmul.f32 %v5332, %v5341
      %v5350 = vmul.f32 %v5333, %v5342
      %v5351 = vmul.f32 %v5334, %v5343
      %v5352 = vmul.f32 %v5335, %v5344
      %v5353 = vsel %vm2920, %v5345, 0.0
      %v5354 = vsel %vm2920, %v5346, 0.0
      %v5355 = vadd.f32 %v5353, %v5354
      %v5356 = vsel %vm2920, %v5347, 0.0
      %v5357 = vadd.f32 %v5355, %v5356
      %v5358 = vsel %vm2920, %v5348, 0.0
      %v5359 = vadd.f32 %v5357, %v5358
      %v5360 = vsel %vm2920, %v5349, 0.0
      %v5361 = vadd.f32 %v5359, %v5360
      %v5362 = vsel %vm2920, %v5350, 0.0
      %v5363 = vadd.f32 %v5361, %v5362
      %v5364 = vsel %vm2920, %v5351, 0.0
      %v5365 = vadd.f32 %v5363, %v5364
      %v5366 = vsel %vm2920, %v5352, 0.0
      %v5367 = vadd.f32 %v5365, %v5366
      %v5368 = vrot.slane %v5367, 4
      %v5369 = vadd.f32 %v5367, %v5368
      %v5370 = vrot.slane %v5369, 2
      %v5371 = vadd.f32 %v5369, %v5370
      %v5372 = vrot.slane %v5371, 1
      %v5373 = vadd.f32 %v5371, %v5372
      %v5374 = vsel %vm2920, %v5373, 0.0
      %5375 = vadd.xlane.f32.xlu0 %v5374
      %v5376 = vpop.xlane.xlu0 %5375
      %v5377 = vld [vmem:[%s16] sm:$0x1]
      %v5378 = vmul.f32 %v5376, %v5377
      %v5379 = vadd.f32 %v5336, %v5378
      %s5380 = scalar_lea.vmem %s14, 64
      %v5381 = vld [vmem:[%s5380] sm:$0xff]
      %v5382 = vld [vmem:[%s5380 + $0x8] sm:$0xff]
      %v5383 = vld [vmem:[%s5380 + $0x10] sm:$0xff]
      %v5384 = vld [vmem:[%s5380 + $0x18] sm:$0xff]
      %v5385 = vld [vmem:[%s5380 + $0x20] sm:$0xff]
      %v5386 = vld [vmem:[%s5380 + $0x28] sm:$0xff]
      %v5387 = vld [vmem:[%s5380 + $0x30] sm:$0xff]
      %v5388 = vld [vmem:[%s5380 + $0x38] sm:$0xff]
      %v5389 = vmul.f32 %v5328, %v5381
      %v5390 = vmul.f32 %v5329, %v5382
      %v5391 = vmul.f32 %v5330, %v5383
      %v5392 = vmul.f32 %v5331, %v5384
      %v5393 = vmul.f32 %v5332, %v5385
      %v5394 = vmul.f32 %v5333, %v5386
      %v5395 = vmul.f32 %v5334, %v5387
      %v5396 = vmul.f32 %v5335, %v5388
      %v5397 = vsel %vm2920, %v5389, 0.0
      %v5398 = vsel %vm2920, %v5390, 0.0
      %v5399 = vadd.f32 %v5397, %v5398
      %v5400 = vsel %vm2920, %v5391, 0.0
      %v5401 = vadd.f32 %v5399, %v5400
      %v5402 = vsel %vm2920, %v5392, 0.0
      %v5403 = vadd.f32 %v5401, %v5402
      %v5404 = vsel %vm2920, %v5393, 0.0
      %v5405 = vadd.f32 %v5403, %v5404
      %v5406 = vsel %vm2920, %v5394, 0.0
      %v5407 = vadd.f32 %v5405, %v5406
      %v5408 = vsel %vm2920, %v5395, 0.0
      %v5409 = vadd.f32 %v5407, %v5408
      %v5410 = vsel %vm2920, %v5396, 0.0
      %v5411 = vadd.f32 %v5409, %v5410
      %v5412 = vrot.slane %v5411, 4
      %v5413 = vadd.f32 %v5411, %v5412
      %v5414 = vrot.slane %v5413, 2
      %v5415 = vadd.f32 %v5413, %v5414
      %v5416 = vrot.slane %v5415, 1
      %v5417 = vadd.f32 %v5415, %v5416
      %v5418 = vsel %vm2920, %v5417, 0.0
      %5419 = vadd.xlane.f32.xlu0 %v5418
      %v5420 = vpop.xlane.xlu0 %5419
      %v5421 = vld [vmem:[%s16 + $0x1] sm:$0x1]
      %v5422 = vmul.f32 %v5420, %v5421
      %v5423 = vadd.f32 %v5379, %v5422
      %v5425 = vlaneseq
      %v5426 = vshrl.u32 %v5425, 7
      %v5427 = vsub.s32 0, %v5426
      %v5428 = vrot.slane %v5423, %v5427
      %vm5430 = vcmask 15360
      %5431 = vst.msk [vmem:[%s566] sm:$0xff] %vm5430, %v5428
      %p5432 = scmp.lt.s32.totalorder %s28, 1
      %s5433 = scalar_select %p5432, %s28, 1
      %s5434 = smul.addr %s5433, 8
      %s5435 = scalar_lea.vmem %s17, %s5434
      // Predicated region
      $region89: #{encoder_forward.1} parent=87 // pred_check
        %p5436 = pneg %p413
      $region90: #{encoder_forward.1} parent=87 // pred_check_branch
        %5438 = sbr.rel (%p5436) target = $region92
      $region91: #{encoder_forward.1} parent=87 // pred_region
        _
      $region92: #{encoder_forward.1} parent=87 // pred_fallthru
        _
    $region88: #{encoder_forward.1} parent=5 // pred_fallthru
      _
    %p5439 = scmp.le.s32.totalorder 2, %s23
    // Predicated region
    $region93: #{encoder_forward.1} parent=5 // pred_check
      %p5440 = pneg %p5439
    $region94: #{encoder_forward.1} parent=5 // pred_check_branch
      %5442 = sbr.rel (%p5440) target = $region96
    $region95: #{encoder_forward.1} parent=5 // pred_region
      %s5443 = ssub.s32 %s23, 2
      // Predicated region
      $region97: #{encoder_forward.1} parent=95 // pred_check
        %p5444 = pneg %p419
      $region98: #{encoder_forward.1} parent=95 // pred_check_branch
        %5446 = sbr.rel (%p5444) target = $region100
      $region99: #{encoder_forward.1} parent=95 // pred_region
        %p5447 = scmp.lt.s32.totalorder %s29, 1
        %s5448 = scalar_select %p5447, %s29, 1
        %s5449 = smul.addr %s5448, 8
        %s5450 = scalar_lea.vmem %s17, %s5449
      $region100: #{encoder_forward.1} parent=95 // pred_fallthru
        _
    $region96: #{encoder_forward.1} parent=5 // pred_fallthru
      _
  $region6: #{encoder_forward.1} parent=0 // loop_footer
    %s27 = sadd.s32 1, %s23
  $region7: #{encoder_forward.1} parent=0 // loop_footer_branch
    %22 = sbr.rel target = $region3
  $region8: #{encoder_forward.1} parent=0 // loop_exit
    _

</llo_original>
